<compile_context>
chip_gen: v7x
topology: tpu7x:2x2x1
jax: 0.10.0
libtpu: 0.0.40
codegen_flags: <defaults>
</compile_context>

<pallas_src>
import math
import functools

import jax
import jax.numpy as jnp
from jax.experimental import pallas as pl
from jax.experimental.pallas import tpu as pltpu

D_MODEL = 160
N_HEAD = 8
HEAD_DIM = D_MODEL // N_HEAD   # 20
D_FF = 2048
N_LAYERS = 4
D_IN = 409                     # 300 (text) + 74 (audio) + 35 (vision)
D_IN_PAD = 512                 # MXU-friendly padded contraction dim
LN_EPS = 1e-5
MAX_LEN = 64


def _ln(x, g, b):
    """Row-wise LayerNorm over the last dim (eps=1e-5), all f32."""
    mu = jnp.mean(x, axis=-1, keepdims=True)
    xc = x - mu
    var = jnp.mean(xc * xc, axis=-1, keepdims=True)
    return xc * jax.lax.rsqrt(var + LN_EPS) * g + b


# --------------------------- fused forward kernel ---------------------------

def _ef_forward_kernel(
    # stem / constants
    x_ref, lw_ref, add_ref, sel_ref, selt_ref, pool_ref,
    # stacked per-layer params (leading axis = layer)
    wqkv_ref, wo_ref, w1_ref, w2_ref, vec_ref, ffv_ref,
    # epilogue
    norm_ref, o1w_ref, hv_ref, o2b_ref,
    # output / scratch
    out_ref, h_ref,
    *, d0, d1):
    l = pl.program_id(0)
    n_layers = pl.num_programs(0)

    # -------- stem: input linear (padded to 512) + pos-enc (pre-folded) -----
    @pl.when(l == 0)
    def _():
        h_ref[...] = (jnp.dot(x_ref[...], lw_ref[...],
                              preferred_element_type=jnp.float32)
                      + add_ref[...])

    x = h_ref[...]                       # (M, E) f32 residual stream
    xb = x.astype(jnp.bfloat16)
    vec = vec_ref[0]                     # (14, E) f32: scales / biases / LN
    ffv = ffv_ref[0]                     # (2, D_FF) f32: w1 scale, b1

    # -------- q/k/v projections (int8 weights, per-column scale after dot) --
    # rows 0/3 carry the q scale/bias with 1/sqrt(head_dim) already folded in.
    q = (jnp.dot(xb, wqkv_ref[0, 0].astype(jnp.bfloat16),
                 preferred_element_type=jnp.float32) * vec[0:1] + vec[3:4])
    k = (jnp.dot(xb, wqkv_ref[0, 1].astype(jnp.bfloat16),
                 preferred_element_type=jnp.float32) * vec[1:2] + vec[4:5])
    v = (jnp.dot(xb, wqkv_ref[0, 2].astype(jnp.bfloat16),
                 preferred_element_type=jnp.float32) * vec[2:3] + vec[5:6])

    sel = sel_ref[...]                   # (E, H) 0/1 head-selector
    selt = selt_ref[...]                 # (H, E)

    # -------- multi-head self-attention over dim0 tokens ---------------------
    # Loop over keys only; each step scores ALL d0*d1 query rows at once.
    # TODO(synk): fori_loop / flash-style tiling over keys for large d0.
    s_list = []
    for j in range(d0):
        kj = jnp.tile(k[j * d1:(j + 1) * d1, :], (d0, 1))            # (M, E)
        s_list.append(jnp.dot(q * kj, sel,
                              preferred_element_type=jnp.float32))   # (M, H)
    m = s_list[0]
    for s in s_list[1:]:
        m = jnp.maximum(m, s)
    p_list = [jnp.exp(s - m) for s in s_list]
    denom = p_list[0]
    for p in p_list[1:]:
        denom = denom + p
    inv = 1.0 / denom                    # exact divide (negligible cost here)
    acc = None
    for j in range(d0):
        pb = jnp.dot(p_list[j] * inv, selt,
                     preferred_element_type=jnp.float32)             # (M, E)
        term = pb * jnp.tile(v[j * d1:(j + 1) * d1, :], (d0, 1))
        acc = term if acc is None else acc + term

    a = (jnp.dot(acc.astype(jnp.bfloat16), wo_ref[0].astype(jnp.bfloat16),
                 preferred_element_type=jnp.float32) * vec[6:7] + vec[7:8])
    h1 = _ln(x + a, vec[8:9], vec[9:10])             # post-LN 1

    # -------- feed-forward ---------------------------------------------------
    f = (jnp.dot(h1.astype(jnp.bfloat16), w1_ref[0].astype(jnp.bfloat16),
                 preferred_element_type=jnp.float32) * ffv[0:1] + ffv[1:2])
    f = jnp.maximum(f, 0.0)
    f = (jnp.dot(f.astype(jnp.bfloat16), w2_ref[0].astype(jnp.bfloat16),
                 preferred_element_type=jnp.float32) * vec[10:11] + vec[11:12])
    y = _ln(h1 + f, vec[12:13], vec[13:14])          # post-LN 2
    h_ref[...] = y

    # -------- epilogue: final LayerNorm, mean over dim1, MLP head ------------
    @pl.when(l == n_layers - 1)
    def _():
        norm = norm_ref[...]
        z = _ln(y, norm[0:1], norm[1:2])
        pooled = jnp.dot(pool_ref[...], z,
                         preferred_element_type=jnp.float32)          # (d0, E)
        hv = hv_ref[...]
        hh = jnp.dot(pooled.astype(jnp.bfloat16), o1w_ref[...],
                     preferred_element_type=jnp.float32) + hv[0:1]
        hh = jnp.maximum(hh, 0.0)                                     # (d0, 80)
        out_ref[...] = (jnp.sum(hh * hv[1:2], axis=-1, keepdims=True)
                        + o2b_ref[...])                               # (d0, 1)


# ------------------------------- wrapper -------------------------------------

def _const_spec(shape):
    n = len(shape)
    return pl.BlockSpec(shape, lambda l, _n=n: (0,) * _n)


def _layer_spec(shape):
    n = len(shape)
    return pl.BlockSpec((1,) + shape, lambda l, _n=n: (l,) + (0,) * _n)


@jax.jit
def ef_transformer_forward(params, x_text, x_audio, x_vision):
    fused = jnp.concatenate([x_text, x_audio, x_vision], axis=-1)  # (D0,D1,409)
    D0, D1, F = fused.shape
    M = D0 * D1
    x2 = fused.reshape(M, F)
    x_pad = jnp.pad(x2, ((0, 0), (0, D_IN_PAD - F))).astype(jnp.bfloat16)
    pe = params["pe"][:D0, 0, :]                                      # (D0, E)
    stem_add = (jnp.broadcast_to(pe[:, None, :], (D0, D1, D_MODEL))
                .reshape(M, D_MODEL) + params["lin_b"])               # pe + bias
    sel = (jnp.arange(D_MODEL)[:, None] // HEAD_DIM
           == jnp.arange(N_HEAD)[None, :]).astype(jnp.float32)        # (E, H)
    sel_t = sel.T                                                     # (H, E)
    pool = jnp.repeat(jnp.eye(D0, dtype=jnp.float32), D1, axis=1) / D1  # (D0, M)

    in_specs = [
        _const_spec((M, D_IN_PAD)),                                   # x_pad bf16
        _const_spec((D_IN_PAD, D_MODEL)),                             # lin_w bf16
        _const_spec((M, D_MODEL)),                                    # pe + lin_b
        _const_spec((D_MODEL, N_HEAD)),                               # sel
        _const_spec((N_HEAD, D_MODEL)),                               # sel_t
        _const_spec((D0, M)),                                         # dim1 pool
        _layer_spec((3, D_MODEL, D_MODEL)),                           # wqkv int8
        _layer_spec((D_MODEL, D_MODEL)),                              # wo   int8
        _layer_spec((D_MODEL, D_FF)),                                 # w1   int8
        _layer_spec((D_FF, D_MODEL)),                                 # w2   int8
        _layer_spec((14, D_MODEL)),                                   # packed vecs
        _layer_spec((2, D_FF)),                                       # w1 scale, b1
        _const_spec((2, D_MODEL)),                                    # final LN g,b
        _const_spec((D_MODEL, 80)),                                   # head fc1 w
        _const_spec((2, 80)),                                         # fc1 b, fc2 w
        _const_spec((1, 1)),                                          # fc2 b
    ]

    return pl.pallas_call(
        functools.partial(_ef_forward_kernel, d0=D0, d1=D1),
        out_shape=jax.ShapeDtypeStruct((D0, 1), jnp.float32),
        grid=(N_LAYERS,),
        in_specs=in_specs,
        out_specs=pl.BlockSpec((D0, 1), lambda l: (0, 0)),
        scratch_shapes=[pltpu.VMEM((M, D_MODEL), jnp.float32)],
        compiler_params=pltpu.CompilerParams(
            dimension_semantics=("arbitrary",),
            vmem_limit_bytes=32 * 1024 * 1024),
    )(x_pad, params["lin_w"], stem_add, sel, sel_t, pool,
      params["wqkv_q"], params["wo_q"], params["w1_q"], params["w2_q"],
      params["layer_vecs"], params["ff_vecs"],
      params["norm_gb"], params["out1_w"], params["head_vec"], params["out2_b"])


# ------------------------------- params --------------------------------------

def positional_encoding(max_len, d_model):
    position = jnp.arange(max_len, dtype=jnp.float32)[:, None]
    div_term = jnp.exp(
        jnp.arange(0, d_model, 2, dtype=jnp.float32) * (-math.log(10000.0) / d_model)
    )
    pe = jnp.zeros((max_len, d_model), jnp.float32)
    pe = pe.at[:, 0::2].set(jnp.sin(position * div_term))
    pe = pe.at[:, 1::2].set(jnp.cos(position * div_term))
    return pe[:, None, :]  # (max_len, 1, d_model), as in the PyTorch buffer


def _quantize_cols(w):
    """Symmetric per-output-column int8 quantization of an f32 weight."""
    amax = jnp.max(jnp.abs(w), axis=-2, keepdims=True)
    scale = jnp.maximum(amax, 1e-8) / 127.0
    q = jnp.clip(jnp.round(w / scale), -127.0, 127.0).astype(jnp.int8)
    return q, scale


def init_params(key):
    """Deterministic synthetic init; weights pre-quantized & packed for the kernel."""
    keys = iter(jax.random.split(key, 16))

    def randn(shape, scale=0.05):
        return scale * jax.random.normal(next(keys), shape, jnp.float32)

    inv_sqrt_hd = 1.0 / math.sqrt(HEAD_DIM)

    lin_core = randn((D_IN, D_MODEL))
    lin_w = jnp.zeros((D_IN_PAD, D_MODEL), jnp.float32).at[:D_IN].set(lin_core)

    wq = randn((N_LAYERS, D_MODEL, D_MODEL))
    wk = randn((N_LAYERS, D_MODEL, D_MODEL))
    wv = randn((N_LAYERS, D_MODEL, D_MODEL))
    wo = randn((N_LAYERS, D_MODEL, D_MODEL))
    w1 = randn((N_LAYERS, D_MODEL, D_FF))
    w2 = randn((N_LAYERS, D_FF, D_MODEL), scale=0.02)

    wqkv_q, wqkv_s = _quantize_cols(jnp.stack([wq, wk, wv], axis=1))  # (L,3,E,E)
    wo_q, wo_s = _quantize_cols(wo)                                   # (L,1,E)
    w1_q, w1_s = _quantize_cols(w1)                                   # (L,1,FF)
    w2_q, w2_s = _quantize_cols(w2)                                   # (L,1,E)

    zE = jnp.zeros((N_LAYERS, D_MODEL), jnp.float32)
    oE = jnp.ones((N_LAYERS, D_MODEL), jnp.float32)
    layer_vecs = jnp.stack([
        wqkv_s[:, 0, 0, :] * inv_sqrt_hd,   # 0  q scale (1/sqrt(hd) folded)
        wqkv_s[:, 1, 0, :],                 # 1  k scale
        wqkv_s[:, 2, 0, :],                 # 2  v scale
        zE * inv_sqrt_hd,                   # 3  q bias  (1/sqrt(hd) folded)
        zE,                                 # 4  k bias
        zE,                                 # 5  v bias
        wo_s[:, 0, :],                      # 6  out-proj scale
        zE,                                 # 7  out-proj bias
        oE,                                 # 8  ln1 gamma
        zE,                                 # 9  ln1 beta
        w2_s[:, 0, :],                      # 10 ff2 scale
        zE,                                 # 11 ff2 bias
        oE,                                 # 12 ln2 gamma
        zE,                                 # 13 ln2 beta
    ], axis=1)                              # (L, 14, E)

    ff_vecs = jnp.stack([
        w1_s[:, 0, :],                                  # 0 ff1 scale
        jnp.zeros((N_LAYERS, D_FF), jnp.float32),       # 1 ff1 bias
    ], axis=1)                                          # (L, 2, D_FF)

    norm_gb = jnp.stack([jnp.ones((D_MODEL,), jnp.float32),
                         jnp.zeros((D_MODEL,), jnp.float32)], axis=0)  # (2, E)

    out1_w = randn((D_MODEL, 80)).astype(jnp.bfloat16)
    head_vec = jnp.concatenate([
        jnp.zeros((1, 80), jnp.float32),     # fc1 bias
        randn((1, 80)),                      # fc2 weight (stored transposed)
    ], axis=0)                               # (2, 80)

    return {
        "lin_w": lin_w.astype(jnp.bfloat16),
        "lin_b": jnp.zeros((1, D_MODEL), jnp.float32),
        "pe": positional_encoding(MAX_LEN, D_MODEL),
        "wqkv_q": wqkv_q, "wo_q": wo_q, "w1_q": w1_q, "w2_q": w2_q,
        "layer_vecs": layer_vecs, "ff_vecs": ff_vecs,
        "norm_gb": norm_gb,
        "out1_w": out1_w,
        "head_vec": head_vec,
        "out2_b": jnp.zeros((1, 1), jnp.float32),
    }


if __name__ == "__main__":
    key = jax.random.PRNGKey(0)
    pkey, k1, k2, k3 = jax.random.split(key, 4)
    params = init_params(pkey)

    D0, D1 = 2, 8   # dim0 (sequence axis for the encoder), dim1 (mean axis)
    x_text = jax.random.normal(k1, (D0, D1, 300), jnp.float32)
    x_audio = jax.random.normal(k2, (D0, D1, 74), jnp.float32)
    x_vision = jax.random.normal(k3, (D0, D1, 35), jnp.float32)

    out = ef_transformer_forward(params, x_text, x_audio, x_vision)
    jax.block_until_ready(out)
    assert out.shape == (D0, 1) and out.dtype == jnp.float32
    print("KERNEL_OK")
</pallas_src>

<mosaic_0001>
module attributes {stable_mosaic.version = 11 : i64} {
  func.func @_ef_forward_kernel(%arg0: i32, %arg1: memref<16x512xbf16, #tpu.memory_space<vmem>>, %arg2: memref<512x160xbf16, #tpu.memory_space<vmem>>, %arg3: memref<16x160xf32, #tpu.memory_space<vmem>>, %arg4: memref<160x8xf32, #tpu.memory_space<vmem>>, %arg5: memref<8x160xf32, #tpu.memory_space<vmem>>, %arg6: memref<2x16xf32, #tpu.memory_space<vmem>>, %arg7: memref<1x3x160x160xi8, #tpu.memory_space<vmem>>, %arg8: memref<1x160x160xi8, #tpu.memory_space<vmem>>, %arg9: memref<1x160x2048xi8, #tpu.memory_space<vmem>>, %arg10: memref<1x2048x160xi8, #tpu.memory_space<vmem>>, %arg11: memref<1x14x160xf32, #tpu.memory_space<vmem>>, %arg12: memref<1x2x2048xf32, #tpu.memory_space<vmem>>, %arg13: memref<2x160xf32, #tpu.memory_space<vmem>>, %arg14: memref<160x80xbf16, #tpu.memory_space<vmem>>, %arg15: memref<2x80xf32, #tpu.memory_space<vmem>>, %arg16: memref<1x1xf32, #tpu.memory_space<vmem>>, %arg17: memref<2x1xf32, #tpu.memory_space<vmem>>, %arg18: memref<16x160xf32, #tpu.memory_space<vmem>>) attributes {dimension_semantics = [#tpu.dimension_semantics<arbitrary>], iteration_bounds = array<i64: 4>, scalar_prefetch = 0 : i64, scratch_operands = 1 : i64, tpu.core_type = #tpu.core_type<tc>, window_params = [{pipeline_mode = #tpu.pipeline_mode<synchronous>, transform_indices = @transform_0, window_bounds = array<i64: 16, 512>}, {pipeline_mode = #tpu.pipeline_mode<synchronous>, transform_indices = @transform_1, window_bounds = array<i64: 512, 160>}, {pipeline_mode = #tpu.pipeline_mode<synchronous>, transform_indices = @transform_2, window_bounds = array<i64: 16, 160>}, {pipeline_mode = #tpu.pipeline_mode<synchronous>, transform_indices = @transform_3, window_bounds = array<i64: 160, 8>}, {pipeline_mode = #tpu.pipeline_mode<synchronous>, transform_indices = @transform_4, window_bounds = array<i64: 8, 160>}, {pipeline_mode = #tpu.pipeline_mode<synchronous>, transform_indices = @transform_5, window_bounds = array<i64: 2, 16>}, {transform_indices = @transform_6, window_bounds = array<i64: 1, 3, 160, 160>}, {transform_indices = @transform_7, window_bounds = array<i64: 1, 160, 160>}, {transform_indices = @transform_8, window_bounds = array<i64: 1, 160, 2048>}, {transform_indices = @transform_9, window_bounds = array<i64: 1, 2048, 160>}, {transform_indices = @transform_10, window_bounds = array<i64: 1, 14, 160>}, {transform_indices = @transform_11, window_bounds = array<i64: 1, 2, 2048>}, {pipeline_mode = #tpu.pipeline_mode<synchronous>, transform_indices = @transform_12, window_bounds = array<i64: 2, 160>}, {pipeline_mode = #tpu.pipeline_mode<synchronous>, transform_indices = @transform_13, window_bounds = array<i64: 160, 80>}, {pipeline_mode = #tpu.pipeline_mode<synchronous>, transform_indices = @transform_14, window_bounds = array<i64: 2, 80>}, {pipeline_mode = #tpu.pipeline_mode<synchronous>, transform_indices = @transform_15, window_bounds = array<i64: 1, 1>}, {pipeline_mode = #tpu.pipeline_mode<synchronous>, transform_indices = @transform_16, window_bounds = array<i64: 2, 1>}]} {
    %c0_i32 = arith.constant 0 : i32
    %0 = arith.cmpi eq, %arg0, %c0_i32 : i32
    %1 = arith.extui %0 : i1 to i32
    %c0_i32_0 = arith.constant 0 : i32
    %2 = arith.cmpi ne, %1, %c0_i32_0 : i32
    scf.if %2 {
      %c0_55 = arith.constant 0 : index
      %c0_56 = arith.constant 0 : index
      %153 = vector.load %arg1[%c0_55, %c0_56] : memref<16x512xbf16, #tpu.memory_space<vmem>>, vector<16x512xbf16>
      %c0_57 = arith.constant 0 : index
      %c0_58 = arith.constant 0 : index
      %154 = vector.load %arg2[%c0_57, %c0_58] : memref<512x160xbf16, #tpu.memory_space<vmem>>, vector<512x160xbf16>
      %cst_59 = arith.constant dense<0.000000e+00> : vector<16x160xf32>
      %155 = tpu.matmul %153, %154, %cst_59 {dimension_numbers = #tpu.dot_dimension_numbers<[1], [0], [0], [1], [0, 0, 1, 1], [], []>} : vector<16x512xbf16>, vector<512x160xbf16>, vector<16x160xf32> -> vector<16x160xf32>
      %c0_60 = arith.constant 0 : index
      %c0_61 = arith.constant 0 : index
      %156 = vector.load %arg3[%c0_60, %c0_61] : memref<16x160xf32, #tpu.memory_space<vmem>>, vector<16x160xf32>
      %157 = arith.addf %155, %156 : vector<16x160xf32>
      %c0_62 = arith.constant 0 : index
      %c0_63 = arith.constant 0 : index
      %158 = vector.load %arg18[%c0_62, %c0_63] : memref<16x160xf32, #tpu.memory_space<vmem>>, vector<16x160xf32>
      tpu.vector_store %arg18[%c0_62, %c0_63], %157 {strides = array<i32>} : memref<16x160xf32, #tpu.memory_space<vmem>>, vector<16x160xf32>,
    } else {
    }
    %c0 = arith.constant 0 : index
    %c0_1 = arith.constant 0 : index
    %3 = vector.load %arg18[%c0, %c0_1] : memref<16x160xf32, #tpu.memory_space<vmem>>, vector<16x160xf32>
    %4 = arith.truncf %3 : vector<16x160xf32> to vector<16x160xbf16>
    %c0_2 = arith.constant 0 : index
    %c0_3 = arith.constant 0 : index
    %c0_4 = arith.constant 0 : index
    %5 = vector.load %arg11[%c0_2, %c0_3, %c0_4] : memref<1x14x160xf32, #tpu.memory_space<vmem>>, vector<1x14x160xf32>
    %6 = vector.shape_cast %5 : vector<1x14x160xf32> to vector<14x160xf32>
    %c0_5 = arith.constant 0 : index
    %c0_6 = arith.constant 0 : index
    %c0_7 = arith.constant 0 : index
    %7 = vector.load %arg12[%c0_5, %c0_6, %c0_7] : memref<1x2x2048xf32, #tpu.memory_space<vmem>>, vector<1x2x2048xf32>
    %8 = vector.shape_cast %7 : vector<1x2x2048xf32> to vector<2x2048xf32>
    %c0_8 = arith.constant 0 : index
    %c0_9 = arith.constant 0 : index
    %c0_10 = arith.constant 0 : index
    %c0_11 = arith.constant 0 : index
    %9 = vector.load %arg7[%c0_8, %c0_9, %c0_10, %c0_11] : memref<1x3x160x160xi8, #tpu.memory_space<vmem>>, vector<1x1x160x160xi8>
    %10 = vector.shape_cast %9 : vector<1x1x160x160xi8> to vector<160x160xi8>
    %11 = arith.sitofp %10 : vector<160x160xi8> to vector<160x160xbf16>
    %cst = arith.constant dense<0.000000e+00> : vector<16x160xf32>
    %12 = tpu.matmul %4, %11, %cst {dimension_numbers = #tpu.dot_dimension_numbers<[1], [0], [0], [1], [0, 0, 1, 1], [], []>} : vector<16x160xbf16>, vector<160x160xbf16>, vector<16x160xf32> -> vector<16x160xf32>
    %13 = vector.extract_strided_slice %6 {offsets = [0, 0], sizes = [1, 160], strides = [1, 1]} : vector<14x160xf32> to vector<1x160xf32>
    %14 = vector.broadcast %13 : vector<1x160xf32> to vector<16x160xf32>
    %15 = arith.mulf %12, %14 : vector<16x160xf32>
    %16 = vector.extract_strided_slice %6 {offsets = [3, 0], sizes = [1, 160], strides = [1, 1]} : vector<14x160xf32> to vector<1x160xf32>
    %17 = vector.broadcast %16 : vector<1x160xf32> to vector<16x160xf32>
    %18 = arith.addf %15, %17 : vector<16x160xf32>
    %c0_12 = arith.constant 0 : index
    %c1 = arith.constant 1 : index
    %c0_13 = arith.constant 0 : index
    %c0_14 = arith.constant 0 : index
    %19 = vector.load %arg7[%c0_12, %c1, %c0_13, %c0_14] : memref<1x3x160x160xi8, #tpu.memory_space<vmem>>, vector<1x1x160x160xi8>
    %20 = vector.shape_cast %19 : vector<1x1x160x160xi8> to vector<160x160xi8>
    %21 = arith.sitofp %20 : vector<160x160xi8> to vector<160x160xbf16>
    %cst_15 = arith.constant dense<0.000000e+00> : vector<16x160xf32>
    %22 = tpu.matmul %4, %21, %cst_15 {dimension_numbers = #tpu.dot_dimension_numbers<[1], [0], [0], [1], [0, 0, 1, 1], [], []>} : vector<16x160xbf16>, vector<160x160xbf16>, vector<16x160xf32> -> vector<16x160xf32>
    %23 = vector.extract_strided_slice %6 {offsets = [1, 0], sizes = [1, 160], strides = [1, 1]} : vector<14x160xf32> to vector<1x160xf32>
    %24 = vector.broadcast %23 : vector<1x160xf32> to vector<16x160xf32>
    %25 = arith.mulf %22, %24 : vector<16x160xf32>
    %26 = vector.extract_strided_slice %6 {offsets = [4, 0], sizes = [1, 160], strides = [1, 1]} : vector<14x160xf32> to vector<1x160xf32>
    %27 = vector.broadcast %26 : vector<1x160xf32> to vector<16x160xf32>
    %28 = arith.addf %25, %27 : vector<16x160xf32>
    %c0_16 = arith.constant 0 : index
    %c2 = arith.constant 2 : index
    %c0_17 = arith.constant 0 : index
    %c0_18 = arith.constant 0 : index
    %29 = vector.load %arg7[%c0_16, %c2, %c0_17, %c0_18] : memref<1x3x160x160xi8, #tpu.memory_space<vmem>>, vector<1x1x160x160xi8>
    %30 = vector.shape_cast %29 : vector<1x1x160x160xi8> to vector<160x160xi8>
    %31 = arith.sitofp %30 : vector<160x160xi8> to vector<160x160xbf16>
    %cst_19 = arith.constant dense<0.000000e+00> : vector<16x160xf32>
    %32 = tpu.matmul %4, %31, %cst_19 {dimension_numbers = #tpu.dot_dimension_numbers<[1], [0], [0], [1], [0, 0, 1, 1], [], []>} : vector<16x160xbf16>, vector<160x160xbf16>, vector<16x160xf32> -> vector<16x160xf32>
    %33 = vector.extract_strided_slice %6 {offsets = [2, 0], sizes = [1, 160], strides = [1, 1]} : vector<14x160xf32> to vector<1x160xf32>
    %34 = vector.broadcast %33 : vector<1x160xf32> to vector<16x160xf32>
    %35 = arith.mulf %32, %34 : vector<16x160xf32>
    %36 = vector.extract_strided_slice %6 {offsets = [5, 0], sizes = [1, 160], strides = [1, 1]} : vector<14x160xf32> to vector<1x160xf32>
    %37 = vector.broadcast %36 : vector<1x160xf32> to vector<16x160xf32>
    %38 = arith.addf %35, %37 : vector<16x160xf32>
    %c0_20 = arith.constant 0 : index
    %c0_21 = arith.constant 0 : index
    %39 = vector.load %arg4[%c0_20, %c0_21] : memref<160x8xf32, #tpu.memory_space<vmem>>, vector<160x8xf32>
    %c0_22 = arith.constant 0 : index
    %c0_23 = arith.constant 0 : index
    %40 = vector.load %arg5[%c0_22, %c0_23] : memref<8x160xf32, #tpu.memory_space<vmem>>, vector<8x160xf32>
    %41 = vector.extract_strided_slice %28 {offsets = [0, 0], sizes = [8, 160], strides = [1, 1]} : vector<16x160xf32> to vector<8x160xf32>
    %42 = tpu.concatenate %41, %41 in 0 : vector<8x160xf32>, vector<8x160xf32> -> vector<16x160xf32>
    %43 = arith.mulf %18, %42 : vector<16x160xf32>
    %cst_24 = arith.constant dense<0.000000e+00> : vector<16x8xf32>
    %44 = tpu.matmul %43, %39, %cst_24 {dimension_numbers = #tpu.dot_dimension_numbers<[1], [0], [0], [1], [0, 0, 1, 1], [], []>} : vector<16x160xf32>, vector<160x8xf32>, vector<16x8xf32> -> vector<16x8xf32>
    %45 = vector.extract_strided_slice %28 {offsets = [8, 0], sizes = [8, 160], strides = [1, 1]} : vector<16x160xf32> to vector<8x160xf32>
    %46 = tpu.concatenate %45, %45 in 0 : vector<8x160xf32>, vector<8x160xf32> -> vector<16x160xf32>
    %47 = arith.mulf %18, %46 : vector<16x160xf32>
    %cst_25 = arith.constant dense<0.000000e+00> : vector<16x8xf32>
    %48 = tpu.matmul %47, %39, %cst_25 {dimension_numbers = #tpu.dot_dimension_numbers<[1], [0], [0], [1], [0, 0, 1, 1], [], []>} : vector<16x160xf32>, vector<160x8xf32>, vector<16x8xf32> -> vector<16x8xf32>
    %49 = arith.maximumf %44, %48 : vector<16x8xf32>
    %50 = arith.subf %44, %49 : vector<16x8xf32>
    %51 = math.exp %50 : vector<16x8xf32>
    %52 = arith.subf %48, %49 : vector<16x8xf32>
    %53 = math.exp %52 : vector<16x8xf32>
    %54 = arith.addf %51, %53 : vector<16x8xf32>
    %cst_26 = arith.constant 1.000000e+00 : f32
    %55 = vector.broadcast %cst_26 : f32 to vector<16x8xf32>
    %56 = arith.divf %55, %54 : vector<16x8xf32>
    %57 = arith.mulf %51, %56 : vector<16x8xf32>
    %cst_27 = arith.constant dense<0.000000e+00> : vector<16x160xf32>
    %58 = tpu.matmul %57, %40, %cst_27 {dimension_numbers = #tpu.dot_dimension_numbers<[1], [0], [0], [1], [0, 0, 1, 1], [], []>} : vector<16x8xf32>, vector<8x160xf32>, vector<16x160xf32> -> vector<16x160xf32>
    %59 = vector.extract_strided_slice %38 {offsets = [0, 0], sizes = [8, 160], strides = [1, 1]} : vector<16x160xf32> to vector<8x160xf32>
    %60 = tpu.concatenate %59, %59 in 0 : vector<8x160xf32>, vector<8x160xf32> -> vector<16x160xf32>
    %61 = arith.mulf %58, %60 : vector<16x160xf32>
    %62 = arith.mulf %53, %56 : vector<16x8xf32>
    %cst_28 = arith.constant dense<0.000000e+00> : vector<16x160xf32>
    %63 = tpu.matmul %62, %40, %cst_28 {dimension_numbers = #tpu.dot_dimension_numbers<[1], [0], [0], [1], [0, 0, 1, 1], [], []>} : vector<16x8xf32>, vector<8x160xf32>, vector<16x160xf32> -> vector<16x160xf32>
    %64 = vector.extract_strided_slice %38 {offsets = [8, 0], sizes = [8, 160], strides = [1, 1]} : vector<16x160xf32> to vector<8x160xf32>
    %65 = tpu.concatenate %64, %64 in 0 : vector<8x160xf32>, vector<8x160xf32> -> vector<16x160xf32>
    %66 = arith.mulf %63, %65 : vector<16x160xf32>
    %67 = arith.addf %61, %66 : vector<16x160xf32>
    %68 = arith.truncf %67 : vector<16x160xf32> to vector<16x160xbf16>
    %c0_29 = arith.constant 0 : index
    %c0_30 = arith.constant 0 : index
    %c0_31 = arith.constant 0 : index
    %69 = vector.load %arg8[%c0_29, %c0_30, %c0_31] : memref<1x160x160xi8, #tpu.memory_space<vmem>>, vector<1x160x160xi8>
    %70 = vector.shape_cast %69 : vector<1x160x160xi8> to vector<160x160xi8>
    %71 = arith.sitofp %70 : vector<160x160xi8> to vector<160x160xbf16>
    %cst_32 = arith.constant dense<0.000000e+00> : vector<16x160xf32>
    %72 = tpu.matmul %68, %71, %cst_32 {dimension_numbers = #tpu.dot_dimension_numbers<[1], [0], [0], [1], [0, 0, 1, 1], [], []>} : vector<16x160xbf16>, vector<160x160xbf16>, vector<16x160xf32> -> vector<16x160xf32>
    %73 = vector.extract_strided_slice %6 {offsets = [6, 0], sizes = [1, 160], strides = [1, 1]} : vector<14x160xf32> to vector<1x160xf32>
    %74 = vector.broadcast %73 : vector<1x160xf32> to vector<16x160xf32>
    %75 = arith.mulf %72, %74 : vector<16x160xf32>
    %76 = vector.extract_strided_slice %6 {offsets = [7, 0], sizes = [1, 160], strides = [1, 1]} : vector<14x160xf32> to vector<1x160xf32>
    %77 = vector.broadcast %76 : vector<1x160xf32> to vector<16x160xf32>
    %78 = arith.addf %75, %77 : vector<16x160xf32>
    %79 = arith.addf %3, %78 : vector<16x160xf32>
    %80 = vector.extract_strided_slice %6 {offsets = [8, 0], sizes = [1, 160], strides = [1, 1]} : vector<14x160xf32> to vector<1x160xf32>
    %81 = vector.extract_strided_slice %6 {offsets = [9, 0], sizes = [1, 160], strides = [1, 1]} : vector<14x160xf32> to vector<1x160xf32>
    %cst_33 = arith.constant dense<0.000000e+00> : vector<16xf32>
    %82 = vector.multi_reduction <add>, %79, %cst_33 [1] : vector<16x160xf32> to vector<16xf32>
    %83 = vector.shape_cast %82 : vector<16xf32> to vector<16x1xf32>
    %cst_34 = arith.constant 1.600000e+02 : f32
    %84 = vector.broadcast %cst_34 : f32 to vector<16x1xf32>
    %85 = arith.divf %83, %84 : vector<16x1xf32>
    %86 = vector.broadcast %85 : vector<16x1xf32> to vector<16x160xf32>
    %87 = arith.subf %79, %86 : vector<16x160xf32>
    %88 = arith.mulf %87, %87 : vector<16x160xf32>
    %cst_35 = arith.constant dense<0.000000e+00> : vector<16xf32>
    %89 = vector.multi_reduction <add>, %88, %cst_35 [1] : vector<16x160xf32> to vector<16xf32>
    %90 = vector.shape_cast %89 : vector<16xf32> to vector<16x1xf32>
    %cst_36 = arith.constant 1.600000e+02 : f32
    %91 = vector.broadcast %cst_36 : f32 to vector<16x1xf32>
    %92 = arith.divf %90, %91 : vector<16x1xf32>
    %cst_37 = arith.constant 9.99999974E-6 : f32
    %93 = vector.broadcast %cst_37 : f32 to vector<16x1xf32>
    %94 = arith.addf %92, %93 : vector<16x1xf32>
    %95 = math.rsqrt %94 : vector<16x1xf32>
    %96 = vector.broadcast %95 : vector<16x1xf32> to vector<16x160xf32>
    %97 = arith.mulf %87, %96 : vector<16x160xf32>
    %98 = vector.broadcast %80 : vector<1x160xf32> to vector<16x160xf32>
    %99 = arith.mulf %97, %98 : vector<16x160xf32>
    %100 = vector.broadcast %81 : vector<1x160xf32> to vector<16x160xf32>
    %101 = arith.addf %99, %100 : vector<16x160xf32>
    %102 = arith.truncf %101 : vector<16x160xf32> to vector<16x160xbf16>
    %c0_38 = arith.constant 0 : index
    %c0_39 = arith.constant 0 : index
    %c0_40 = arith.constant 0 : index
    %103 = vector.load %arg9[%c0_38, %c0_39, %c0_40] : memref<1x160x2048xi8, #tpu.memory_space<vmem>>, vector<1x160x2048xi8>
    %104 = vector.shape_cast %103 : vector<1x160x2048xi8> to vector<160x2048xi8>
    %105 = arith.sitofp %104 : vector<160x2048xi8> to vector<160x2048xbf16>
    %cst_41 = arith.constant dense<0.000000e+00> : vector<16x2048xf32>
    %106 = tpu.matmul %102, %105, %cst_41 {dimension_numbers = #tpu.dot_dimension_numbers<[1], [0], [0], [1], [0, 0, 1, 1], [], []>} : vector<16x160xbf16>, vector<160x2048xbf16>, vector<16x2048xf32> -> vector<16x2048xf32>
    %107 = vector.extract_strided_slice %8 {offsets = [0, 0], sizes = [1, 2048], strides = [1, 1]} : vector<2x2048xf32> to vector<1x2048xf32>
    %108 = vector.broadcast %107 : vector<1x2048xf32> to vector<16x2048xf32>
    %109 = arith.mulf %106, %108 : vector<16x2048xf32>
    %110 = vector.extract_strided_slice %8 {offsets = [1, 0], sizes = [1, 2048], strides = [1, 1]} : vector<2x2048xf32> to vector<1x2048xf32>
    %111 = vector.broadcast %110 : vector<1x2048xf32> to vector<16x2048xf32>
    %112 = arith.addf %109, %111 : vector<16x2048xf32>
    %cst_42 = arith.constant 0.000000e+00 : f32
    %113 = vector.broadcast %cst_42 : f32 to vector<16x2048xf32>
    %114 = arith.maximumf %112, %113 : vector<16x2048xf32>
    %115 = arith.truncf %114 : vector<16x2048xf32> to vector<16x2048xbf16>
    %c0_43 = arith.constant 0 : index
    %c0_44 = arith.constant 0 : index
    %c0_45 = arith.constant 0 : index
    %116 = vector.load %arg10[%c0_43, %c0_44, %c0_45] : memref<1x2048x160xi8, #tpu.memory_space<vmem>>, vector<1x2048x160xi8>
    %117 = vector.shape_cast %116 : vector<1x2048x160xi8> to vector<2048x160xi8>
    %118 = arith.sitofp %117 : vector<2048x160xi8> to vector<2048x160xbf16>
    %cst_46 = arith.constant dense<0.000000e+00> : vector<16x160xf32>
    %119 = tpu.matmul %115, %118, %cst_46 {dimension_numbers = #tpu.dot_dimension_numbers<[1], [0], [0], [1], [0, 0, 1, 1], [], []>} : vector<16x2048xbf16>, vector<2048x160xbf16>, vector<16x160xf32> -> vector<16x160xf32>
    %120 = vector.extract_strided_slice %6 {offsets = [10, 0], sizes = [1, 160], strides = [1, 1]} : vector<14x160xf32> to vector<1x160xf32>
    %121 = vector.broadcast %120 : vector<1x160xf32> to vector<16x160xf32>
    %122 = arith.mulf %119, %121 : vector<16x160xf32>
    %123 = vector.extract_strided_slice %6 {offsets = [11, 0], sizes = [1, 160], strides = [1, 1]} : vector<14x160xf32> to vector<1x160xf32>
    %124 = vector.broadcast %123 : vector<1x160xf32> to vector<16x160xf32>
    %125 = arith.addf %122, %124 : vector<16x160xf32>
    %126 = arith.addf %101, %125 : vector<16x160xf32>
    %127 = vector.extract_strided_slice %6 {offsets = [12, 0], sizes = [1, 160], strides = [1, 1]} : vector<14x160xf32> to vector<1x160xf32>
    %128 = vector.extract_strided_slice %6 {offsets = [13, 0], sizes = [1, 160], strides = [1, 1]} : vector<14x160xf32> to vector<1x160xf32>
    %cst_47 = arith.constant dense<0.000000e+00> : vector<16xf32>
    %129 = vector.multi_reduction <add>, %126, %cst_47 [1] : vector<16x160xf32> to vector<16xf32>
    %130 = vector.shape_cast %129 : vector<16xf32> to vector<16x1xf32>
    %cst_48 = arith.constant 1.600000e+02 : f32
    %131 = vector.broadcast %cst_48 : f32 to vector<16x1xf32>
    %132 = arith.divf %130, %131 : vector<16x1xf32>
    %133 = vector.broadcast %132 : vector<16x1xf32> to vector<16x160xf32>
    %134 = arith.subf %126, %133 : vector<16x160xf32>
    %135 = arith.mulf %134, %134 : vector<16x160xf32>
    %cst_49 = arith.constant dense<0.000000e+00> : vector<16xf32>
    %136 = vector.multi_reduction <add>, %135, %cst_49 [1] : vector<16x160xf32> to vector<16xf32>
    %137 = vector.shape_cast %136 : vector<16xf32> to vector<16x1xf32>
    %cst_50 = arith.constant 1.600000e+02 : f32
    %138 = vector.broadcast %cst_50 : f32 to vector<16x1xf32>
    %139 = arith.divf %137, %138 : vector<16x1xf32>
    %cst_51 = arith.constant 9.99999974E-6 : f32
    %140 = vector.broadcast %cst_51 : f32 to vector<16x1xf32>
    %141 = arith.addf %139, %140 : vector<16x1xf32>
    %142 = math.rsqrt %141 : vector<16x1xf32>
    %143 = vector.broadcast %142 : vector<16x1xf32> to vector<16x160xf32>
    %144 = arith.mulf %134, %143 : vector<16x160xf32>
    %145 = vector.broadcast %127 : vector<1x160xf32> to vector<16x160xf32>
    %146 = arith.mulf %144, %145 : vector<16x160xf32>
    %147 = vector.broadcast %128 : vector<1x160xf32> to vector<16x160xf32>
    %148 = arith.addf %146, %147 : vector<16x160xf32>
    %c0_52 = arith.constant 0 : index
    %c0_53 = arith.constant 0 : index
    %149 = vector.load %arg18[%c0_52, %c0_53] : memref<16x160xf32, #tpu.memory_space<vmem>>, vector<16x160xf32>
    tpu.vector_store %arg18[%c0_52, %c0_53], %148 {strides = array<i32>} : memref<16x160xf32, #tpu.memory_space<vmem>>, vector<16x160xf32>,
    %c3_i32 = arith.constant 3 : i32
    %150 = arith.cmpi eq, %arg0, %c3_i32 : i32
    %151 = arith.extui %150 : i1 to i32
    %c0_i32_54 = arith.constant 0 : i32
    %152 = arith.cmpi ne, %151, %c0_i32_54 : i32
    scf.if %152 {
      %c0_55 = arith.constant 0 : index
      %c0_56 = arith.constant 0 : index
      %153 = vector.load %arg13[%c0_55, %c0_56] : memref<2x160xf32, #tpu.memory_space<vmem>>, vector<2x160xf32>
      %154 = vector.extract_strided_slice %153 {offsets = [0, 0], sizes = [1, 160], strides = [1, 1]} : vector<2x160xf32> to vector<1x160xf32>
      %155 = vector.extract_strided_slice %153 {offsets = [1, 0], sizes = [1, 160], strides = [1, 1]} : vector<2x160xf32> to vector<1x160xf32>
      %cst_57 = arith.constant dense<0.000000e+00> : vector<16xf32>
      %156 = vector.multi_reduction <add>, %148, %cst_57 [1] : vector<16x160xf32> to vector<16xf32>
      %157 = vector.shape_cast %156 : vector<16xf32> to vector<16x1xf32>
      %cst_58 = arith.constant 1.600000e+02 : f32
      %158 = vector.broadcast %cst_58 : f32 to vector<16x1xf32>
      %159 = arith.divf %157, %158 : vector<16x1xf32>
      %160 = vector.broadcast %159 : vector<16x1xf32> to vector<16x160xf32>
      %161 = arith.subf %148, %160 : vector<16x160xf32>
      %162 = arith.mulf %161, %161 : vector<16x160xf32>
      %cst_59 = arith.constant dense<0.000000e+00> : vector<16xf32>
      %163 = vector.multi_reduction <add>, %162, %cst_59 [1] : vector<16x160xf32> to vector<16xf32>
      %164 = vector.shape_cast %163 : vector<16xf32> to vector<16x1xf32>
      %cst_60 = arith.constant 1.600000e+02 : f32
      %165 = vector.broadcast %cst_60 : f32 to vector<16x1xf32>
      %166 = arith.divf %164, %165 : vector<16x1xf32>
      %cst_61 = arith.constant 9.99999974E-6 : f32
      %167 = vector.broadcast %cst_61 : f32 to vector<16x1xf32>
      %168 = arith.addf %166, %167 : vector<16x1xf32>
      %169 = math.rsqrt %168 : vector<16x1xf32>
      %170 = vector.broadcast %169 : vector<16x1xf32> to vector<16x160xf32>
      %171 = arith.mulf %161, %170 : vector<16x160xf32>
      %172 = vector.broadcast %154 : vector<1x160xf32> to vector<16x160xf32>
      %173 = arith.mulf %171, %172 : vector<16x160xf32>
      %174 = vector.broadcast %155 : vector<1x160xf32> to vector<16x160xf32>
      %175 = arith.addf %173, %174 : vector<16x160xf32>
      %c0_62 = arith.constant 0 : index
      %c0_63 = arith.constant 0 : index
      %176 = vector.load %arg6[%c0_62, %c0_63] : memref<2x16xf32, #tpu.memory_space<vmem>>, vector<2x16xf32>
      %cst_64 = arith.constant dense<0.000000e+00> : vector<2x160xf32>
      %177 = tpu.matmul %176, %175, %cst_64 {dimension_numbers = #tpu.dot_dimension_numbers<[1], [0], [0], [1], [0, 0, 1, 1], [], []>} : vector<2x16xf32>, vector<16x160xf32>, vector<2x160xf32> -> vector<2x160xf32>
      %c0_65 = arith.constant 0 : index
      %c0_66 = arith.constant 0 : index
      %178 = vector.load %arg15[%c0_65, %c0_66] : memref<2x80xf32, #tpu.memory_space<vmem>>, vector<2x80xf32>
      %179 = arith.truncf %177 : vector<2x160xf32> to vector<2x160xbf16>
      %c0_67 = arith.constant 0 : index
      %c0_68 = arith.constant 0 : index
      %180 = vector.load %arg14[%c0_67, %c0_68] : memref<160x80xbf16, #tpu.memory_space<vmem>>, vector<160x80xbf16>
      %cst_69 = arith.constant dense<0.000000e+00> : vector<2x80xf32>
      %181 = tpu.matmul %179, %180, %cst_69 {dimension_numbers = #tpu.dot_dimension_numbers<[1], [0], [0], [1], [0, 0, 1, 1], [], []>} : vector<2x160xbf16>, vector<160x80xbf16>, vector<2x80xf32> -> vector<2x80xf32>
      %182 = vector.extract_strided_slice %178 {offsets = [0, 0], sizes = [1, 80], strides = [1, 1]} : vector<2x80xf32> to vector<1x80xf32>
      %183 = vector.broadcast %182 : vector<1x80xf32> to vector<2x80xf32>
      %184 = arith.addf %181, %183 : vector<2x80xf32>
      %cst_70 = arith.constant 0.000000e+00 : f32
      %185 = vector.broadcast %cst_70 : f32 to vector<2x80xf32>
      %186 = arith.maximumf %184, %185 : vector<2x80xf32>
      %187 = vector.extract_strided_slice %178 {offsets = [1, 0], sizes = [1, 80], strides = [1, 1]} : vector<2x80xf32> to vector<1x80xf32>
      %188 = vector.broadcast %187 : vector<1x80xf32> to vector<2x80xf32>
      %189 = arith.mulf %186, %188 : vector<2x80xf32>
      %cst_71 = arith.constant dense<0.000000e+00> : vector<2xf32>
      %190 = vector.multi_reduction <add>, %189, %cst_71 [1] : vector<2x80xf32> to vector<2xf32>
      %191 = vector.shape_cast %190 : vector<2xf32> to vector<2x1xf32>
      %c0_72 = arith.constant 0 : index
      %c0_73 = arith.constant 0 : index
      %192 = vector.load %arg16[%c0_72, %c0_73] : memref<1x1xf32, #tpu.memory_space<vmem>>, vector<1x1xf32>
      %193 = vector.broadcast %192 : vector<1x1xf32> to vector<2x1xf32>
      %194 = arith.addf %191, %193 : vector<2x1xf32>
      %c0_74 = arith.constant 0 : index
      %c0_75 = arith.constant 0 : index
      %195 = vector.load %arg17[%c0_74, %c0_75] : memref<2x1xf32, #tpu.memory_space<vmem>>, vector<2x1xf32>
      tpu.vector_store %arg17[%c0_74, %c0_75], %194 {strides = array<i32>} : memref<2x1xf32, #tpu.memory_space<vmem>>, vector<2x1xf32>,
    } else {
    }
    return
  }
  func.func @transform_0(%arg0: i32) -> (i32, i32) {
    %c0_i32 = arith.constant 0 : i32
    %c0_i32_0 = arith.constant 0 : i32
    %c0_i32_1 = arith.constant 0 : i32
    return %c0_i32, %c0_i32_0 : i32, i32
  }
  func.func @transform_1(%arg0: i32) -> (i32, i32) {
    %c0_i32 = arith.constant 0 : i32
    %c0_i32_0 = arith.constant 0 : i32
    %c0_i32_1 = arith.constant 0 : i32
    return %c0_i32, %c0_i32_0 : i32, i32
  }
  func.func @transform_2(%arg0: i32) -> (i32, i32) {
    %c0_i32 = arith.constant 0 : i32
    %c0_i32_0 = arith.constant 0 : i32
    %c0_i32_1 = arith.constant 0 : i32
    return %c0_i32, %c0_i32_0 : i32, i32
  }
  func.func @transform_3(%arg0: i32) -> (i32, i32) {
    %c0_i32 = arith.constant 0 : i32
    %c0_i32_0 = arith.constant 0 : i32
    %c0_i32_1 = arith.constant 0 : i32
    return %c0_i32, %c0_i32_0 : i32, i32
  }
  func.func @transform_4(%arg0: i32) -> (i32, i32) {
    %c0_i32 = arith.constant 0 : i32
    %c0_i32_0 = arith.constant 0 : i32
    %c0_i32_1 = arith.constant 0 : i32
    return %c0_i32, %c0_i32_0 : i32, i32
  }
  func.func @transform_5(%arg0: i32) -> (i32, i32) {
    %c0_i32 = arith.constant 0 : i32
    %c0_i32_0 = arith.constant 0 : i32
    %c0_i32_1 = arith.constant 0 : i32
    return %c0_i32, %c0_i32_0 : i32, i32
  }
  func.func @transform_6(%arg0: i32) -> (i32, i32, i32, i32) {
    %c0_i32 = arith.constant 0 : i32
    %c0_i32_0 = arith.constant 0 : i32
    %c0_i32_1 = arith.constant 0 : i32
    %c0_i32_2 = arith.constant 0 : i32
    return %arg0, %c0_i32, %c0_i32_0, %c0_i32_1 : i32, i32, i32, i32
  }
  func.func @transform_7(%arg0: i32) -> (i32, i32, i32) {
    %c0_i32 = arith.constant 0 : i32
    %c0_i32_0 = arith.constant 0 : i32
    %c0_i32_1 = arith.constant 0 : i32
    return %arg0, %c0_i32, %c0_i32_0 : i32, i32, i32
  }
  func.func @transform_8(%arg0: i32) -> (i32, i32, i32) {
    %c0_i32 = arith.constant 0 : i32
    %c0_i32_0 = arith.constant 0 : i32
    %c0_i32_1 = arith.constant 0 : i32
    return %arg0, %c0_i32, %c0_i32_0 : i32, i32, i32
  }
  func.func @transform_9(%arg0: i32) -> (i32, i32, i32) {
    %c0_i32 = arith.constant 0 : i32
    %c0_i32_0 = arith.constant 0 : i32
    %c0_i32_1 = arith.constant 0 : i32
    return %arg0, %c0_i32, %c0_i32_0 : i32, i32, i32
  }
  func.func @transform_10(%arg0: i32) -> (i32, i32, i32) {
    %c0_i32 = arith.constant 0 : i32
    %c0_i32_0 = arith.constant 0 : i32
    %c0_i32_1 = arith.constant 0 : i32
    return %arg0, %c0_i32, %c0_i32_0 : i32, i32, i32
  }
  func.func @transform_11(%arg0: i32) -> (i32, i32, i32) {
    %c0_i32 = arith.constant 0 : i32
    %c0_i32_0 = arith.constant 0 : i32
    %c0_i32_1 = arith.constant 0 : i32
    return %arg0, %c0_i32, %c0_i32_0 : i32, i32, i32
  }
  func.func @transform_12(%arg0: i32) -> (i32, i32) {
    %c0_i32 = arith.constant 0 : i32
    %c0_i32_0 = arith.constant 0 : i32
    %c0_i32_1 = arith.constant 0 : i32
    return %c0_i32, %c0_i32_0 : i32, i32
  }
  func.func @transform_13(%arg0: i32) -> (i32, i32) {
    %c0_i32 = arith.constant 0 : i32
    %c0_i32_0 = arith.constant 0 : i32
    %c0_i32_1 = arith.constant 0 : i32
    return %c0_i32, %c0_i32_0 : i32, i32
  }
  func.func @transform_14(%arg0: i32) -> (i32, i32) {
    %c0_i32 = arith.constant 0 : i32
    %c0_i32_0 = arith.constant 0 : i32
    %c0_i32_1 = arith.constant 0 : i32
    return %c0_i32, %c0_i32_0 : i32, i32
  }
  func.func @transform_15(%arg0: i32) -> (i32, i32) {
    %c0_i32 = arith.constant 0 : i32
    %c0_i32_0 = arith.constant 0 : i32
    %c0_i32_1 = arith.constant 0 : i32
    return %c0_i32, %c0_i32_0 : i32, i32
  }
  func.func @transform_16(%arg0: i32) -> (i32, i32) {
    %c0_i32 = arith.constant 0 : i32
    %c0_i32_0 = arith.constant 0 : i32
    %c0_i32_1 = arith.constant 0 : i32
    return %c0_i32, %c0_i32_0 : i32, i32
  }
}

</mosaic_0001>

<llo_original>
// kernel: ef_transformer_forward.1
$region0: #{ef_transformer_forward.1}
  #allocation0 [shape = 'u32[]', space=smem, size = 0x4, offset = 0x4, fixed_abs, tag = 'smem constant byte address 0x4 - core index']
  #allocation1 [shape = 'u32[144,128]{1,0:T(1,128)}', space=vmem, size = 0x12000, scoped, tag = 'internal scratch']
  #allocation2 [shape = 'f32[16,160]{1,0:T(8,128)}', space=vmem, size = 0x4000, scoped, tag = 'scratch operand']
  #allocation3 [shape = 'f32[1,1]{1,0:T(1,128)S(1)}', space=vmem, size = 0x200, scoped, tag = 'scoped memory for ef_transformer_forward.1']
  %s0 = inlined_call_operand.vmem [shape: bf16[16,512], index: 0, kind: input, shape index: {}]
  %s1 = inlined_call_operand.vmem [shape: bf16[512,160], index: 1, kind: input, shape index: {}]
  %s2 = inlined_call_operand.vmem [shape: f32[16,160], index: 2, kind: input, shape index: {}]
  %s3 = inlined_call_operand.vmem [shape: f32[160,8], index: 3, kind: input, shape index: {}]
  %s4 = inlined_call_operand.vmem [shape: f32[8,160], index: 4, kind: input, shape index: {}]
  %s5 = inlined_call_operand.vmem [shape: f32[2,16], index: 5, kind: input, shape index: {}]
  %s6 = inlined_call_operand.vmem [shape: s8[4,3,160,160], index: 6, kind: input, shape index: {}]
  %s7 = inlined_call_operand.vmem [shape: s8[4,160,160], index: 7, kind: input, shape index: {}]
  %s8 = inlined_call_operand.vmem [shape: s8[4,160,2048], index: 8, kind: input, shape index: {}]
  %s9 = inlined_call_operand.vmem [shape: s8[4,2048,160], index: 9, kind: input, shape index: {}]
  %s10 = inlined_call_operand.vmem [shape: f32[4,14,160], index: 10, kind: input, shape index: {}]
  %s11 = inlined_call_operand.vmem [shape: f32[4,2,2048], index: 11, kind: input, shape index: {}]
  %s12 = inlined_call_operand.vmem [shape: f32[2,160], index: 12, kind: input, shape index: {}]
  %s13 = inlined_call_operand.vmem [shape: bf16[160,80], index: 13, kind: input, shape index: {}]
  %s14 = inlined_call_operand.vmem [shape: f32[2,80], index: 14, kind: input, shape index: {}]
  %s15 = inlined_call_operand.<no memory space> [shape: f32[1,1], index: 15, kind: input, shape index: {}]
  %s16 = inlined_call_operand.vmem [shape: f32[2,1], index: 16, kind: output, shape index: {}]
  %s17 = sld [smem:[#allocation0]]
  $region105: #{ef_transformer_forward.1} parent=0
    _
  %s19 = ssub.s32 1, %s17
  %s20 = scalar_select 0, %s19, %s17
  %v21 = vstv %s15
  %22 = vst [vmem:[#allocation3] sm:$0x1] %v21
  loop: start=0, step=1, limit=6
  $region2: #{ef_transformer_forward.1} parent=0 // loop_pre_header
    _
  $region3: #{ef_transformer_forward.1} parent=0 // loop_header
    %s24 = sphi 0, %s28
    %p25 = scmp.ge.s32.totalorder %s24, 6
    %s32 = sphi 0, %s32
    %s34 = sphi 0, %s32
    %s35 = sphi 0, %s34
    %s49 = sphi 0, %s35
    %s53 = sphi 0, %s53
    %s55 = sphi 0, %s53
    %s56 = sphi 0, %s55
    %s70 = sphi 0, %s56
    %s74 = sphi 0, %s74
    %s76 = sphi 0, %s74
    %s77 = sphi 0, %s76
    %s91 = sphi 0, %s77
    %s95 = sphi 0, %s95
    %s97 = sphi 0, %s95
    %s98 = sphi 0, %s97
    %s112 = sphi 0, %s98
    %s116 = sphi 0, %s116
    %s118 = sphi 0, %s116
    %s119 = sphi 0, %s118
    %s133 = sphi 0, %s119
    %s137 = sphi 0, %s137
    %s139 = sphi 0, %s137
    %s140 = sphi 0, %s139
    %s154 = sphi 0, %s140
    %s160 = sphi 0, %s162
    %s163 = sphi 0, %s160
    %s164 = sphi 0, %s163
    %s180 = sphi 0, %s164
    %s186 = sphi 0, %s188
    %s189 = sphi 0, %s186
    %s190 = sphi 0, %s189
    %s206 = sphi 0, %s190
    %s212 = sphi 0, %s214
    %s215 = sphi 0, %s212
    %s216 = sphi 0, %s215
    %s232 = sphi 0, %s216
    %s238 = sphi 0, %s240
    %s241 = sphi 0, %s238
    %s242 = sphi 0, %s241
    %s258 = sphi 0, %s242
    %s264 = sphi 0, %s266
    %s267 = sphi 0, %s264
    %s268 = sphi 0, %s267
    %s284 = sphi 0, %s268
    %s290 = sphi 0, %s292
    %s293 = sphi 0, %s290
    %s294 = sphi 0, %s293
    %s310 = sphi 0, %s294
    %s314 = sphi 0, %s314
    %s316 = sphi 0, %s314
    %s317 = sphi 0, %s316
    %s331 = sphi 0, %s317
    %s335 = sphi 0, %s335
    %s337 = sphi 0, %s335
    %s338 = sphi 0, %s337
    %s352 = sphi 0, %s338
    %s356 = sphi 0, %s356
    %s358 = sphi 0, %s356
    %s359 = sphi 0, %s358
    %s373 = sphi 0, %s359
    %s377 = sphi 0, %s377
    %s379 = sphi 0, %s377
    %s380 = sphi 0, %s379
    %s394 = sphi 0, %s380
    %s398 = sphi 0, %s398
    %s400 = sphi 0, %s398
    %s401 = sphi 0, %s400
    %s415 = sphi 0, %s401
  $region4: #{ef_transformer_forward.1} parent=0 // loop_header_branch
    %27 = sbr.rel (%p25) target = $region8
  $region5: #{ef_transformer_forward.1} parent=0 // loop_body
    %s29 = ssub.s32 %s24, 1
    %s30 = ssub.s32 %s24, 2
    %s31 = sadd.s32 %s24, 1
    %s33 = sadd.s32 %s32, 1
    %p36 = scmp.eq.s32.totalorder %s24, 3
    %p37 = scmp.ne.s32.totalorder %s32, %s34
    %p38 = scmp.eq.s32.totalorder %s24, 0
    %p39 = por %p37, %p38
    %p40 = scmp.ne.s32.totalorder %s32, %s34
    %p41 = scmp.eq.s32.totalorder %s29, 3
    %p42 = por %p40, %p41
    %p43 = scmp.ne.s32.totalorder %s34, %s35
    %p44 = scmp.eq.s32.totalorder %s29, 0
    %p45 = por %p43, %p44
    %p46 = scmp.ne.s32.totalorder %s34, %s35
    %p47 = scmp.eq.s32.totalorder %s30, 3
    %p48 = por %p46, %p47
    %p50 = scmp.ne.s32.totalorder %s35, %s49
    %p51 = scmp.eq.s32.totalorder %s30, 0
    %p52 = por %p50, %p51
    %s54 = sadd.s32 %s53, 1
    %p57 = scmp.eq.s32.totalorder %s24, 3
    %p58 = scmp.ne.s32.totalorder %s53, %s55
    %p59 = scmp.eq.s32.totalorder %s24, 0
    %p60 = por %p58, %p59
    %p61 = scmp.ne.s32.totalorder %s53, %s55
    %p62 = scmp.eq.s32.totalorder %s29, 3
    %p63 = por %p61, %p62
    %p64 = scmp.ne.s32.totalorder %s55, %s56
    %p65 = scmp.eq.s32.totalorder %s29, 0
    %p66 = por %p64, %p65
    %p67 = scmp.ne.s32.totalorder %s55, %s56
    %p68 = scmp.eq.s32.totalorder %s30, 3
    %p69 = por %p67, %p68
    %p71 = scmp.ne.s32.totalorder %s56, %s70
    %p72 = scmp.eq.s32.totalorder %s30, 0
    %p73 = por %p71, %p72
    %s75 = sadd.s32 %s74, 1
    %p78 = scmp.eq.s32.totalorder %s24, 3
    %p79 = scmp.ne.s32.totalorder %s74, %s76
    %p80 = scmp.eq.s32.totalorder %s24, 0
    %p81 = por %p79, %p80
    %p82 = scmp.ne.s32.totalorder %s74, %s76
    %p83 = scmp.eq.s32.totalorder %s29, 3
    %p84 = por %p82, %p83
    %p85 = scmp.ne.s32.totalorder %s76, %s77
    %p86 = scmp.eq.s32.totalorder %s29, 0
    %p87 = por %p85, %p86
    %p88 = scmp.ne.s32.totalorder %s76, %s77
    %p89 = scmp.eq.s32.totalorder %s30, 3
    %p90 = por %p88, %p89
    %p92 = scmp.ne.s32.totalorder %s77, %s91
    %p93 = scmp.eq.s32.totalorder %s30, 0
    %p94 = por %p92, %p93
    %s96 = sadd.s32 %s95, 1
    %p99 = scmp.eq.s32.totalorder %s24, 3
    %p100 = scmp.ne.s32.totalorder %s95, %s97
    %p101 = scmp.eq.s32.totalorder %s24, 0
    %p102 = por %p100, %p101
    %p103 = scmp.ne.s32.totalorder %s95, %s97
    %p104 = scmp.eq.s32.totalorder %s29, 3
    %p105 = por %p103, %p104
    %p106 = scmp.ne.s32.totalorder %s97, %s98
    %p107 = scmp.eq.s32.totalorder %s29, 0
    %p108 = por %p106, %p107
    %p109 = scmp.ne.s32.totalorder %s97, %s98
    %p110 = scmp.eq.s32.totalorder %s30, 3
    %p111 = por %p109, %p110
    %p113 = scmp.ne.s32.totalorder %s98, %s112
    %p114 = scmp.eq.s32.totalorder %s30, 0
    %p115 = por %p113, %p114
    %s117 = sadd.s32 %s116, 1
    %p120 = scmp.eq.s32.totalorder %s24, 3
    %p121 = scmp.ne.s32.totalorder %s116, %s118
    %p122 = scmp.eq.s32.totalorder %s24, 0
    %p123 = por %p121, %p122
    %p124 = scmp.ne.s32.totalorder %s116, %s118
    %p125 = scmp.eq.s32.totalorder %s29, 3
    %p126 = por %p124, %p125
    %p127 = scmp.ne.s32.totalorder %s118, %s119
    %p128 = scmp.eq.s32.totalorder %s29, 0
    %p129 = por %p127, %p128
    %p130 = scmp.ne.s32.totalorder %s118, %s119
    %p131 = scmp.eq.s32.totalorder %s30, 3
    %p132 = por %p130, %p131
    %p134 = scmp.ne.s32.totalorder %s119, %s133
    %p135 = scmp.eq.s32.totalorder %s30, 0
    %p136 = por %p134, %p135
    %s138 = sadd.s32 %s137, 1
    %p141 = scmp.eq.s32.totalorder %s24, 3
    %p142 = scmp.ne.s32.totalorder %s137, %s139
    %p143 = scmp.eq.s32.totalorder %s24, 0
    %p144 = por %p142, %p143
    %p145 = scmp.ne.s32.totalorder %s137, %s139
    %p146 = scmp.eq.s32.totalorder %s29, 3
    %p147 = por %p145, %p146
    %p148 = scmp.ne.s32.totalorder %s139, %s140
    %p149 = scmp.eq.s32.totalorder %s29, 0
    %p150 = por %p148, %p149
    %p151 = scmp.ne.s32.totalorder %s139, %s140
    %p152 = scmp.eq.s32.totalorder %s30, 3
    %p153 = por %p151, %p152
    %p155 = scmp.ne.s32.totalorder %s140, %s154
    %p156 = scmp.eq.s32.totalorder %s30, 0
    %p157 = por %p155, %p156
    %s158 = ssub.s32 %s24, %s31
    %p159 = scmp.eq.s32.totalorder %s158, 0
    %s161 = sadd.s32 %s160, 1
    %s162 = scalar_select %p159, %s160, %s161
    %p165 = pneg %p159
    %p166 = scmp.eq.s32.totalorder %s24, 3
    %p167 = por %p165, %p166
    %p168 = scmp.ne.s32.totalorder %s160, %s163
    %p169 = scmp.eq.s32.totalorder %s24, 0
    %p170 = por %p168, %p169
    %p171 = scmp.ne.s32.totalorder %s160, %s163
    %p172 = scmp.eq.s32.totalorder %s29, 3
    %p173 = por %p171, %p172
    %p174 = scmp.ne.s32.totalorder %s163, %s164
    %p175 = scmp.eq.s32.totalorder %s29, 0
    %p176 = por %p174, %p175
    %p177 = scmp.ne.s32.totalorder %s163, %s164
    %p178 = scmp.eq.s32.totalorder %s30, 3
    %p179 = por %p177, %p178
    %p181 = scmp.ne.s32.totalorder %s164, %s180
    %p182 = scmp.eq.s32.totalorder %s30, 0
    %p183 = por %p181, %p182
    %s184 = ssub.s32 %s24, %s31
    %p185 = scmp.eq.s32.totalorder %s184, 0
    %s187 = sadd.s32 %s186, 1
    %s188 = scalar_select %p185, %s186, %s187
    %p191 = pneg %p185
    %p192 = scmp.eq.s32.totalorder %s24, 3
    %p193 = por %p191, %p192
    %p194 = scmp.ne.s32.totalorder %s186, %s189
    %p195 = scmp.eq.s32.totalorder %s24, 0
    %p196 = por %p194, %p195
    %p197 = scmp.ne.s32.totalorder %s186, %s189
    %p198 = scmp.eq.s32.totalorder %s29, 3
    %p199 = por %p197, %p198
    %p200 = scmp.ne.s32.totalorder %s189, %s190
    %p201 = scmp.eq.s32.totalorder %s29, 0
    %p202 = por %p200, %p201
    %p203 = scmp.ne.s32.totalorder %s189, %s190
    %p204 = scmp.eq.s32.totalorder %s30, 3
    %p205 = por %p203, %p204
    %p207 = scmp.ne.s32.totalorder %s190, %s206
    %p208 = scmp.eq.s32.totalorder %s30, 0
    %p209 = por %p207, %p208
    %s210 = ssub.s32 %s24, %s31
    %p211 = scmp.eq.s32.totalorder %s210, 0
    %s213 = sadd.s32 %s212, 1
    %s214 = scalar_select %p211, %s212, %s213
    %p217 = pneg %p211
    %p218 = scmp.eq.s32.totalorder %s24, 3
    %p219 = por %p217, %p218
    %p220 = scmp.ne.s32.totalorder %s212, %s215
    %p221 = scmp.eq.s32.totalorder %s24, 0
    %p222 = por %p220, %p221
    %p223 = scmp.ne.s32.totalorder %s212, %s215
    %p224 = scmp.eq.s32.totalorder %s29, 3
    %p225 = por %p223, %p224
    %p226 = scmp.ne.s32.totalorder %s215, %s216
    %p227 = scmp.eq.s32.totalorder %s29, 0
    %p228 = por %p226, %p227
    %p229 = scmp.ne.s32.totalorder %s215, %s216
    %p230 = scmp.eq.s32.totalorder %s30, 3
    %p231 = por %p229, %p230
    %p233 = scmp.ne.s32.totalorder %s216, %s232
    %p234 = scmp.eq.s32.totalorder %s30, 0
    %p235 = por %p233, %p234
    %s236 = ssub.s32 %s24, %s31
    %p237 = scmp.eq.s32.totalorder %s236, 0
    %s239 = sadd.s32 %s238, 1
    %s240 = scalar_select %p237, %s238, %s239
    %p243 = pneg %p237
    %p244 = scmp.eq.s32.totalorder %s24, 3
    %p245 = por %p243, %p244
    %p246 = scmp.ne.s32.totalorder %s238, %s241
    %p247 = scmp.eq.s32.totalorder %s24, 0
    %p248 = por %p246, %p247
    %p249 = scmp.ne.s32.totalorder %s238, %s241
    %p250 = scmp.eq.s32.totalorder %s29, 3
    %p251 = por %p249, %p250
    %p252 = scmp.ne.s32.totalorder %s241, %s242
    %p253 = scmp.eq.s32.totalorder %s29, 0
    %p254 = por %p252, %p253
    %p255 = scmp.ne.s32.totalorder %s241, %s242
    %p256 = scmp.eq.s32.totalorder %s30, 3
    %p257 = por %p255, %p256
    %p259 = scmp.ne.s32.totalorder %s242, %s258
    %p260 = scmp.eq.s32.totalorder %s30, 0
    %p261 = por %p259, %p260
    %s262 = ssub.s32 %s24, %s31
    %p263 = scmp.eq.s32.totalorder %s262, 0
    %s265 = sadd.s32 %s264, 1
    %s266 = scalar_select %p263, %s264, %s265
    %p269 = pneg %p263
    %p270 = scmp.eq.s32.totalorder %s24, 3
    %p271 = por %p269, %p270
    %p272 = scmp.ne.s32.totalorder %s264, %s267
    %p273 = scmp.eq.s32.totalorder %s24, 0
    %p274 = por %p272, %p273
    %p275 = scmp.ne.s32.totalorder %s264, %s267
    %p276 = scmp.eq.s32.totalorder %s29, 3
    %p277 = por %p275, %p276
    %p278 = scmp.ne.s32.totalorder %s267, %s268
    %p279 = scmp.eq.s32.totalorder %s29, 0
    %p280 = por %p278, %p279
    %p281 = scmp.ne.s32.totalorder %s267, %s268
    %p282 = scmp.eq.s32.totalorder %s30, 3
    %p283 = por %p281, %p282
    %p285 = scmp.ne.s32.totalorder %s268, %s284
    %p286 = scmp.eq.s32.totalorder %s30, 0
    %p287 = por %p285, %p286
    %s288 = ssub.s32 %s24, %s31
    %p289 = scmp.eq.s32.totalorder %s288, 0
    %s291 = sadd.s32 %s290, 1
    %s292 = scalar_select %p289, %s290, %s291
    %p295 = pneg %p289
    %p296 = scmp.eq.s32.totalorder %s24, 3
    %p297 = por %p295, %p296
    %p298 = scmp.ne.s32.totalorder %s290, %s293
    %p299 = scmp.eq.s32.totalorder %s24, 0
    %p300 = por %p298, %p299
    %p301 = scmp.ne.s32.totalorder %s290, %s293
    %p302 = scmp.eq.s32.totalorder %s29, 3
    %p303 = por %p301, %p302
    %p304 = scmp.ne.s32.totalorder %s293, %s294
    %p305 = scmp.eq.s32.totalorder %s29, 0
    %p306 = por %p304, %p305
    %p307 = scmp.ne.s32.totalorder %s293, %s294
    %p308 = scmp.eq.s32.totalorder %s30, 3
    %p309 = por %p307, %p308
    %p311 = scmp.ne.s32.totalorder %s294, %s310
    %p312 = scmp.eq.s32.totalorder %s30, 0
    %p313 = por %p311, %p312
    %s315 = sadd.s32 %s314, 1
    %p318 = scmp.eq.s32.totalorder %s24, 3
    %p319 = scmp.ne.s32.totalorder %s314, %s316
    %p320 = scmp.eq.s32.totalorder %s24, 0
    %p321 = por %p319, %p320
    %p322 = scmp.ne.s32.totalorder %s314, %s316
    %p323 = scmp.eq.s32.totalorder %s29, 3
    %p324 = por %p322, %p323
    %p325 = scmp.ne.s32.totalorder %s316, %s317
    %p326 = scmp.eq.s32.totalorder %s29, 0
    %p327 = por %p325, %p326
    %p328 = scmp.ne.s32.totalorder %s316, %s317
    %p329 = scmp.eq.s32.totalorder %s30, 3
    %p330 = por %p328, %p329
    %p332 = scmp.ne.s32.totalorder %s317, %s331
    %p333 = scmp.eq.s32.totalorder %s30, 0
    %p334 = por %p332, %p333
    %s336 = sadd.s32 %s335, 1
    %p339 = scmp.eq.s32.totalorder %s24, 3
    %p340 = scmp.ne.s32.totalorder %s335, %s337
    %p341 = scmp.eq.s32.totalorder %s24, 0
    %p342 = por %p340, %p341
    %p343 = scmp.ne.s32.totalorder %s335, %s337
    %p344 = scmp.eq.s32.totalorder %s29, 3
    %p345 = por %p343, %p344
    %p346 = scmp.ne.s32.totalorder %s337, %s338
    %p347 = scmp.eq.s32.totalorder %s29, 0
    %p348 = por %p346, %p347
    %p349 = scmp.ne.s32.totalorder %s337, %s338
    %p350 = scmp.eq.s32.totalorder %s30, 3
    %p351 = por %p349, %p350
    %p353 = scmp.ne.s32.totalorder %s338, %s352
    %p354 = scmp.eq.s32.totalorder %s30, 0
    %p355 = por %p353, %p354
    %s357 = sadd.s32 %s356, 1
    %p360 = scmp.eq.s32.totalorder %s24, 3
    %p361 = scmp.ne.s32.totalorder %s356, %s358
    %p362 = scmp.eq.s32.totalorder %s24, 0
    %p363 = por %p361, %p362
    %p364 = scmp.ne.s32.totalorder %s356, %s358
    %p365 = scmp.eq.s32.totalorder %s29, 3
    %p366 = por %p364, %p365
    %p367 = scmp.ne.s32.totalorder %s358, %s359
    %p368 = scmp.eq.s32.totalorder %s29, 0
    %p369 = por %p367, %p368
    %p370 = scmp.ne.s32.totalorder %s358, %s359
    %p371 = scmp.eq.s32.totalorder %s30, 3
    %p372 = por %p370, %p371
    %p374 = scmp.ne.s32.totalorder %s359, %s373
    %p375 = scmp.eq.s32.totalorder %s30, 0
    %p376 = por %p374, %p375
    %s378 = sadd.s32 %s377, 1
    %p381 = scmp.eq.s32.totalorder %s24, 3
    %p382 = scmp.ne.s32.totalorder %s377, %s379
    %p383 = scmp.eq.s32.totalorder %s24, 0
    %p384 = por %p382, %p383
    %p385 = scmp.ne.s32.totalorder %s377, %s379
    %p386 = scmp.eq.s32.totalorder %s29, 3
    %p387 = por %p385, %p386
    %p388 = scmp.ne.s32.totalorder %s379, %s380
    %p389 = scmp.eq.s32.totalorder %s29, 0
    %p390 = por %p388, %p389
    %p391 = scmp.ne.s32.totalorder %s379, %s380
    %p392 = scmp.eq.s32.totalorder %s30, 3
    %p393 = por %p391, %p392
    %p395 = scmp.ne.s32.totalorder %s380, %s394
    %p396 = scmp.eq.s32.totalorder %s30, 0
    %p397 = por %p395, %p396
    %s399 = sadd.s32 %s398, 1
    %p402 = scmp.eq.s32.totalorder %s24, 3
    %p403 = scmp.ne.s32.totalorder %s398, %s400
    %p404 = scmp.eq.s32.totalorder %s24, 0
    %p405 = por %p403, %p404
    %p406 = scmp.ne.s32.totalorder %s398, %s400
    %p407 = scmp.eq.s32.totalorder %s29, 3
    %p408 = por %p406, %p407
    %p409 = scmp.ne.s32.totalorder %s400, %s401
    %p410 = scmp.eq.s32.totalorder %s29, 0
    %p411 = por %p409, %p410
    %p412 = scmp.ne.s32.totalorder %s400, %s401
    %p413 = scmp.eq.s32.totalorder %s30, 3
    %p414 = por %p412, %p413
    %p416 = scmp.ne.s32.totalorder %s401, %s415
    %p417 = scmp.eq.s32.totalorder %s30, 0
    %p418 = por %p416, %p417
    %p419 = scmp.le.s32.totalorder 1, %s24
    %p420 = scmp.lt.s32.totalorder %s24, 5
    %p421 = pnand %p419, %p420
    %p422 = pneg %p421
    // Predicated region
    $region9: #{ef_transformer_forward.1} parent=5 // pred_check
      _
    $region10: #{ef_transformer_forward.1} parent=5 // pred_check_branch
      %424 = sbr.rel (%p421) target = $region12
    $region11: #{ef_transformer_forward.1} parent=5 // pred_region
      %s425 = ssub.s32 %s24, 1
      // Predicated region
      $region13: #{ef_transformer_forward.1} parent=11 // pred_check
        %p426 = pneg %p45
      $region14: #{ef_transformer_forward.1} parent=11 // pred_check_branch
        %428 = sbr.rel (%p426) target = $region16
      $region15: #{ef_transformer_forward.1} parent=11 // pred_region
        _
      $region16: #{ef_transformer_forward.1} parent=11 // pred_fallthru
        _
      // Predicated region
      $region17: #{ef_transformer_forward.1} parent=11 // pred_check
        %p429 = pneg %p66
      $region18: #{ef_transformer_forward.1} parent=11 // pred_check_branch
        %431 = sbr.rel (%p429) target = $region20
      $region19: #{ef_transformer_forward.1} parent=11 // pred_region
        _
      $region20: #{ef_transformer_forward.1} parent=11 // pred_fallthru
        _
      // Predicated region
      $region21: #{ef_transformer_forward.1} parent=11 // pred_check
        %p432 = pneg %p87
      $region22: #{ef_transformer_forward.1} parent=11 // pred_check_branch
        %434 = sbr.rel (%p432) target = $region24
      $region23: #{ef_transformer_forward.1} parent=11 // pred_region
        _
      $region24: #{ef_transformer_forward.1} parent=11 // pred_fallthru
        _
      // Predicated region
      $region25: #{ef_transformer_forward.1} parent=11 // pred_check
        %p435 = pneg %p108
      $region26: #{ef_transformer_forward.1} parent=11 // pred_check_branch
        %437 = sbr.rel (%p435) target = $region28
      $region27: #{ef_transformer_forward.1} parent=11 // pred_region
        _
      $region28: #{ef_transformer_forward.1} parent=11 // pred_fallthru
        _
      // Predicated region
      $region29: #{ef_transformer_forward.1} parent=11 // pred_check
        %p438 = pneg %p129
      $region30: #{ef_transformer_forward.1} parent=11 // pred_check_branch
        %440 = sbr.rel (%p438) target = $region32
      $region31: #{ef_transformer_forward.1} parent=11 // pred_region
        _
      $region32: #{ef_transformer_forward.1} parent=11 // pred_fallthru
        _
      // Predicated region
      $region33: #{ef_transformer_forward.1} parent=11 // pred_check
        %p441 = pneg %p150
      $region34: #{ef_transformer_forward.1} parent=11 // pred_check_branch
        %443 = sbr.rel (%p441) target = $region36
      $region35: #{ef_transformer_forward.1} parent=11 // pred_region
        _
      $region36: #{ef_transformer_forward.1} parent=11 // pred_fallthru
        _
      // Predicated region
      $region37: #{ef_transformer_forward.1} parent=11 // pred_check
        %p444 = pneg %p327
      $region38: #{ef_transformer_forward.1} parent=11 // pred_check_branch
        %446 = sbr.rel (%p444) target = $region40
      $region39: #{ef_transformer_forward.1} parent=11 // pred_region
        _
      $region40: #{ef_transformer_forward.1} parent=11 // pred_fallthru
        _
      // Predicated region
      $region41: #{ef_transformer_forward.1} parent=11 // pred_check
        %p447 = pneg %p348
      $region42: #{ef_transformer_forward.1} parent=11 // pred_check_branch
        %449 = sbr.rel (%p447) target = $region44
      $region43: #{ef_transformer_forward.1} parent=11 // pred_region
        _
      $region44: #{ef_transformer_forward.1} parent=11 // pred_fallthru
        _
      // Predicated region
      $region45: #{ef_transformer_forward.1} parent=11 // pred_check
        %p450 = pneg %p369
      $region46: #{ef_transformer_forward.1} parent=11 // pred_check_branch
        %452 = sbr.rel (%p450) target = $region48
      $region47: #{ef_transformer_forward.1} parent=11 // pred_region
        _
      $region48: #{ef_transformer_forward.1} parent=11 // pred_fallthru
        _
      // Predicated region
      $region49: #{ef_transformer_forward.1} parent=11 // pred_check
        %p453 = pneg %p390
      $region50: #{ef_transformer_forward.1} parent=11 // pred_check_branch
        %455 = sbr.rel (%p453) target = $region52
      $region51: #{ef_transformer_forward.1} parent=11 // pred_region
        _
      $region52: #{ef_transformer_forward.1} parent=11 // pred_fallthru
        _
    $region12: #{ef_transformer_forward.1} parent=5 // pred_fallthru
      _
    %p456 = scmp.lt.s32.totalorder %s24, 4
    // Predicated region
    $region53: #{ef_transformer_forward.1} parent=5 // pred_check
      %p457 = pneg %p456
    $region54: #{ef_transformer_forward.1} parent=5 // pred_check_branch
      %459 = sbr.rel (%p457) target = $region56
    $region55: #{ef_transformer_forward.1} parent=5 // pred_region
      // Predicated region
      $region57: #{ef_transformer_forward.1} parent=55 // pred_check
        %p460 = pneg %p170
      $region58: #{ef_transformer_forward.1} parent=55 // pred_check_branch
        %462 = sbr.rel (%p460) target = $region60
      $region59: #{ef_transformer_forward.1} parent=55 // pred_region
        %p463 = scmp.lt.s32.totalorder %s24, 3
        %s464 = scalar_select %p463, %s24, 3
        %s465 = smul.addr %s464, 30
        %s466 = smul.addr %s465, 8
        %s467 = scalar_lea.vmem %s6, %s466
      $region60: #{ef_transformer_forward.1} parent=55 // pred_fallthru
        _
      // Predicated region
      $region61: #{ef_transformer_forward.1} parent=55 // pred_check
        %p468 = pneg %p196
      $region62: #{ef_transformer_forward.1} parent=55 // pred_check_branch
        %470 = sbr.rel (%p468) target = $region64
      $region63: #{ef_transformer_forward.1} parent=55 // pred_region
        %p471 = scmp.lt.s32.totalorder %s24, 3
        %s472 = scalar_select %p471, %s24, 3
        %s473 = smul.addr %s472, 10
        %s474 = smul.addr %s473, 8
        %s475 = scalar_lea.vmem %s7, %s474
      $region64: #{ef_transformer_forward.1} parent=55 // pred_fallthru
        _
      // Predicated region
      $region65: #{ef_transformer_forward.1} parent=55 // pred_check
        %p476 = pneg %p222
      $region66: #{ef_transformer_forward.1} parent=55 // pred_check_branch
        %478 = sbr.rel (%p476) target = $region68
      $region67: #{ef_transformer_forward.1} parent=55 // pred_region
        %p479 = scmp.lt.s32.totalorder %s24, 3
        %s480 = scalar_select %p479, %s24, 3
        %s481 = smul.addr %s480, 80
        %s482 = smul.addr %s481, 8
        %s483 = scalar_lea.vmem %s8, %s482
      $region68: #{ef_transformer_forward.1} parent=55 // pred_fallthru
        _
      // Predicated region
      $region69: #{ef_transformer_forward.1} parent=55 // pred_check
        %p484 = pneg %p248
      $region70: #{ef_transformer_forward.1} parent=55 // pred_check_branch
        %486 = sbr.rel (%p484) target = $region72
      $region71: #{ef_transformer_forward.1} parent=55 // pred_region
        %p487 = scmp.lt.s32.totalorder %s24, 3
        %s488 = scalar_select %p487, %s24, 3
        %s489 = smul.addr %s488, 128
        %s490 = smul.addr %s489, 8
        %s491 = scalar_lea.vmem %s9, %s490
      $region72: #{ef_transformer_forward.1} parent=55 // pred_fallthru
        _
      // Predicated region
      $region73: #{ef_transformer_forward.1} parent=55 // pred_check
        %p492 = pneg %p274
      $region74: #{ef_transformer_forward.1} parent=55 // pred_check_branch
        %494 = sbr.rel (%p492) target = $region76
      $region75: #{ef_transformer_forward.1} parent=55 // pred_region
        %p495 = scmp.lt.s32.totalorder %s24, 3
        %s496 = scalar_select %p495, %s24, 3
        %s497 = smul.addr %s496, 4
        %s498 = smul.addr %s497, 8
        %s499 = scalar_lea.vmem %s10, %s498
      $region76: #{ef_transformer_forward.1} parent=55 // pred_fallthru
        _
      // Predicated region
      $region77: #{ef_transformer_forward.1} parent=55 // pred_check
        %p500 = pneg %p300
      $region78: #{ef_transformer_forward.1} parent=55 // pred_check_branch
        %502 = sbr.rel (%p500) target = $region80
      $region79: #{ef_transformer_forward.1} parent=55 // pred_region
        %p503 = scmp.lt.s32.totalorder %s24, 3
        %s504 = scalar_select %p503, %s24, 3
        %s505 = smul.addr %s504, 16
        %s506 = smul.addr %s505, 2
        %s507 = scalar_lea.vmem %s11, %s506
      $region80: #{ef_transformer_forward.1} parent=55 // pred_fallthru
        _
    $region56: #{ef_transformer_forward.1} parent=5 // pred_fallthru
      _
    %p508 = scmp.le.s32.totalorder 1, %s24
    %p509 = scmp.lt.s32.totalorder %s24, 5
    %p510 = pnand %p508, %p509
    %p511 = pneg %p510
    // Predicated region
    $region81: #{ef_transformer_forward.1} parent=5 // pred_check
      _
    $region82: #{ef_transformer_forward.1} parent=5 // pred_check_branch
      %513 = sbr.rel (%p510) target = $region84
    $region83: #{ef_transformer_forward.1} parent=5 // pred_region
      %s514 = ssub.s32 %s24, 1
      %p515 = pneg %p45
      %p516 = pneg %p42
      %p517 = pneg %p66
      %p518 = pneg %p63
      %p519 = pneg %p87
      %p520 = pneg %p84
      %p521 = pneg %p108
      %p522 = pneg %p105
      %p523 = pneg %p129
      %p524 = pneg %p126
      %p525 = pneg %p150
      %p526 = pneg %p147
      %p527 = scmp.lt.s32.totalorder %s29, 3
      %s528 = scalar_select %p527, %s29, 3
      %s529 = smul.addr %s528, 30
      %s530 = smul.addr %s529, 8
      %s531 = scalar_lea.vmem %s6, %s530
      %p532 = pneg %p176
      %p533 = pneg %p173
      %p534 = scmp.lt.s32.totalorder %s29, 3
      %s535 = scalar_select %p534, %s29, 3
      %s536 = smul.addr %s535, 10
      %s537 = smul.addr %s536, 8
      %s538 = scalar_lea.vmem %s7, %s537
      %p539 = pneg %p202
      %p540 = pneg %p199
      %p541 = scmp.lt.s32.totalorder %s29, 3
      %s542 = scalar_select %p541, %s29, 3
      %s543 = smul.addr %s542, 80
      %s544 = smul.addr %s543, 8
      %s545 = scalar_lea.vmem %s8, %s544
      %p546 = pneg %p228
      %p547 = pneg %p225
      %p548 = scmp.lt.s32.totalorder %s29, 3
      %s549 = scalar_select %p548, %s29, 3
      %s550 = smul.addr %s549, 128
      %s551 = smul.addr %s550, 8
      %s552 = scalar_lea.vmem %s9, %s551
      %p553 = pneg %p254
      %p554 = pneg %p251
      %p555 = scmp.lt.s32.totalorder %s29, 3
      %s556 = scalar_select %p555, %s29, 3
      %s557 = smul.addr %s556, 4
      %s558 = smul.addr %s557, 8
      %s559 = scalar_lea.vmem %s10, %s558
      %p560 = pneg %p280
      %p561 = pneg %p277
      %p562 = scmp.lt.s32.totalorder %s29, 3
      %s563 = scalar_select %p562, %s29, 3
      %s564 = smul.addr %s563, 16
      %s565 = smul.addr %s564, 2
      %s566 = scalar_lea.vmem %s11, %s565
      %p567 = pneg %p306
      %p568 = pneg %p303
      %p569 = pneg %p327
      %p570 = pneg %p324
      %p571 = pneg %p348
      %p572 = pneg %p345
      %p573 = pneg %p369
      %p574 = pneg %p366
      %p575 = pneg %p390
      %p576 = pneg %p387
      %p577 = pneg %p411
      %p578 = pneg %p408
      %p579 = scmp.lt.s32.totalorder %s29, 3
      %s580 = scalar_select %p579, %s29, 3
      %s581 = smul.addr %s580, 30
      %s582 = smul.addr %s581, 8
      %s583 = scalar_lea.vmem %s6, %s582
      %p584 = scmp.lt.s32.totalorder %s29, 3
      %s585 = scalar_select %p584, %s29, 3
      %s586 = smul.addr %s585, 10
      %s587 = smul.addr %s586, 8
      %s588 = scalar_lea.vmem %s7, %s587
      %p589 = scmp.lt.s32.totalorder %s29, 3
      %s590 = scalar_select %p589, %s29, 3
      %s591 = smul.addr %s590, 80
      %s592 = smul.addr %s591, 8
      %s593 = scalar_lea.vmem %s8, %s592
      %p594 = scmp.lt.s32.totalorder %s29, 3
      %s595 = scalar_select %p594, %s29, 3
      %s596 = smul.addr %s595, 128
      %s597 = smul.addr %s596, 8
      %s598 = scalar_lea.vmem %s9, %s597
      %p599 = scmp.lt.s32.totalorder %s29, 3
      %s600 = scalar_select %p599, %s29, 3
      %s601 = smul.addr %s600, 4
      %s602 = smul.addr %s601, 8
      %s603 = scalar_lea.vmem %s10, %s602
      %p604 = scmp.lt.s32.totalorder %s29, 3
      %s605 = scalar_select %p604, %s29, 3
      %s606 = smul.addr %s605, 16
      %s607 = smul.addr %s606, 2
      %s608 = scalar_lea.vmem %s11, %s607
      %p610 = scmp.eq.s32.totalorder %s29, 0
      // Predicated region
      $region85: #{ef_transformer_forward.1} parent=83 // pred_check
        %p611 = pneg %p610
      $region86: #{ef_transformer_forward.1} parent=83 // pred_check_branch
        %613 = sbr.rel (%p611) target = $region88
      $region87: #{ef_transformer_forward.1} parent=83 // pred_region
        %v614 = vld [vmem:[%s0] sm:$0xff]
        %v615 = vld [vmem:[%s0 + $0x8] sm:$0xff]
        %v616 = vld [vmem:[%s0 + $0x10] sm:$0xff]
        %v617 = vld [vmem:[%s0 + $0x18] sm:$0xff]
        %v618 = vld [vmem:[%s1] sm:$0xff]
        %v619 = vld [vmem:[%s1 + $0x8] sm:$0xff]
        %v620 = vld [vmem:[%s1 + $0x10] sm:$0xff]
        %v621 = vld [vmem:[%s1 + $0x18] sm:$0xff]
        %v622 = vld [vmem:[%s1 + $0x20] sm:$0xff]
        %v623 = vld [vmem:[%s1 + $0x28] sm:$0xff]
        %v624 = vld [vmem:[%s1 + $0x30] sm:$0xff]
        %v625 = vld [vmem:[%s1 + $0x38] sm:$0xff]
        %v626 = vld [vmem:[%s1 + $0x40] sm:$0xff]
        %v627 = vld [vmem:[%s1 + $0x48] sm:$0xff]
        %v628 = vld [vmem:[%s1 + $0x50] sm:$0xff]
        %v629 = vld [vmem:[%s1 + $0x58] sm:$0xff]
        %v630 = vld [vmem:[%s1 + $0x60] sm:$0xff]
        %v631 = vld [vmem:[%s1 + $0x68] sm:$0xff]
        %v632 = vld [vmem:[%s1 + $0x70] sm:$0xff]
        %v633 = vld [vmem:[%s1 + $0x78] sm:$0xff]
        %v634 = vld [vmem:[%s1 + $0x80] sm:$0xff]
        %v635 = vld [vmem:[%s1 + $0x88] sm:$0xff]
        %v636 = vld [vmem:[%s1 + $0x90] sm:$0xff]
        %v637 = vld [vmem:[%s1 + $0x98] sm:$0xff]
        %v638 = vld [vmem:[%s1 + $0xa0] sm:$0xff]
        %v639 = vld [vmem:[%s1 + $0xa8] sm:$0xff]
        %v640 = vld [vmem:[%s1 + $0xb0] sm:$0xff]
        %v641 = vld [vmem:[%s1 + $0xb8] sm:$0xff]
        %v642 = vld [vmem:[%s1 + $0xc0] sm:$0xff]
        %v643 = vld [vmem:[%s1 + $0xc8] sm:$0xff]
        %v644 = vld [vmem:[%s1 + $0xd0] sm:$0xff]
        %v645 = vld [vmem:[%s1 + $0xd8] sm:$0xff]
        %v646 = vld [vmem:[%s1 + $0xe0] sm:$0xff]
        %v647 = vld [vmem:[%s1 + $0xe8] sm:$0xff]
        %v648 = vld [vmem:[%s1 + $0xf0] sm:$0xff]
        %v649 = vld [vmem:[%s1 + $0xf8] sm:$0xff]
        %v650 = vld [vmem:[%s1 + $0x100] sm:$0xff]
        %v651 = vld [vmem:[%s1 + $0x108] sm:$0xff]
        %v652 = vld [vmem:[%s1 + $0x110] sm:$0xff]
        %v653 = vld [vmem:[%s1 + $0x118] sm:$0xff]
        %v654 = vld [vmem:[%s1 + $0x120] sm:$0xff]
        %v655 = vld [vmem:[%s1 + $0x128] sm:$0xff]
        %v656 = vld [vmem:[%s1 + $0x130] sm:$0xff]
        %v657 = vld [vmem:[%s1 + $0x138] sm:$0xff]
        %v658 = vld [vmem:[%s1 + $0x140] sm:$0xff]
        %v659 = vld [vmem:[%s1 + $0x148] sm:$0xff]
        %v660 = vld [vmem:[%s1 + $0x150] sm:$0xff]
        %v661 = vld [vmem:[%s1 + $0x158] sm:$0xff]
        %v662 = vld [vmem:[%s1 + $0x160] sm:$0xff]
        %v663 = vld [vmem:[%s1 + $0x168] sm:$0xff]
        %v664 = vld [vmem:[%s1 + $0x170] sm:$0xff]
        %v665 = vld [vmem:[%s1 + $0x178] sm:$0xff]
        %v666 = vld [vmem:[%s1 + $0x180] sm:$0xff]
        %v667 = vld [vmem:[%s1 + $0x188] sm:$0xff]
        %v668 = vld [vmem:[%s1 + $0x190] sm:$0xff]
        %v669 = vld [vmem:[%s1 + $0x198] sm:$0xff]
        %v670 = vld [vmem:[%s1 + $0x1a0] sm:$0xff]
        %v671 = vld [vmem:[%s1 + $0x1a8] sm:$0xff]
        %v672 = vld [vmem:[%s1 + $0x1b0] sm:$0xff]
        %v673 = vld [vmem:[%s1 + $0x1b8] sm:$0xff]
        %v674 = vld [vmem:[%s1 + $0x1c0] sm:$0xff]
        %v675 = vld [vmem:[%s1 + $0x1c8] sm:$0xff]
        %v676 = vld [vmem:[%s1 + $0x1d0] sm:$0xff]
        %v677 = vld [vmem:[%s1 + $0x1d8] sm:$0xff]
        %v678 = vld [vmem:[%s1 + $0x1e0] sm:$0xff]
        %v679 = vld [vmem:[%s1 + $0x1e8] sm:$0xff]
        %v680 = vld [vmem:[%s1 + $0x1f0] sm:$0xff]
        %v681 = vld [vmem:[%s1 + $0x1f8] sm:$0xff]
        %v682 = vld [vmem:[%s2] sm:$0xff]
        %v683 = vld [vmem:[%s2 + $0x8] sm:$0xff]
        %v684 = vld [vmem:[%s2 + $0x10] sm:$0xff]
        %v685 = vld [vmem:[%s2 + $0x18] sm:$0xff]
        %v690 = vunpack.c.l.b16 %v614
        %v691 = vunpack.c.h.b16 %v614
        %v692 = vunpack.c.l.b16 %v615
        %v693 = vunpack.c.h.b16 %v615
        %v694 = vunpack.c.l.b16 %v616
        %v695 = vunpack.c.h.b16 %v616
        %v696 = vunpack.c.l.b16 %v617
        %v697 = vunpack.c.h.b16 %v617
        %v698 = vpack.c.b16 %v694, %v690
        %v699 = vpack.c.b16 %v695, %v691
        %v700 = vpack.c.b16 %v696, %v692
        %v701 = vpack.c.b16 %v697, %v693
        %v770 = vunpack.c.l.b16 %v618
        %v771 = vunpack.c.h.b16 %v618
        %v772 = vunpack.c.l.b16 %v619
        %v773 = vunpack.c.h.b16 %v619
        %v774 = vunpack.c.l.b16 %v620
        %v775 = vunpack.c.h.b16 %v620
        %v776 = vunpack.c.l.b16 %v621
        %v777 = vunpack.c.h.b16 %v621
        %v778 = vunpack.c.l.b16 %v622
        %v779 = vunpack.c.h.b16 %v622
        %v780 = vunpack.c.l.b16 %v623
        %v781 = vunpack.c.h.b16 %v623
        %v782 = vunpack.c.l.b16 %v624
        %v783 = vunpack.c.h.b16 %v624
        %v784 = vunpack.c.l.b16 %v625
        %v785 = vunpack.c.h.b16 %v625
        %v786 = vunpack.c.l.b16 %v626
        %v787 = vunpack.c.h.b16 %v626
        %v788 = vunpack.c.l.b16 %v627
        %v789 = vunpack.c.h.b16 %v627
        %v790 = vunpack.c.l.b16 %v628
        %v791 = vunpack.c.h.b16 %v628
        %v792 = vunpack.c.l.b16 %v629
        %v793 = vunpack.c.h.b16 %v629
        %v794 = vunpack.c.l.b16 %v630
        %v795 = vunpack.c.h.b16 %v630
        %v796 = vunpack.c.l.b16 %v631
        %v797 = vunpack.c.h.b16 %v631
        %v798 = vunpack.c.l.b16 %v632
        %v799 = vunpack.c.h.b16 %v632
        %v800 = vunpack.c.l.b16 %v633
        %v801 = vunpack.c.h.b16 %v633
        %v802 = vunpack.c.l.b16 %v634
        %v803 = vunpack.c.h.b16 %v634
        %v804 = vunpack.c.l.b16 %v635
        %v805 = vunpack.c.h.b16 %v635
        %v806 = vunpack.c.l.b16 %v636
        %v807 = vunpack.c.h.b16 %v636
        %v808 = vunpack.c.l.b16 %v637
        %v809 = vunpack.c.h.b16 %v637
        %v810 = vunpack.c.l.b16 %v638
        %v811 = vunpack.c.h.b16 %v638
        %v812 = vunpack.c.l.b16 %v639
        %v813 = vunpack.c.h.b16 %v639
        %v814 = vunpack.c.l.b16 %v640
        %v815 = vunpack.c.h.b16 %v640
        %v816 = vunpack.c.l.b16 %v641
        %v817 = vunpack.c.h.b16 %v641
        %v818 = vunpack.c.l.b16 %v642
        %v819 = vunpack.c.h.b16 %v642
        %v820 = vunpack.c.l.b16 %v643
        %v821 = vunpack.c.h.b16 %v643
        %v822 = vunpack.c.l.b16 %v644
        %v823 = vunpack.c.h.b16 %v644
        %v824 = vunpack.c.l.b16 %v645
        %v825 = vunpack.c.h.b16 %v645
        %v826 = vunpack.c.l.b16 %v646
        %v827 = vunpack.c.h.b16 %v646
        %v828 = vunpack.c.l.b16 %v647
        %v829 = vunpack.c.h.b16 %v647
        %v830 = vunpack.c.l.b16 %v648
        %v831 = vunpack.c.h.b16 %v648
        %v832 = vunpack.c.l.b16 %v649
        %v833 = vunpack.c.h.b16 %v649
        %v834 = vunpack.c.l.b16 %v650
        %v835 = vunpack.c.h.b16 %v650
        %v836 = vunpack.c.l.b16 %v651
        %v837 = vunpack.c.h.b16 %v651
        %v838 = vunpack.c.l.b16 %v652
        %v839 = vunpack.c.h.b16 %v652
        %v840 = vunpack.c.l.b16 %v653
        %v841 = vunpack.c.h.b16 %v653
        %v842 = vunpack.c.l.b16 %v654
        %v843 = vunpack.c.h.b16 %v654
        %v844 = vunpack.c.l.b16 %v655
        %v845 = vunpack.c.h.b16 %v655
        %v846 = vunpack.c.l.b16 %v656
        %v847 = vunpack.c.h.b16 %v656
        %v848 = vunpack.c.l.b16 %v657
        %v849 = vunpack.c.h.b16 %v657
        %v850 = vunpack.c.l.b16 %v658
        %v851 = vunpack.c.h.b16 %v658
        %v852 = vunpack.c.l.b16 %v659
        %v853 = vunpack.c.h.b16 %v659
        %v854 = vunpack.c.l.b16 %v660
        %v855 = vunpack.c.h.b16 %v660
        %v856 = vunpack.c.l.b16 %v661
        %v857 = vunpack.c.h.b16 %v661
        %v858 = vunpack.c.l.b16 %v662
        %v859 = vunpack.c.h.b16 %v662
        %v860 = vunpack.c.l.b16 %v663
        %v861 = vunpack.c.h.b16 %v663
        %v862 = vunpack.c.l.b16 %v664
        %v863 = vunpack.c.h.b16 %v664
        %v864 = vunpack.c.l.b16 %v665
        %v865 = vunpack.c.h.b16 %v665
        %v866 = vunpack.c.l.b16 %v666
        %v867 = vunpack.c.h.b16 %v666
        %v868 = vunpack.c.l.b16 %v667
        %v869 = vunpack.c.h.b16 %v667
        %v870 = vunpack.c.l.b16 %v668
        %v871 = vunpack.c.h.b16 %v668
        %v872 = vunpack.c.l.b16 %v669
        %v873 = vunpack.c.h.b16 %v669
        %v874 = vunpack.c.l.b16 %v670
        %v875 = vunpack.c.h.b16 %v670
        %v876 = vunpack.c.l.b16 %v671
        %v877 = vunpack.c.h.b16 %v671
        %v878 = vunpack.c.l.b16 %v672
        %v879 = vunpack.c.h.b16 %v672
        %v880 = vunpack.c.l.b16 %v673
        %v881 = vunpack.c.h.b16 %v673
        %v882 = vunpack.c.l.b16 %v674
        %v883 = vunpack.c.h.b16 %v674
        %v884 = vunpack.c.l.b16 %v675
        %v885 = vunpack.c.h.b16 %v675
        %v886 = vunpack.c.l.b16 %v676
        %v887 = vunpack.c.h.b16 %v676
        %v888 = vunpack.c.l.b16 %v677
        %v889 = vunpack.c.h.b16 %v677
        %v890 = vunpack.c.l.b16 %v678
        %v891 = vunpack.c.h.b16 %v678
        %v892 = vunpack.c.l.b16 %v679
        %v893 = vunpack.c.h.b16 %v679
        %v894 = vunpack.c.l.b16 %v680
        %v895 = vunpack.c.h.b16 %v680
        %v896 = vunpack.c.l.b16 %v681
        %v897 = vunpack.c.h.b16 %v681
        %v898 = vpack.c.b16 %v772, %v770
        %v899 = vpack.c.b16 %v773, %v771
        %v900 = vpack.c.b16 %v776, %v774
        %v901 = vpack.c.b16 %v777, %v775
        %v902 = vpack.c.b16 %v780, %v778
        %v903 = vpack.c.b16 %v781, %v779
        %v904 = vpack.c.b16 %v784, %v782
        %v905 = vpack.c.b16 %v785, %v783
        %v906 = vpack.c.b16 %v788, %v786
        %v907 = vpack.c.b16 %v789, %v787
        %v908 = vpack.c.b16 %v792, %v790
        %v909 = vpack.c.b16 %v793, %v791
        %v910 = vpack.c.b16 %v796, %v794
        %v911 = vpack.c.b16 %v797, %v795
        %v912 = vpack.c.b16 %v800, %v798
        %v913 = vpack.c.b16 %v801, %v799
        %v914 = vpack.c.b16 %v804, %v802
        %v915 = vpack.c.b16 %v805, %v803
        %v916 = vpack.c.b16 %v808, %v806
        %v917 = vpack.c.b16 %v809, %v807
        %v918 = vpack.c.b16 %v812, %v810
        %v919 = vpack.c.b16 %v813, %v811
        %v920 = vpack.c.b16 %v816, %v814
        %v921 = vpack.c.b16 %v817, %v815
        %v922 = vpack.c.b16 %v820, %v818
        %v923 = vpack.c.b16 %v821, %v819
        %v924 = vpack.c.b16 %v824, %v822
        %v925 = vpack.c.b16 %v825, %v823
        %v926 = vpack.c.b16 %v828, %v826
        %v927 = vpack.c.b16 %v829, %v827
        %v928 = vpack.c.b16 %v832, %v830
        %v929 = vpack.c.b16 %v833, %v831
        %v930 = vpack.c.b16 %v836, %v834
        %v931 = vpack.c.b16 %v837, %v835
        %v932 = vpack.c.b16 %v840, %v838
        %v933 = vpack.c.b16 %v841, %v839
        %v934 = vpack.c.b16 %v844, %v842
        %v935 = vpack.c.b16 %v845, %v843
        %v936 = vpack.c.b16 %v848, %v846
        %v937 = vpack.c.b16 %v849, %v847
        %v938 = vpack.c.b16 %v852, %v850
        %v939 = vpack.c.b16 %v853, %v851
        %v940 = vpack.c.b16 %v856, %v854
        %v941 = vpack.c.b16 %v857, %v855
        %v942 = vpack.c.b16 %v860, %v858
        %v943 = vpack.c.b16 %v861, %v859
        %v944 = vpack.c.b16 %v864, %v862
        %v945 = vpack.c.b16 %v865, %v863
        %v946 = vpack.c.b16 %v868, %v866
        %v947 = vpack.c.b16 %v869, %v867
        %v948 = vpack.c.b16 %v872, %v870
        %v949 = vpack.c.b16 %v873, %v871
        %v950 = vpack.c.b16 %v876, %v874
        %v951 = vpack.c.b16 %v877, %v875
        %v952 = vpack.c.b16 %v880, %v878
        %v953 = vpack.c.b16 %v881, %v879
        %v954 = vpack.c.b16 %v884, %v882
        %v955 = vpack.c.b16 %v885, %v883
        %v956 = vpack.c.b16 %v888, %v886
        %v957 = vpack.c.b16 %v889, %v887
        %v958 = vpack.c.b16 %v892, %v890
        %v959 = vpack.c.b16 %v893, %v891
        %v960 = vpack.c.b16 %v896, %v894
        %v961 = vpack.c.b16 %v897, %v895
        %1026 = vmatprep.subr.bf16.mxu0 %v899
        %1027 = vmatpush1.bf16.msra.mxu0 %v898
        %1028 = vmatprep.subr.bf16.mxu0 %v901
        %1029 = vmatpush1.bf16.msra.mxu0 %v900
        %1030 = vmatprep.subr.bf16.mxu0 %v903
        %1031 = vmatpush1.bf16.msra.mxu0 %v902
        %1032 = vmatprep.subr.bf16.mxu0 %v905
        %1033 = vmatpush1.bf16.msra.mxu0 %v904
        %1034 = vmatprep.subr.bf16.mxu0 %v907
        %1035 = vmatpush1.bf16.msra.mxu0 %v906
        %1036 = vmatprep.subr.bf16.mxu0 %v909
        %1037 = vmatpush1.bf16.msra.mxu0 %v908
        %1038 = vmatprep.subr.bf16.mxu0 %v911
        %1039 = vmatpush1.bf16.msra.mxu0 %v910
        %1040 = vmatprep.subr.bf16.mxu0 %v913
        %1041 = vmatpush1.bf16.msra.mxu0 %v912
        %1042 = vmatprep.subr.bf16.mxu0 %v915
        %1043 = vmatpush1.bf16.msra.mxu0 %v914
        %1044 = vmatprep.subr.bf16.mxu0 %v917
        %1045 = vmatpush1.bf16.msra.mxu0 %v916
        %1046 = vmatprep.subr.bf16.mxu0 %v919
        %1047 = vmatpush1.bf16.msra.mxu0 %v918
        %1048 = vmatprep.subr.bf16.mxu0 %v921
        %1049 = vmatpush1.bf16.msra.mxu0 %v920
        %1050 = vmatprep.subr.bf16.mxu0 %v923
        %1051 = vmatpush1.bf16.msra.mxu0 %v922
        %1052 = vmatprep.subr.bf16.mxu0 %v925
        %1053 = vmatpush1.bf16.msra.mxu0 %v924
        %1054 = vmatprep.subr.bf16.mxu0 %v927
        %1055 = vmatpush1.bf16.msra.mxu0 %v926
        %1056 = vmatprep.subr.bf16.mxu0 %v929
        %1057 = vmatpush1.bf16.msra.mxu0 %v928
        %1058 = vmatprep.mubr.bf16.mxu0 %v699
        %1059 = vmatmul.mubr.bf16.gmra.mrb[0].mxu0 %v698
        %v1060 = vpop.f32.mrb[0].mxu0
        %v1061 = vadd.f32 %v682, %v1060
        %v1062 = vpop.f32.mrb[0].mxu0
        %v1063 = vadd.f32 %v683, %v1062
        %v1064 = vpop.f32.mrb[0].mxu0
        %v1065 = vadd.f32 %v684, %v1064
        %v1066 = vpop.f32.mrb[0].mxu0
        %v1067 = vadd.f32 %v685, %v1066
        %1068 = vdwg.mxu0
        %1069 = vmatprep.subr.bf16.mxu0 %v931
        %1070 = vmatpush1.bf16.msra.mxu0 %v930
        %1071 = vmatprep.subr.bf16.mxu0 %v933
        %1072 = vmatpush1.bf16.msra.mxu0 %v932
        %1073 = vmatprep.subr.bf16.mxu0 %v935
        %1074 = vmatpush1.bf16.msra.mxu0 %v934
        %1075 = vmatprep.subr.bf16.mxu0 %v937
        %1076 = vmatpush1.bf16.msra.mxu0 %v936
        %1077 = vmatprep.subr.bf16.mxu0 %v939
        %1078 = vmatpush1.bf16.msra.mxu0 %v938
        %1079 = vmatprep.subr.bf16.mxu0 %v941
        %1080 = vmatpush1.bf16.msra.mxu0 %v940
        %1081 = vmatprep.subr.bf16.mxu0 %v943
        %1082 = vmatpush1.bf16.msra.mxu0 %v942
        %1083 = vmatprep.subr.bf16.mxu0 %v945
        %1084 = vmatpush1.bf16.msra.mxu0 %v944
        %1085 = vmatprep.subr.bf16.mxu0 %v947
        %1086 = vmatpush1.bf16.msra.mxu0 %v946
        %1087 = vmatprep.subr.bf16.mxu0 %v949
        %1088 = vmatpush1.bf16.msra.mxu0 %v948
        %1089 = vmatprep.subr.bf16.mxu0 %v951
        %1090 = vmatpush1.bf16.msra.mxu0 %v950
        %1091 = vmatprep.subr.bf16.mxu0 %v953
        %1092 = vmatpush1.bf16.msra.mxu0 %v952
        %1093 = vmatprep.subr.bf16.mxu0 %v955
        %1094 = vmatpush1.bf16.msra.mxu0 %v954
        %1095 = vmatprep.subr.bf16.mxu0 %v957
        %1096 = vmatpush1.bf16.msra.mxu0 %v956
        %1097 = vmatprep.subr.bf16.mxu0 %v959
        %1098 = vmatpush1.bf16.msra.mxu0 %v958
        %1099 = vmatprep.subr.bf16.mxu0 %v961
        %1100 = vmatpush1.bf16.msra.mxu0 %v960
        %1101 = vmatprep.mubr.bf16.mxu0 %v701
        %1102 = vmatmul.mubr.bf16.gmra.mrb[0].mxu0 %v700
        %v1103 = vpop.f32.mrb[0].mxu0
        %v1104 = vadd.f32 %v1061, %v1103
        %v1105 = vpop.f32.mrb[0].mxu0
        %v1106 = vadd.f32 %v1063, %v1105
        %v1107 = vpop.f32.mrb[0].mxu0
        %v1108 = vadd.f32 %v1065, %v1107
        %v1109 = vpop.f32.mrb[0].mxu0
        %v1110 = vadd.f32 %v1067, %v1109
        %1111 = vdwg.mxu0
        %1112 = vst [vmem:[#allocation2] sm:$0xff] %v1104
        %vm1113 = vcmask 261120
        %1114 = vst.msk [vmem:[#allocation2 + $0x8] sm:$0xff] %vm1113, %v1106
        %1115 = vst [vmem:[#allocation2 + $0x10] sm:$0xff] %v1108
        %1116 = vst.msk [vmem:[#allocation2 + $0x18] sm:$0xff] %vm1113, %v1110
      $region88: #{ef_transformer_forward.1} parent=83 // pred_fallthru
        _
      %v1117 = vld [vmem:[#allocation2] sm:$0xff]
      %v1118 = vld [vmem:[#allocation2 + $0x8] sm:$0xff]
      %v1119 = vld [vmem:[#allocation2 + $0x10] sm:$0xff]
      %v1120 = vld [vmem:[#allocation2 + $0x18] sm:$0xff]
      %v1121 = vpack.c.bf16 %v1119, %v1117
      %v1122 = vpack.c.bf16 %v1120, %v1118
      %v1123 = vld [vmem:[%s603] sm:$0xff]
      %v1124 = vld [vmem:[%s603 + $0x8] sm:$0xff]
      %v1125 = vld [vmem:[%s603 + $0x10] sm:$0x3f]
      %v1126 = vld [vmem:[%s603 + $0x18] sm:$0x3f]
      %v1127 = vld [vmem:[%s608] sm:$0xff]
      %v1128 = vld [vmem:[%s608 + $0x8] sm:$0xff]
      %v1129 = vld [vmem:[%s608 + $0x10] sm:$0xff]
      %v1130 = vld [vmem:[%s608 + $0x18] sm:$0xff]
      %v1131 = vld [vmem:[%s583] sm:$0xff]
      %v1132 = vld [vmem:[%s583 + $0x8] sm:$0xff]
      %v1133 = vld [vmem:[%s583 + $0x10] sm:$0xff]
      %v1134 = vld [vmem:[%s583 + $0x18] sm:$0xff]
      %v1135 = vld [vmem:[%s583 + $0x20] sm:$0xff]
      %v1136 = vld [vmem:[%s583 + $0x28] sm:$0xff]
      %v1137 = vld [vmem:[%s583 + $0x30] sm:$0xff]
      %v1138 = vld [vmem:[%s583 + $0x38] sm:$0xff]
      %v1139 = vld [vmem:[%s583 + $0x40] sm:$0xff]
      %v1140 = vld [vmem:[%s583 + $0x48] sm:$0xff]
      %v1141 = vunpack.c.l.s8.bf16 %v1131
      %v1142 = vunpack.c.l.s8.bf16 %v1132
      %v1143 = vunpack.c.h.s8.bf16 %v1131
      %v1144 = vunpack.c.h.s8.bf16 %v1132
      %v1145 = vunpack.c.l.s8.bf16 %v1133
      %v1146 = vunpack.c.l.s8.bf16 %v1134
      %v1147 = vunpack.c.h.s8.bf16 %v1133
      %v1148 = vunpack.c.h.s8.bf16 %v1134
      %v1149 = vunpack.c.l.s8.bf16 %v1135
      %v1150 = vunpack.c.l.s8.bf16 %v1136
      %v1151 = vunpack.c.h.s8.bf16 %v1135
      %v1152 = vunpack.c.h.s8.bf16 %v1136
      %v1153 = vunpack.c.l.s8.bf16 %v1137
      %v1154 = vunpack.c.l.s8.bf16 %v1138
      %v1155 = vunpack.c.h.s8.bf16 %v1137
      %v1156 = vunpack.c.h.s8.bf16 %v1138
      %v1157 = vunpack.c.l.s8.bf16 %v1139
      %v1158 = vunpack.c.l.s8.bf16 %v1140
      %v1159 = vunpack.c.h.s8.bf16 %v1139
      %v1160 = vunpack.c.h.s8.bf16 %v1140
      %vm1161 = vcmask 261120
      %v1163 = vsel %vm1161, %v1122, 0
      %1165 = vmatprep.subr.bf16.mxu0 %v1142
      %1166 = vmatpush1.bf16.msra.mxu0 %v1141
      %1167 = vmatprep.subr.bf16.mxu0 %v1144
      %1168 = vmatpush1.bf16.msra.mxu0 %v1143
      %1169 = vmatprep.subr.bf16.mxu0 %v1146
      %1170 = vmatpush1.bf16.msra.mxu0 %v1145
      %1171 = vmatprep.subr.bf16.mxu0 %v1148
      %1172 = vmatpush1.bf16.msra.mxu0 %v1147
      %1173 = vmatprep.subr.bf16.mxu0 %v1150
      %1174 = vmatpush1.bf16.msra.mxu0 %v1149
      %1175 = vmatprep.subr.bf16.mxu0 %v1152
      %1176 = vmatpush1.bf16.msra.mxu0 %v1151
      %1177 = vmatprep.subr.bf16.mxu0 %v1154
      %1178 = vmatpush1.bf16.msra.mxu0 %v1153
      %1179 = vmatprep.subr.bf16.mxu0 %v1156
      %1180 = vmatpush1.bf16.msra.mxu0 %v1155
      %1181 = vmatprep.subr.bf16.mxu0 %v1158
      %1182 = vmatpush1.bf16.msra.mxu0 %v1157
      %1183 = vmatprep.subr.bf16.mxu0 %v1160
      %1184 = vmatpush1.bf16.msra.mxu0 %v1159
      %1185 = vmatprep.subr.bf16.mxu0 0
      %1186 = vmatpush1.bf16.msra.mxu0 0
      %1187 = vmatprep.subr.bf16.mxu0 0
      %1188 = vmatpush1.bf16.msra.mxu0 0
      %1189 = vmatprep.subr.bf16.mxu0 0
      %1190 = vmatpush1.bf16.msra.mxu0 0
      %1191 = vmatprep.subr.bf16.mxu0 0
      %1192 = vmatpush1.bf16.msra.mxu0 0
      %1193 = vmatprep.subr.bf16.mxu0 0
      %1194 = vmatpush1.bf16.msra.mxu0 0
      %1195 = vmatprep.subr.bf16.mxu0 0
      %1196 = vmatpush1.bf16.msra.mxu0 0
      %1197 = vmatprep.mubr.bf16.mxu0 %v1163
      %1198 = vmatmul.mubr.bf16.gmra.mrb[0].mxu0 %v1121
      %v1199 = vpop.f32.mrb[0].mxu0
      %v1200 = vadd.f32 0.0, %v1199
      %v1201 = vpop.f32.mrb[0].mxu0
      %v1202 = vadd.f32 0.0, %v1201
      %v1203 = vpop.f32.mrb[0].mxu0
      %v1204 = vadd.f32 0.0, %v1203
      %v1205 = vpop.f32.mrb[0].mxu0
      %v1206 = vadd.f32 0.0, %v1205
      %1207 = vdwg.mxu0
      %v1208 = vlaneseq
      %v1209 = vshrl.u32 %v1208, 7
      %v1210 = vsub.s32 0, %v1209
      %v1211 = vrot.slane %v1123, %v1210
      %v1212 = vlaneseq
      %v1213 = vshrl.u32 %v1212, 7
      %v1214 = vsub.s32 0, %v1213
      %v1215 = vrot.slane %v1124, %v1214
      %v1216 = vmul.f32 %v1200, %v1211
      %v1217 = vmul.f32 %v1202, %v1215
      %v1218 = vmul.f32 %v1204, %v1211
      %v1219 = vmul.f32 %v1206, %v1215
      %v1220 = vlaneseq
      %v1221 = vshrl.u32 %v1220, 7
      %v1222 = vsub.s32 3, %v1221
      %v1223 = vrot.slane %v1123, %v1222
      %v1224 = vlaneseq
      %v1225 = vshrl.u32 %v1224, 7
      %v1226 = vsub.s32 3, %v1225
      %v1227 = vrot.slane %v1124, %v1226
      %v1228 = vadd.f32 %v1216, %v1223
      %v1229 = vadd.f32 %v1217, %v1227
      %v1230 = vadd.f32 %v1218, %v1223
      %v1231 = vadd.f32 %v1219, %v1227
      %s1232 = scalar_lea.vmem %s583, 80
      %v1233 = vld [vmem:[%s1232] sm:$0xff]
      %v1234 = vld [vmem:[%s1232 + $0x8] sm:$0xff]
      %v1235 = vld [vmem:[%s1232 + $0x10] sm:$0xff]
      %v1236 = vld [vmem:[%s1232 + $0x18] sm:$0xff]
      %v1237 = vld [vmem:[%s1232 + $0x20] sm:$0xff]
      %v1238 = vld [vmem:[%s1232 + $0x28] sm:$0xff]
      %v1239 = vld [vmem:[%s1232 + $0x30] sm:$0xff]
      %v1240 = vld [vmem:[%s1232 + $0x38] sm:$0xff]
      %v1241 = vld [vmem:[%s1232 + $0x40] sm:$0xff]
      %v1242 = vld [vmem:[%s1232 + $0x48] sm:$0xff]
      %v1243 = vunpack.c.l.s8.bf16 %v1233
      %v1244 = vunpack.c.l.s8.bf16 %v1234
      %v1245 = vunpack.c.h.s8.bf16 %v1233
      %v1246 = vunpack.c.h.s8.bf16 %v1234
      %v1247 = vunpack.c.l.s8.bf16 %v1235
      %v1248 = vunpack.c.l.s8.bf16 %v1236
      %v1249 = vunpack.c.h.s8.bf16 %v1235
      %v1250 = vunpack.c.h.s8.bf16 %v1236
      %v1251 = vunpack.c.l.s8.bf16 %v1237
      %v1252 = vunpack.c.l.s8.bf16 %v1238
      %v1253 = vunpack.c.h.s8.bf16 %v1237
      %v1254 = vunpack.c.h.s8.bf16 %v1238
      %v1255 = vunpack.c.l.s8.bf16 %v1239
      %v1256 = vunpack.c.l.s8.bf16 %v1240
      %v1257 = vunpack.c.h.s8.bf16 %v1239
      %v1258 = vunpack.c.h.s8.bf16 %v1240
      %v1259 = vunpack.c.l.s8.bf16 %v1241
      %v1260 = vunpack.c.l.s8.bf16 %v1242
      %v1261 = vunpack.c.h.s8.bf16 %v1241
      %v1262 = vunpack.c.h.s8.bf16 %v1242
      %1263 = vmatprep.subr.bf16.mxu0 %v1244
      %1264 = vmatpush1.bf16.msra.mxu0 %v1243
      %1265 = vmatprep.subr.bf16.mxu0 %v1246
      %1266 = vmatpush1.bf16.msra.mxu0 %v1245
      %1267 = vmatprep.subr.bf16.mxu0 %v1248
      %1268 = vmatpush1.bf16.msra.mxu0 %v1247
      %1269 = vmatprep.subr.bf16.mxu0 %v1250
      %1270 = vmatpush1.bf16.msra.mxu0 %v1249
      %1271 = vmatprep.subr.bf16.mxu0 %v1252
      %1272 = vmatpush1.bf16.msra.mxu0 %v1251
      %1273 = vmatprep.subr.bf16.mxu0 %v1254
      %1274 = vmatpush1.bf16.msra.mxu0 %v1253
      %1275 = vmatprep.subr.bf16.mxu0 %v1256
      %1276 = vmatpush1.bf16.msra.mxu0 %v1255
      %1277 = vmatprep.subr.bf16.mxu0 %v1258
      %1278 = vmatpush1.bf16.msra.mxu0 %v1257
      %1279 = vmatprep.subr.bf16.mxu0 %v1260
      %1280 = vmatpush1.bf16.msra.mxu0 %v1259
      %1281 = vmatprep.subr.bf16.mxu0 %v1262
      %1282 = vmatpush1.bf16.msra.mxu0 %v1261
      %1283 = vmatprep.subr.bf16.mxu0 0
      %1284 = vmatpush1.bf16.msra.mxu0 0
      %1285 = vmatprep.subr.bf16.mxu0 0
      %1286 = vmatpush1.bf16.msra.mxu0 0
      %1287 = vmatprep.subr.bf16.mxu0 0
      %1288 = vmatpush1.bf16.msra.mxu0 0
      %1289 = vmatprep.subr.bf16.mxu0 0
      %1290 = vmatpush1.bf16.msra.mxu0 0
      %1291 = vmatprep.subr.bf16.mxu0 0
      %1292 = vmatpush1.bf16.msra.mxu0 0
      %1293 = vmatprep.subr.bf16.mxu0 0
      %1294 = vmatpush1.bf16.msra.mxu0 0
      %1295 = vmatprep.mubr.bf16.mxu0 %v1163
      %1296 = vmatmul.mubr.bf16.gmra.mrb[0].mxu0 %v1121
      %v1297 = vpop.f32.mrb[0].mxu0
      %v1298 = vadd.f32 0.0, %v1297
      %v1299 = vpop.f32.mrb[0].mxu0
      %v1300 = vadd.f32 0.0, %v1299
      %v1301 = vpop.f32.mrb[0].mxu0
      %v1302 = vadd.f32 0.0, %v1301
      %v1303 = vpop.f32.mrb[0].mxu0
      %v1304 = vadd.f32 0.0, %v1303
      %1305 = vdwg.mxu0
      %v1306 = vlaneseq
      %v1307 = vshrl.u32 %v1306, 7
      %v1308 = vsub.s32 1, %v1307
      %v1309 = vrot.slane %v1123, %v1308
      %v1310 = vlaneseq
      %v1311 = vshrl.u32 %v1310, 7
      %v1312 = vsub.s32 1, %v1311
      %v1313 = vrot.slane %v1124, %v1312
      %v1314 = vmul.f32 %v1298, %v1309
      %v1315 = vmul.f32 %v1300, %v1313
      %v1316 = vmul.f32 %v1302, %v1309
      %v1317 = vmul.f32 %v1304, %v1313
      %v1318 = vlaneseq
      %v1319 = vshrl.u32 %v1318, 7
      %v1320 = vsub.s32 4, %v1319
      %v1321 = vrot.slane %v1123, %v1320
      %v1322 = vlaneseq
      %v1323 = vshrl.u32 %v1322, 7
      %v1324 = vsub.s32 4, %v1323
      %v1325 = vrot.slane %v1124, %v1324
      %v1326 = vadd.f32 %v1314, %v1321
      %v1327 = vadd.f32 %v1315, %v1325
      %v1328 = vadd.f32 %v1316, %v1321
      %v1329 = vadd.f32 %v1317, %v1325
      %s1330 = scalar_lea.vmem %s583, 160
      %v1331 = vld [vmem:[%s1330] sm:$0xff]
      %v1332 = vld [vmem:[%s1330 + $0x8] sm:$0xff]
      %v1333 = vld [vmem:[%s1330 + $0x10] sm:$0xff]
      %v1334 = vld [vmem:[%s1330 + $0x18] sm:$0xff]
      %v1335 = vld [vmem:[%s1330 + $0x20] sm:$0xff]
      %v1336 = vld [vmem:[%s1330 + $0x28] sm:$0xff]
      %v1337 = vld [vmem:[%s1330 + $0x30] sm:$0xff]
      %v1338 = vld [vmem:[%s1330 + $0x38] sm:$0xff]
      %v1339 = vld [vmem:[%s1330 + $0x40] sm:$0xff]
      %v1340 = vld [vmem:[%s1330 + $0x48] sm:$0xff]
      %v1341 = vunpack.c.l.s8.bf16 %v1331
      %v1342 = vunpack.c.l.s8.bf16 %v1332
      %v1343 = vunpack.c.h.s8.bf16 %v1331
      %v1344 = vunpack.c.h.s8.bf16 %v1332
      %v1345 = vunpack.c.l.s8.bf16 %v1333
      %v1346 = vunpack.c.l.s8.bf16 %v1334
      %v1347 = vunpack.c.h.s8.bf16 %v1333
      %v1348 = vunpack.c.h.s8.bf16 %v1334
      %v1349 = vunpack.c.l.s8.bf16 %v1335
      %v1350 = vunpack.c.l.s8.bf16 %v1336
      %v1351 = vunpack.c.h.s8.bf16 %v1335
      %v1352 = vunpack.c.h.s8.bf16 %v1336
      %v1353 = vunpack.c.l.s8.bf16 %v1337
      %v1354 = vunpack.c.l.s8.bf16 %v1338
      %v1355 = vunpack.c.h.s8.bf16 %v1337
      %v1356 = vunpack.c.h.s8.bf16 %v1338
      %v1357 = vunpack.c.l.s8.bf16 %v1339
      %v1358 = vunpack.c.l.s8.bf16 %v1340
      %v1359 = vunpack.c.h.s8.bf16 %v1339
      %v1360 = vunpack.c.h.s8.bf16 %v1340
      %1361 = vmatprep.subr.bf16.mxu0 %v1342
      %1362 = vmatpush1.bf16.msra.mxu0 %v1341
      %1363 = vmatprep.subr.bf16.mxu0 %v1344
      %1364 = vmatpush1.bf16.msra.mxu0 %v1343
      %1365 = vmatprep.subr.bf16.mxu0 %v1346
      %1366 = vmatpush1.bf16.msra.mxu0 %v1345
      %1367 = vmatprep.subr.bf16.mxu0 %v1348
      %1368 = vmatpush1.bf16.msra.mxu0 %v1347
      %1369 = vmatprep.subr.bf16.mxu0 %v1350
      %1370 = vmatpush1.bf16.msra.mxu0 %v1349
      %1371 = vmatprep.subr.bf16.mxu0 %v1352
      %1372 = vmatpush1.bf16.msra.mxu0 %v1351
      %1373 = vmatprep.subr.bf16.mxu0 %v1354
      %1374 = vmatpush1.bf16.msra.mxu0 %v1353
      %1375 = vmatprep.subr.bf16.mxu0 %v1356
      %1376 = vmatpush1.bf16.msra.mxu0 %v1355
      %1377 = vmatprep.subr.bf16.mxu0 %v1358
      %1378 = vmatpush1.bf16.msra.mxu0 %v1357
      %1379 = vmatprep.subr.bf16.mxu0 %v1360
      %1380 = vmatpush1.bf16.msra.mxu0 %v1359
      %1381 = vmatprep.subr.bf16.mxu0 0
      %1382 = vmatpush1.bf16.msra.mxu0 0
      %1383 = vmatprep.subr.bf16.mxu0 0
      %1384 = vmatpush1.bf16.msra.mxu0 0
      %1385 = vmatprep.subr.bf16.mxu0 0
      %1386 = vmatpush1.bf16.msra.mxu0 0
      %1387 = vmatprep.subr.bf16.mxu0 0
      %1388 = vmatpush1.bf16.msra.mxu0 0
      %1389 = vmatprep.subr.bf16.mxu0 0
      %1390 = vmatpush1.bf16.msra.mxu0 0
      %1391 = vmatprep.subr.bf16.mxu0 0
      %1392 = vmatpush1.bf16.msra.mxu0 0
      %1393 = vmatprep.mubr.bf16.mxu0 %v1163
      %1394 = vmatmul.mubr.bf16.gmra.mrb[0].mxu0 %v1121
      %v1395 = vpop.f32.mrb[0].mxu0
      %v1396 = vadd.f32 0.0, %v1395
      %v1397 = vpop.f32.mrb[0].mxu0
      %v1398 = vadd.f32 0.0, %v1397
      %v1399 = vpop.f32.mrb[0].mxu0
      %v1400 = vadd.f32 0.0, %v1399
      %v1401 = vpop.f32.mrb[0].mxu0
      %v1402 = vadd.f32 0.0, %v1401
      %1403 = vdwg.mxu0
      %v1404 = vlaneseq
      %v1405 = vshrl.u32 %v1404, 7
      %v1406 = vsub.s32 2, %v1405
      %v1407 = vrot.slane %v1123, %v1406
      %v1408 = vlaneseq
      %v1409 = vshrl.u32 %v1408, 7
      %v1410 = vsub.s32 2, %v1409
      %v1411 = vrot.slane %v1124, %v1410
      %v1412 = vmul.f32 %v1396, %v1407
      %v1413 = vmul.f32 %v1398, %v1411
      %v1414 = vmul.f32 %v1400, %v1407
      %v1415 = vmul.f32 %v1402, %v1411
      %v1416 = vlaneseq
      %v1417 = vshrl.u32 %v1416, 7
      %v1418 = vsub.s32 5, %v1417
      %v1419 = vrot.slane %v1123, %v1418
      %v1420 = vlaneseq
      %v1421 = vshrl.u32 %v1420, 7
      %v1422 = vsub.s32 5, %v1421
      %v1423 = vrot.slane %v1124, %v1422
      %v1424 = vadd.f32 %v1412, %v1419
      %v1425 = vadd.f32 %v1413, %v1423
      %v1426 = vadd.f32 %v1414, %v1419
      %v1427 = vadd.f32 %v1415, %v1423
      %v1428 = vld [vmem:[%s3] sm:$0xff]
      %v1429 = vld [vmem:[%s3 + $0x8] sm:$0xff]
      %v1430 = vld [vmem:[%s3 + $0x10] sm:$0xff]
      %v1431 = vld [vmem:[%s3 + $0x18] sm:$0xff]
      %v1432 = vld [vmem:[%s3 + $0x20] sm:$0xff]
      %v1433 = vld [vmem:[%s3 + $0x28] sm:$0xff]
      %v1434 = vld [vmem:[%s3 + $0x30] sm:$0xff]
      %v1435 = vld [vmem:[%s3 + $0x38] sm:$0xff]
      %v1436 = vld [vmem:[%s3 + $0x40] sm:$0xff]
      %v1437 = vld [vmem:[%s3 + $0x48] sm:$0xff]
      %v1438 = vld [vmem:[%s3 + $0x50] sm:$0xff]
      %v1439 = vld [vmem:[%s3 + $0x58] sm:$0xff]
      %v1440 = vld [vmem:[%s3 + $0x60] sm:$0xff]
      %v1441 = vld [vmem:[%s3 + $0x68] sm:$0xff]
      %v1442 = vld [vmem:[%s3 + $0x70] sm:$0xff]
      %v1443 = vld [vmem:[%s3 + $0x78] sm:$0xff]
      %v1444 = vld [vmem:[%s3 + $0x80] sm:$0xff]
      %v1445 = vld [vmem:[%s3 + $0x88] sm:$0xff]
      %v1446 = vld [vmem:[%s3 + $0x90] sm:$0xff]
      %v1447 = vld [vmem:[%s3 + $0x98] sm:$0xff]
      %v1448 = vld [vmem:[%s4] sm:$0xff]
      %v1449 = vld [vmem:[%s4 + $0x8] sm:$0xff]
      %v1450 = vmul.f32 %v1228, %v1326
      %v1451 = vmul.f32 %v1229, %v1327
      %v1452 = vmul.f32 %v1230, %v1326
      %v1453 = vmul.f32 %v1231, %v1327
      %v1455 = vsel %vm1161, %v1451, 0
      %v1458 = vsel %vm1161, %v1453, 0
      %1460 = vmatprep.subr.mxu0 0.0
      %1461 = vmatpush1.msra.mxu0 %v1428
      %1462 = vmatprep.subr.mxu0 0.0
      %1463 = vmatpush1.msra.mxu0 %v1429
      %1464 = vmatprep.subr.mxu0 0.0
      %1465 = vmatpush1.msra.mxu0 %v1430
      %1466 = vmatprep.subr.mxu0 0.0
      %1467 = vmatpush1.msra.mxu0 %v1431
      %1468 = vmatprep.subr.mxu0 0.0
      %1469 = vmatpush1.msra.mxu0 %v1432
      %1470 = vmatprep.subr.mxu0 0.0
      %1471 = vmatpush1.msra.mxu0 %v1433
      %1472 = vmatprep.subr.mxu0 0.0
      %1473 = vmatpush1.msra.mxu0 %v1434
      %1474 = vmatprep.subr.mxu0 0.0
      %1475 = vmatpush1.msra.mxu0 %v1435
      %1476 = vmatprep.subr.mxu0 0.0
      %1477 = vmatpush1.msra.mxu0 %v1436
      %1478 = vmatprep.subr.mxu0 0.0
      %1479 = vmatpush1.msra.mxu0 %v1437
      %1480 = vmatprep.subr.mxu0 0.0
      %1481 = vmatpush1.msra.mxu0 %v1438
      %1482 = vmatprep.subr.mxu0 0.0
      %1483 = vmatpush1.msra.mxu0 %v1439
      %1484 = vmatprep.subr.mxu0 0.0
      %1485 = vmatpush1.msra.mxu0 %v1440
      %1486 = vmatprep.subr.mxu0 0.0
      %1487 = vmatpush1.msra.mxu0 %v1441
      %1488 = vmatprep.subr.mxu0 0.0
      %1489 = vmatpush1.msra.mxu0 %v1442
      %1490 = vmatprep.subr.mxu0 0.0
      %1491 = vmatpush1.msra.mxu0 %v1443
      %1492 = vmatprep.subr.mxu0 0.0
      %1493 = vmatpush1.msra.mxu0 %v1444
      %1494 = vmatprep.subr.mxu0 0.0
      %1495 = vmatpush1.msra.mxu0 %v1445
      %1496 = vmatprep.subr.mxu0 0.0
      %1497 = vmatpush1.msra.mxu0 %v1446
      %1498 = vmatprep.subr.mxu0 0.0
      %1499 = vmatpush1.msra.mxu0 %v1447
      %1500 = vmatprep.subr.mxu0 0.0
      %1501 = vmatpush1.msra.mxu0 0.0
      %1502 = vmatprep.subr.mxu0 0.0
      %1503 = vmatpush1.msra.mxu0 0.0
      %1504 = vmatprep.subr.mxu0 0.0
      %1505 = vmatpush1.msra.mxu0 0.0
      %1506 = vmatprep.subr.mxu0 0.0
      %1507 = vmatpush1.msra.mxu0 0.0
      %1508 = vmatprep.subr.mxu0 0.0
      %1509 = vmatpush1.msra.mxu0 0.0
      %1510 = vmatprep.subr.mxu0 0.0
      %1511 = vmatpush1.msra.mxu0 0.0
      %1512 = vmatprep.subr.mxu0 0.0
      %1513 = vmatpush1.msra.mxu0 0.0
      %1514 = vmatprep.subr.mxu0 0.0
      %1515 = vmatpush1.msra.mxu0 0.0
      %1516 = vmatprep.subr.mxu0 0.0
      %1517 = vmatpush1.msra.mxu0 0.0
      %1518 = vmatprep.subr.mxu0 0.0
      %1519 = vmatpush1.msra.mxu0 0.0
      %1520 = vmatprep.subr.mxu0 0.0
      %1521 = vmatpush1.msra.mxu0 0.0
      %1522 = vmatprep.subr.mxu0 0.0
      %1523 = vmatpush1.msra.mxu0 0.0
      %1524 = vmatprep.mubr.f32.mxu0 %v1455
      %1525 = vmatmul.mubr.f32.gmra.mrb[0].mxu0 %v1450
      %v1526 = vpop.f32.mrb[0].mxu0
      %v1527 = vadd.f32 0.0, %v1526
      %v1528 = vpop.f32.mrb[0].mxu0
      %1529 = vmatprep.mubr.f32.mxu0 %v1458
      %1530 = vmatmul.mubr.f32.gmra.mrb[0].mxu0 %v1452
      %v1531 = vpop.f32.mrb[0].mxu0
      %v1532 = vadd.f32 0.0, %v1531
      %v1533 = vpop.f32.mrb[0].mxu0
      %1534 = vdwg.mxu0
      %v1535 = vmul.f32 %v1228, %v1328
      %v1536 = vmul.f32 %v1229, %v1329
      %v1537 = vmul.f32 %v1230, %v1328
      %v1538 = vmul.f32 %v1231, %v1329
      %v1540 = vsel %vm1161, %v1536, 0
      %v1543 = vsel %vm1161, %v1538, 0
      %1545 = vmatprep.subr.mxu0 0.0
      %1546 = vmatpush1.msra.mxu0 %v1428
      %1547 = vmatprep.subr.mxu0 0.0
      %1548 = vmatpush1.msra.mxu0 %v1429
      %1549 = vmatprep.subr.mxu0 0.0
      %1550 = vmatpush1.msra.mxu0 %v1430
      %1551 = vmatprep.subr.mxu0 0.0
      %1552 = vmatpush1.msra.mxu0 %v1431
      %1553 = vmatprep.subr.mxu0 0.0
      %1554 = vmatpush1.msra.mxu0 %v1432
      %1555 = vmatprep.subr.mxu0 0.0
      %1556 = vmatpush1.msra.mxu0 %v1433
      %1557 = vmatprep.subr.mxu0 0.0
      %1558 = vmatpush1.msra.mxu0 %v1434
      %1559 = vmatprep.subr.mxu0 0.0
      %1560 = vmatpush1.msra.mxu0 %v1435
      %1561 = vmatprep.subr.mxu0 0.0
      %1562 = vmatpush1.msra.mxu0 %v1436
      %1563 = vmatprep.subr.mxu0 0.0
      %1564 = vmatpush1.msra.mxu0 %v1437
      %1565 = vmatprep.subr.mxu0 0.0
      %1566 = vmatpush1.msra.mxu0 %v1438
      %1567 = vmatprep.subr.mxu0 0.0
      %1568 = vmatpush1.msra.mxu0 %v1439
      %1569 = vmatprep.subr.mxu0 0.0
      %1570 = vmatpush1.msra.mxu0 %v1440
      %1571 = vmatprep.subr.mxu0 0.0
      %1572 = vmatpush1.msra.mxu0 %v1441
      %1573 = vmatprep.subr.mxu0 0.0
      %1574 = vmatpush1.msra.mxu0 %v1442
      %1575 = vmatprep.subr.mxu0 0.0
      %1576 = vmatpush1.msra.mxu0 %v1443
      %1577 = vmatprep.subr.mxu0 0.0
      %1578 = vmatpush1.msra.mxu0 %v1444
      %1579 = vmatprep.subr.mxu0 0.0
      %1580 = vmatpush1.msra.mxu0 %v1445
      %1581 = vmatprep.subr.mxu0 0.0
      %1582 = vmatpush1.msra.mxu0 %v1446
      %1583 = vmatprep.subr.mxu0 0.0
      %1584 = vmatpush1.msra.mxu0 %v1447
      %1585 = vmatprep.subr.mxu0 0.0
      %1586 = vmatpush1.msra.mxu0 0.0
      %1587 = vmatprep.subr.mxu0 0.0
      %1588 = vmatpush1.msra.mxu0 0.0
      %1589 = vmatprep.subr.mxu0 0.0
      %1590 = vmatpush1.msra.mxu0 0.0
      %1591 = vmatprep.subr.mxu0 0.0
      %1592 = vmatpush1.msra.mxu0 0.0
      %1593 = vmatprep.subr.mxu0 0.0
      %1594 = vmatpush1.msra.mxu0 0.0
      %1595 = vmatprep.subr.mxu0 0.0
      %1596 = vmatpush1.msra.mxu0 0.0
      %1597 = vmatprep.subr.mxu0 0.0
      %1598 = vmatpush1.msra.mxu0 0.0
      %1599 = vmatprep.subr.mxu0 0.0
      %1600 = vmatpush1.msra.mxu0 0.0
      %1601 = vmatprep.subr.mxu0 0.0
      %1602 = vmatpush1.msra.mxu0 0.0
      %1603 = vmatprep.subr.mxu0 0.0
      %1604 = vmatpush1.msra.mxu0 0.0
      %1605 = vmatprep.subr.mxu0 0.0
      %1606 = vmatpush1.msra.mxu0 0.0
      %1607 = vmatprep.subr.mxu0 0.0
      %1608 = vmatpush1.msra.mxu0 0.0
      %1609 = vmatprep.mubr.f32.mxu0 %v1540
      %1610 = vmatmul.mubr.f32.gmra.mrb[0].mxu0 %v1535
      %v1611 = vpop.f32.mrb[0].mxu0
      %v1612 = vadd.f32 0.0, %v1611
      %v1613 = vpop.f32.mrb[0].mxu0
      %1614 = vmatprep.mubr.f32.mxu0 %v1543
      %1615 = vmatmul.mubr.f32.gmra.mrb[0].mxu0 %v1537
      %v1616 = vpop.f32.mrb[0].mxu0
      %v1617 = vadd.f32 0.0, %v1616
      %v1618 = vpop.f32.mrb[0].mxu0
      %1619 = vdwg.mxu0
      %v1620 = vmax.f32 %v1527, %v1612
      %v1621 = vmax.f32 %v1532, %v1617
      %v1622 = vsub.f32 %v1527, %v1620
      %v1623 = vsub.f32 %v1532, %v1621
      %v1624 = vmul.f32 %v1622, 1.442695
      %v1625 = vpow.pop %v1624
      %v1626 = vmul.f32 %v1623, 1.442695
      %v1627 = vpow.pop %v1626
      %v1628 = vsub.f32 %v1612, %v1620
      %v1629 = vsub.f32 %v1617, %v1621
      %v1630 = vmul.f32 %v1628, 1.442695
      %v1631 = vpow.pop %v1630
      %v1632 = vmul.f32 %v1629, 1.442695
      %v1633 = vpow.pop %v1632
      %v1634 = vadd.f32 %v1625, %v1631
      %v1635 = vadd.f32 %v1627, %v1633
      %v1636 = vrcp.pop %v1634
      %v1637 = vmul.f32 1.0, %v1636
      %v1638 = vrcp.pop %v1635
      %v1639 = vmul.f32 1.0, %v1638
      %v1640 = vmul.f32 %v1625, %v1637
      %v1641 = vmul.f32 %v1627, %v1639
      %vm1642 = vcmask 64512
      %v1644 = vsel %vm1642, %v1640, 0
      %v1647 = vsel %vm1642, %v1641, 0
      %1649 = vmatprep.subr.mxu0 %v1449
      %1650 = vmatpush1.msra.mxu0 %v1448
      %1651 = vmatprep.subr.mxu0 0.0
      %1652 = vmatpush1.msra.mxu0 0.0
      %1653 = vmatprep.subr.mxu0 0.0
      %1654 = vmatpush1.msra.mxu0 0.0
      %1655 = vmatprep.subr.mxu0 0.0
      %1656 = vmatpush1.msra.mxu0 0.0
      %1657 = vmatprep.subr.mxu0 0.0
      %1658 = vmatpush1.msra.mxu0 0.0
      %1659 = vmatprep.subr.mxu0 0.0
      %1660 = vmatpush1.msra.mxu0 0.0
      %1661 = vmatprep.subr.mxu0 0.0
      %1662 = vmatpush1.msra.mxu0 0.0
      %1663 = vmatprep.subr.mxu0 0.0
      %1664 = vmatpush1.msra.mxu0 0.0
      %1665 = vmatprep.subr.mxu0 0.0
      %1666 = vmatpush1.msra.mxu0 0.0
      %1667 = vmatprep.subr.mxu0 0.0
      %1668 = vmatpush1.msra.mxu0 0.0
      %1669 = vmatprep.subr.mxu0 0.0
      %1670 = vmatpush1.msra.mxu0 0.0
      %1671 = vmatprep.subr.mxu0 0.0
      %1672 = vmatpush1.msra.mxu0 0.0
      %1673 = vmatprep.subr.mxu0 0.0
      %1674 = vmatpush1.msra.mxu0 0.0
      %1675 = vmatprep.subr.mxu0 0.0
      %1676 = vmatpush1.msra.mxu0 0.0
      %1677 = vmatprep.subr.mxu0 0.0
      %1678 = vmatpush1.msra.mxu0 0.0
      %1679 = vmatprep.subr.mxu0 0.0
      %1680 = vmatpush1.msra.mxu0 0.0
      %1681 = vmatprep.subr.mxu0 0.0
      %1682 = vmatpush1.msra.mxu0 0.0
      %1683 = vmatprep.subr.mxu0 0.0
      %1684 = vmatpush1.msra.mxu0 0.0
      %1685 = vmatprep.subr.mxu0 0.0
      %1686 = vmatpush1.msra.mxu0 0.0
      %1687 = vmatprep.subr.mxu0 0.0
      %1688 = vmatpush1.msra.mxu0 0.0
      %1689 = vmatprep.subr.mxu0 0.0
      %1690 = vmatpush1.msra.mxu0 0.0
      %1691 = vmatprep.subr.mxu0 0.0
      %1692 = vmatpush1.msra.mxu0 0.0
      %1693 = vmatprep.subr.mxu0 0.0
      %1694 = vmatpush1.msra.mxu0 0.0
      %1695 = vmatprep.subr.mxu0 0.0
      %1696 = vmatpush1.msra.mxu0 0.0
      %1697 = vmatprep.subr.mxu0 0.0
      %1698 = vmatpush1.msra.mxu0 0.0
      %1699 = vmatprep.subr.mxu0 0.0
      %1700 = vmatpush1.msra.mxu0 0.0
      %1701 = vmatprep.subr.mxu0 0.0
      %1702 = vmatpush1.msra.mxu0 0.0
      %1703 = vmatprep.subr.mxu0 0.0
      %1704 = vmatpush1.msra.mxu0 0.0
      %1705 = vmatprep.subr.mxu0 0.0
      %1706 = vmatpush1.msra.mxu0 0.0
      %1707 = vmatprep.subr.mxu0 0.0
      %1708 = vmatpush1.msra.mxu0 0.0
      %1709 = vmatprep.subr.mxu0 0.0
      %1710 = vmatpush1.msra.mxu0 0.0
      %1711 = vmatprep.subr.mxu0 0.0
      %1712 = vmatpush1.msra.mxu0 0.0
      %1713 = vmatprep.mubr.f32.mxu0 0.0
      %1714 = vmatmul.mubr.f32.gmra.mrb[0].mxu0 %v1644
      %v1715 = vpop.f32.mrb[0].mxu0
      %v1716 = vadd.f32 0.0, %v1715
      %v1717 = vpop.f32.mrb[0].mxu0
      %v1718 = vadd.f32 0.0, %v1717
      %1719 = vmatprep.mubr.f32.mxu0 0.0
      %1720 = vmatmul.mubr.f32.gmra.mrb[0].mxu0 %v1647
      %v1721 = vpop.f32.mrb[0].mxu0
      %v1722 = vadd.f32 0.0, %v1721
      %v1723 = vpop.f32.mrb[0].mxu0
      %v1724 = vadd.f32 0.0, %v1723
      %1725 = vdwg.mxu0
      %v1726 = vmul.f32 %v1716, %v1424
      %v1727 = vmul.f32 %v1718, %v1425
      %v1728 = vmul.f32 %v1722, %v1424
      %v1729 = vmul.f32 %v1724, %v1425
      %v1730 = vmul.f32 %v1631, %v1637
      %v1731 = vmul.f32 %v1633, %v1639
      %v1733 = vsel %vm1642, %v1730, 0
      %v1736 = vsel %vm1642, %v1731, 0
      %1738 = vmatprep.subr.mxu0 %v1449
      %1739 = vmatpush1.msra.mxu0 %v1448
      %1740 = vmatprep.subr.mxu0 0.0
      %1741 = vmatpush1.msra.mxu0 0.0
      %1742 = vmatprep.subr.mxu0 0.0
      %1743 = vmatpush1.msra.mxu0 0.0
      %1744 = vmatprep.subr.mxu0 0.0
      %1745 = vmatpush1.msra.mxu0 0.0
      %1746 = vmatprep.subr.mxu0 0.0
      %1747 = vmatpush1.msra.mxu0 0.0
      %1748 = vmatprep.subr.mxu0 0.0
      %1749 = vmatpush1.msra.mxu0 0.0
      %1750 = vmatprep.subr.mxu0 0.0
      %1751 = vmatpush1.msra.mxu0 0.0
      %1752 = vmatprep.subr.mxu0 0.0
      %1753 = vmatpush1.msra.mxu0 0.0
      %1754 = vmatprep.subr.mxu0 0.0
      %1755 = vmatpush1.msra.mxu0 0.0
      %1756 = vmatprep.subr.mxu0 0.0
      %1757 = vmatpush1.msra.mxu0 0.0
      %1758 = vmatprep.subr.mxu0 0.0
      %1759 = vmatpush1.msra.mxu0 0.0
      %1760 = vmatprep.subr.mxu0 0.0
      %1761 = vmatpush1.msra.mxu0 0.0
      %1762 = vmatprep.subr.mxu0 0.0
      %1763 = vmatpush1.msra.mxu0 0.0
      %1764 = vmatprep.subr.mxu0 0.0
      %1765 = vmatpush1.msra.mxu0 0.0
      %1766 = vmatprep.subr.mxu0 0.0
      %1767 = vmatpush1.msra.mxu0 0.0
      %1768 = vmatprep.subr.mxu0 0.0
      %1769 = vmatpush1.msra.mxu0 0.0
      %1770 = vmatprep.subr.mxu0 0.0
      %1771 = vmatpush1.msra.mxu0 0.0
      %1772 = vmatprep.subr.mxu0 0.0
      %1773 = vmatpush1.msra.mxu0 0.0
      %1774 = vmatprep.subr.mxu0 0.0
      %1775 = vmatpush1.msra.mxu0 0.0
      %1776 = vmatprep.subr.mxu0 0.0
      %1777 = vmatpush1.msra.mxu0 0.0
      %1778 = vmatprep.subr.mxu0 0.0
      %1779 = vmatpush1.msra.mxu0 0.0
      %1780 = vmatprep.subr.mxu0 0.0
      %1781 = vmatpush1.msra.mxu0 0.0
      %1782 = vmatprep.subr.mxu0 0.0
      %1783 = vmatpush1.msra.mxu0 0.0
      %1784 = vmatprep.subr.mxu0 0.0
      %1785 = vmatpush1.msra.mxu0 0.0
      %1786 = vmatprep.subr.mxu0 0.0
      %1787 = vmatpush1.msra.mxu0 0.0
      %1788 = vmatprep.subr.mxu0 0.0
      %1789 = vmatpush1.msra.mxu0 0.0
      %1790 = vmatprep.subr.mxu0 0.0
      %1791 = vmatpush1.msra.mxu0 0.0
      %1792 = vmatprep.subr.mxu0 0.0
      %1793 = vmatpush1.msra.mxu0 0.0
      %1794 = vmatprep.subr.mxu0 0.0
      %1795 = vmatpush1.msra.mxu0 0.0
      %1796 = vmatprep.subr.mxu0 0.0
      %1797 = vmatpush1.msra.mxu0 0.0
      %1798 = vmatprep.subr.mxu0 0.0
      %1799 = vmatpush1.msra.mxu0 0.0
      %1800 = vmatprep.subr.mxu0 0.0
      %1801 = vmatpush1.msra.mxu0 0.0
      %1802 = vmatprep.mubr.f32.mxu0 0.0
      %1803 = vmatmul.mubr.f32.gmra.mrb[0].mxu0 %v1733
      %v1804 = vpop.f32.mrb[0].mxu0
      %v1805 = vadd.f32 0.0, %v1804
      %v1806 = vpop.f32.mrb[0].mxu0
      %v1807 = vadd.f32 0.0, %v1806
      %1808 = vmatprep.mubr.f32.mxu0 0.0
      %1809 = vmatmul.mubr.f32.gmra.mrb[0].mxu0 %v1736
      %v1810 = vpop.f32.mrb[0].mxu0
      %v1811 = vadd.f32 0.0, %v1810
      %v1812 = vpop.f32.mrb[0].mxu0
      %v1813 = vadd.f32 0.0, %v1812
      %1814 = vdwg.mxu0
      %v1815 = vmul.f32 %v1805, %v1426
      %v1816 = vmul.f32 %v1807, %v1427
      %v1817 = vmul.f32 %v1811, %v1426
      %v1818 = vmul.f32 %v1813, %v1427
      %v1819 = vadd.f32 %v1726, %v1815
      %v1820 = vadd.f32 %v1727, %v1816
      %v1821 = vadd.f32 %v1728, %v1817
      %v1822 = vadd.f32 %v1729, %v1818
      %v1823 = vpack.c.bf16 %v1821, %v1819
      %v1824 = vpack.c.bf16 %v1822, %v1820
      %v1825 = vld [vmem:[%s588] sm:$0xff]
      %v1826 = vld [vmem:[%s588 + $0x8] sm:$0xff]
      %v1827 = vld [vmem:[%s588 + $0x10] sm:$0xff]
      %v1828 = vld [vmem:[%s588 + $0x18] sm:$0xff]
      %v1829 = vld [vmem:[%s588 + $0x20] sm:$0xff]
      %v1830 = vld [vmem:[%s588 + $0x28] sm:$0xff]
      %v1831 = vld [vmem:[%s588 + $0x30] sm:$0xff]
      %v1832 = vld [vmem:[%s588 + $0x38] sm:$0xff]
      %v1833 = vld [vmem:[%s588 + $0x40] sm:$0xff]
      %v1834 = vld [vmem:[%s588 + $0x48] sm:$0xff]
      %v1835 = vunpack.c.l.s8.bf16 %v1825
      %v1836 = vunpack.c.l.s8.bf16 %v1826
      %v1837 = vunpack.c.h.s8.bf16 %v1825
      %v1838 = vunpack.c.h.s8.bf16 %v1826
      %v1839 = vunpack.c.l.s8.bf16 %v1827
      %v1840 = vunpack.c.l.s8.bf16 %v1828
      %v1841 = vunpack.c.h.s8.bf16 %v1827
      %v1842 = vunpack.c.h.s8.bf16 %v1828
      %v1843 = vunpack.c.l.s8.bf16 %v1829
      %v1844 = vunpack.c.l.s8.bf16 %v1830
      %v1845 = vunpack.c.h.s8.bf16 %v1829
      %v1846 = vunpack.c.h.s8.bf16 %v1830
      %v1847 = vunpack.c.l.s8.bf16 %v1831
      %v1848 = vunpack.c.l.s8.bf16 %v1832
      %v1849 = vunpack.c.h.s8.bf16 %v1831
      %v1850 = vunpack.c.h.s8.bf16 %v1832
      %v1851 = vunpack.c.l.s8.bf16 %v1833
      %v1852 = vunpack.c.l.s8.bf16 %v1834
      %v1853 = vunpack.c.h.s8.bf16 %v1833
      %v1854 = vunpack.c.h.s8.bf16 %v1834
      %v1856 = vsel %vm1161, %v1824, 0
      %1858 = vmatprep.subr.bf16.mxu0 %v1836
      %1859 = vmatpush1.bf16.msra.mxu0 %v1835
      %1860 = vmatprep.subr.bf16.mxu0 %v1838
      %1861 = vmatpush1.bf16.msra.mxu0 %v1837
      %1862 = vmatprep.subr.bf16.mxu0 %v1840
      %1863 = vmatpush1.bf16.msra.mxu0 %v1839
      %1864 = vmatprep.subr.bf16.mxu0 %v1842
      %1865 = vmatpush1.bf16.msra.mxu0 %v1841
      %1866 = vmatprep.subr.bf16.mxu0 %v1844
      %1867 = vmatpush1.bf16.msra.mxu0 %v1843
      %1868 = vmatprep.subr.bf16.mxu0 %v1846
      %1869 = vmatpush1.bf16.msra.mxu0 %v1845
      %1870 = vmatprep.subr.bf16.mxu0 %v1848
      %1871 = vmatpush1.bf16.msra.mxu0 %v1847
      %1872 = vmatprep.subr.bf16.mxu0 %v1850
      %1873 = vmatpush1.bf16.msra.mxu0 %v1849
      %1874 = vmatprep.subr.bf16.mxu0 %v1852
      %1875 = vmatpush1.bf16.msra.mxu0 %v1851
      %1876 = vmatprep.subr.bf16.mxu0 %v1854
      %1877 = vmatpush1.bf16.msra.mxu0 %v1853
      %1878 = vmatprep.subr.bf16.mxu0 0
      %1879 = vmatpush1.bf16.msra.mxu0 0
      %1880 = vmatprep.subr.bf16.mxu0 0
      %1881 = vmatpush1.bf16.msra.mxu0 0
      %1882 = vmatprep.subr.bf16.mxu0 0
      %1883 = vmatpush1.bf16.msra.mxu0 0
      %1884 = vmatprep.subr.bf16.mxu0 0
      %1885 = vmatpush1.bf16.msra.mxu0 0
      %1886 = vmatprep.subr.bf16.mxu0 0
      %1887 = vmatpush1.bf16.msra.mxu0 0
      %1888 = vmatprep.subr.bf16.mxu0 0
      %1889 = vmatpush1.bf16.msra.mxu0 0
      %1890 = vmatprep.mubr.bf16.mxu0 %v1856
      %1891 = vmatmul.mubr.bf16.gmra.mrb[0].mxu0 %v1823
      %v1892 = vpop.f32.mrb[0].mxu0
      %v1893 = vadd.f32 0.0, %v1892
      %v1894 = vpop.f32.mrb[0].mxu0
      %v1895 = vadd.f32 0.0, %v1894
      %v1896 = vpop.f32.mrb[0].mxu0
      %v1897 = vadd.f32 0.0, %v1896
      %v1898 = vpop.f32.mrb[0].mxu0
      %v1899 = vadd.f32 0.0, %v1898
      %1900 = vdwg.mxu0
      %v1901 = vlaneseq
      %v1902 = vshrl.u32 %v1901, 7
      %v1903 = vsub.s32 6, %v1902
      %v1904 = vrot.slane %v1123, %v1903
      %v1905 = vlaneseq
      %v1906 = vshrl.u32 %v1905, 7
      %v1907 = vsub.s32 6, %v1906
      %v1908 = vrot.slane %v1124, %v1907
      %v1909 = vmul.f32 %v1893, %v1904
      %v1910 = vmul.f32 %v1895, %v1908
      %v1911 = vmul.f32 %v1897, %v1904
      %v1912 = vmul.f32 %v1899, %v1908
      %v1913 = vlaneseq
      %v1914 = vshrl.u32 %v1913, 7
      %v1915 = vsub.s32 7, %v1914
      %v1916 = vrot.slane %v1123, %v1915
      %v1917 = vlaneseq
      %v1918 = vshrl.u32 %v1917, 7
      %v1919 = vsub.s32 7, %v1918
      %v1920 = vrot.slane %v1124, %v1919
      %v1921 = vadd.f32 %v1909, %v1916
      %v1922 = vadd.f32 %v1910, %v1920
      %v1923 = vadd.f32 %v1911, %v1916
      %v1924 = vadd.f32 %v1912, %v1920
      %v1925 = vadd.f32 %v1117, %v1921
      %v1926 = vadd.f32 %v1118, %v1922
      %v1927 = vadd.f32 %v1119, %v1923
      %v1928 = vadd.f32 %v1120, %v1924
      %v1929 = vsel %vm1161, %v1926, 0.0
      %v1930 = vadd.f32 %v1925, %v1929
      %1931 = vadd.xlane.f32.xlu0 %v1930
      %v1932 = vpop.xlane.xlu0 %1931
      %v1933 = vsel %vm1161, %v1928, 0.0
      %v1934 = vadd.f32 %v1927, %v1933
      %1935 = vadd.xlane.f32.xlu0 %v1934
      %v1936 = vpop.xlane.xlu0 %1935
      %v1937 = vrcp.pop 160.0
      %v1938 = vmul.f32 %v1932, %v1937
      %v1939 = vmul.f32 %v1936, %v1937
      %v1940 = vsub.f32 %v1925, %v1938
      %v1941 = vsub.f32 %v1926, %v1938
      %v1942 = vsub.f32 %v1927, %v1939
      %v1943 = vsub.f32 %v1928, %v1939
      %v1944 = vmul.f32 %v1940, %v1940
      %v1945 = vmul.f32 %v1941, %v1941
      %v1946 = vmul.f32 %v1942, %v1942
      %v1947 = vmul.f32 %v1943, %v1943
      %v1948 = vsel %vm1161, %v1945, 0.0
      %v1949 = vadd.f32 %v1944, %v1948
      %1950 = vadd.xlane.f32.xlu0 %v1949
      %v1951 = vpop.xlane.xlu0 %1950
      %v1952 = vsel %vm1161, %v1947, 0.0
      %v1953 = vadd.f32 %v1946, %v1952
      %1954 = vadd.xlane.f32.xlu0 %v1953
      %v1955 = vpop.xlane.xlu0 %1954
      %v1956 = vmul.f32 %v1951, %v1937
      %v1957 = vmul.f32 %v1955, %v1937
      %v1958 = vadd.f32 %v1956, 1e-05
      %v1959 = vadd.f32 %v1957, 1e-05
      %v1960 = vrsqrt.pop %v1958
      %v1961 = vrsqrt.pop %v1959
      %v1962 = vmul.f32 %v1940, %v1960
      %v1963 = vmul.f32 %v1941, %v1960
      %v1964 = vmul.f32 %v1942, %v1961
      %v1965 = vmul.f32 %v1943, %v1961
      %v1966 = vlaneseq
      %v1967 = vshrl.u32 %v1966, 7
      %v1968 = vsub.s32 0, %v1967
      %v1969 = vrot.slane %v1125, %v1968
      %v1970 = vlaneseq
      %v1971 = vshrl.u32 %v1970, 7
      %v1972 = vsub.s32 0, %v1971
      %v1973 = vrot.slane %v1126, %v1972
      %v1974 = vmul.f32 %v1962, %v1969
      %v1975 = vmul.f32 %v1963, %v1973
      %v1976 = vmul.f32 %v1964, %v1969
      %v1977 = vmul.f32 %v1965, %v1973
      %v1978 = vlaneseq
      %v1979 = vshrl.u32 %v1978, 7
      %v1980 = vsub.s32 1, %v1979
      %v1981 = vrot.slane %v1125, %v1980
      %v1982 = vlaneseq
      %v1983 = vshrl.u32 %v1982, 7
      %v1984 = vsub.s32 1, %v1983
      %v1985 = vrot.slane %v1126, %v1984
      %v1986 = vadd.f32 %v1974, %v1981
      %v1987 = vadd.f32 %v1975, %v1985
      %v1988 = vadd.f32 %v1976, %v1981
      %v1989 = vadd.f32 %v1977, %v1985
      %v1990 = vpack.c.bf16 %v1988, %v1986
      %v1991 = vpack.c.bf16 %v1989, %v1987
      %v1992 = vld [vmem:[%s593] sm:$0xff]
      %v1993 = vld [vmem:[%s593 + $0x8] sm:$0xff]
      %v1994 = vld [vmem:[%s593 + $0x10] sm:$0xff]
      %v1995 = vld [vmem:[%s593 + $0x18] sm:$0xff]
      %v1996 = vld [vmem:[%s593 + $0x20] sm:$0xff]
      %v1997 = vld [vmem:[%s593 + $0x28] sm:$0xff]
      %v1998 = vld [vmem:[%s593 + $0x30] sm:$0xff]
      %v1999 = vld [vmem:[%s593 + $0x38] sm:$0xff]
      %v2000 = vld [vmem:[%s593 + $0x40] sm:$0xff]
      %v2001 = vld [vmem:[%s593 + $0x48] sm:$0xff]
      %v2002 = vld [vmem:[%s593 + $0x50] sm:$0xff]
      %v2003 = vld [vmem:[%s593 + $0x58] sm:$0xff]
      %v2004 = vld [vmem:[%s593 + $0x60] sm:$0xff]
      %v2005 = vld [vmem:[%s593 + $0x68] sm:$0xff]
      %v2006 = vld [vmem:[%s593 + $0x70] sm:$0xff]
      %v2007 = vld [vmem:[%s593 + $0x78] sm:$0xff]
      %v2008 = vld [vmem:[%s593 + $0x80] sm:$0xff]
      %v2009 = vld [vmem:[%s593 + $0x88] sm:$0xff]
      %v2010 = vld [vmem:[%s593 + $0x90] sm:$0xff]
      %v2011 = vld [vmem:[%s593 + $0x98] sm:$0xff]
      %v2012 = vld [vmem:[%s593 + $0xa0] sm:$0xff]
      %v2013 = vld [vmem:[%s593 + $0xa8] sm:$0xff]
      %v2014 = vld [vmem:[%s593 + $0xb0] sm:$0xff]
      %v2015 = vld [vmem:[%s593 + $0xb8] sm:$0xff]
      %v2016 = vld [vmem:[%s593 + $0xc0] sm:$0xff]
      %v2017 = vld [vmem:[%s593 + $0xc8] sm:$0xff]
      %v2018 = vld [vmem:[%s593 + $0xd0] sm:$0xff]
      %v2019 = vld [vmem:[%s593 + $0xd8] sm:$0xff]
      %v2020 = vld [vmem:[%s593 + $0xe0] sm:$0xff]
      %v2021 = vld [vmem:[%s593 + $0xe8] sm:$0xff]
      %v2022 = vld [vmem:[%s593 + $0xf0] sm:$0xff]
      %v2023 = vld [vmem:[%s593 + $0xf8] sm:$0xff]
      %v2024 = vld [vmem:[%s593 + $0x100] sm:$0xff]
      %v2025 = vld [vmem:[%s593 + $0x108] sm:$0xff]
      %v2026 = vld [vmem:[%s593 + $0x110] sm:$0xff]
      %v2027 = vld [vmem:[%s593 + $0x118] sm:$0xff]
      %v2028 = vld [vmem:[%s593 + $0x120] sm:$0xff]
      %v2029 = vld [vmem:[%s593 + $0x128] sm:$0xff]
      %v2030 = vld [vmem:[%s593 + $0x130] sm:$0xff]
      %v2031 = vld [vmem:[%s593 + $0x138] sm:$0xff]
      %v2032 = vld [vmem:[%s593 + $0x140] sm:$0xff]
      %v2033 = vld [vmem:[%s593 + $0x148] sm:$0xff]
      %v2034 = vld [vmem:[%s593 + $0x150] sm:$0xff]
      %v2035 = vld [vmem:[%s593 + $0x158] sm:$0xff]
      %v2036 = vld [vmem:[%s593 + $0x160] sm:$0xff]
      %v2037 = vld [vmem:[%s593 + $0x168] sm:$0xff]
      %v2038 = vld [vmem:[%s593 + $0x170] sm:$0xff]
      %v2039 = vld [vmem:[%s593 + $0x178] sm:$0xff]
      %v2040 = vld [vmem:[%s593 + $0x180] sm:$0xff]
      %v2041 = vld [vmem:[%s593 + $0x188] sm:$0xff]
      %v2042 = vld [vmem:[%s593 + $0x190] sm:$0xff]
      %v2043 = vld [vmem:[%s593 + $0x198] sm:$0xff]
      %v2044 = vld [vmem:[%s593 + $0x1a0] sm:$0xff]
      %v2045 = vld [vmem:[%s593 + $0x1a8] sm:$0xff]
      %v2046 = vld [vmem:[%s593 + $0x1b0] sm:$0xff]
      %v2047 = vld [vmem:[%s593 + $0x1b8] sm:$0xff]
      %v2048 = vld [vmem:[%s593 + $0x1c0] sm:$0xff]
      %v2049 = vld [vmem:[%s593 + $0x1c8] sm:$0xff]
      %v2050 = vld [vmem:[%s593 + $0x1d0] sm:$0xff]
      %v2051 = vld [vmem:[%s593 + $0x1d8] sm:$0xff]
      %v2052 = vld [vmem:[%s593 + $0x1e0] sm:$0xff]
      %v2053 = vld [vmem:[%s593 + $0x1e8] sm:$0xff]
      %v2054 = vld [vmem:[%s593 + $0x1f0] sm:$0xff]
      %v2055 = vld [vmem:[%s593 + $0x1f8] sm:$0xff]
      %v2056 = vld [vmem:[%s593 + $0x200] sm:$0xff]
      %v2057 = vld [vmem:[%s593 + $0x208] sm:$0xff]
      %v2058 = vld [vmem:[%s593 + $0x210] sm:$0xff]
      %v2059 = vld [vmem:[%s593 + $0x218] sm:$0xff]
      %v2060 = vld [vmem:[%s593 + $0x220] sm:$0xff]
      %v2061 = vld [vmem:[%s593 + $0x228] sm:$0xff]
      %v2062 = vld [vmem:[%s593 + $0x230] sm:$0xff]
      %v2063 = vld [vmem:[%s593 + $0x238] sm:$0xff]
      %v2064 = vld [vmem:[%s593 + $0x240] sm:$0xff]
      %v2065 = vld [vmem:[%s593 + $0x248] sm:$0xff]
      %v2066 = vld [vmem:[%s593 + $0x250] sm:$0xff]
      %v2067 = vld [vmem:[%s593 + $0x258] sm:$0xff]
      %v2068 = vld [vmem:[%s593 + $0x260] sm:$0xff]
      %v2069 = vld [vmem:[%s593 + $0x268] sm:$0xff]
      %v2070 = vld [vmem:[%s593 + $0x270] sm:$0xff]
      %v2071 = vld [vmem:[%s593 + $0x278] sm:$0xff]
      %v2072 = vunpack.c.l.s8.bf16 %v1992
      %v2073 = vunpack.c.l.s8.bf16 %v1993
      %v2074 = vunpack.c.l.s8.bf16 %v1994
      %v2075 = vunpack.c.l.s8.bf16 %v1995
      %v2076 = vunpack.c.l.s8.bf16 %v1996
      %v2077 = vunpack.c.l.s8.bf16 %v1997
      %v2078 = vunpack.c.l.s8.bf16 %v1998
      %v2079 = vunpack.c.l.s8.bf16 %v1999
      %v2080 = vunpack.c.l.s8.bf16 %v2000
      %v2081 = vunpack.c.l.s8.bf16 %v2001
      %v2082 = vunpack.c.l.s8.bf16 %v2002
      %v2083 = vunpack.c.l.s8.bf16 %v2003
      %v2084 = vunpack.c.l.s8.bf16 %v2004
      %v2085 = vunpack.c.l.s8.bf16 %v2005
      %v2086 = vunpack.c.l.s8.bf16 %v2006
      %v2087 = vunpack.c.l.s8.bf16 %v2007
      %v2088 = vunpack.c.h.s8.bf16 %v1992
      %v2089 = vunpack.c.h.s8.bf16 %v1993
      %v2090 = vunpack.c.h.s8.bf16 %v1994
      %v2091 = vunpack.c.h.s8.bf16 %v1995
      %v2092 = vunpack.c.h.s8.bf16 %v1996
      %v2093 = vunpack.c.h.s8.bf16 %v1997
      %v2094 = vunpack.c.h.s8.bf16 %v1998
      %v2095 = vunpack.c.h.s8.bf16 %v1999
      %v2096 = vunpack.c.h.s8.bf16 %v2000
      %v2097 = vunpack.c.h.s8.bf16 %v2001
      %v2098 = vunpack.c.h.s8.bf16 %v2002
      %v2099 = vunpack.c.h.s8.bf16 %v2003
      %v2100 = vunpack.c.h.s8.bf16 %v2004
      %v2101 = vunpack.c.h.s8.bf16 %v2005
      %v2102 = vunpack.c.h.s8.bf16 %v2006
      %v2103 = vunpack.c.h.s8.bf16 %v2007
      %v2104 = vunpack.c.l.s8.bf16 %v2008
      %v2105 = vunpack.c.l.s8.bf16 %v2009
      %v2106 = vunpack.c.l.s8.bf16 %v2010
      %v2107 = vunpack.c.l.s8.bf16 %v2011
      %v2108 = vunpack.c.l.s8.bf16 %v2012
      %v2109 = vunpack.c.l.s8.bf16 %v2013
      %v2110 = vunpack.c.l.s8.bf16 %v2014
      %v2111 = vunpack.c.l.s8.bf16 %v2015
      %v2112 = vunpack.c.l.s8.bf16 %v2016
      %v2113 = vunpack.c.l.s8.bf16 %v2017
      %v2114 = vunpack.c.l.s8.bf16 %v2018
      %v2115 = vunpack.c.l.s8.bf16 %v2019
      %v2116 = vunpack.c.l.s8.bf16 %v2020
      %v2117 = vunpack.c.l.s8.bf16 %v2021
      %v2118 = vunpack.c.l.s8.bf16 %v2022
      %v2119 = vunpack.c.l.s8.bf16 %v2023
      %v2120 = vunpack.c.h.s8.bf16 %v2008
      %v2121 = vunpack.c.h.s8.bf16 %v2009
      %v2122 = vunpack.c.h.s8.bf16 %v2010
      %v2123 = vunpack.c.h.s8.bf16 %v2011
      %v2124 = vunpack.c.h.s8.bf16 %v2012
      %v2125 = vunpack.c.h.s8.bf16 %v2013
      %v2126 = vunpack.c.h.s8.bf16 %v2014
      %v2127 = vunpack.c.h.s8.bf16 %v2015
      %v2128 = vunpack.c.h.s8.bf16 %v2016
      %v2129 = vunpack.c.h.s8.bf16 %v2017
      %v2130 = vunpack.c.h.s8.bf16 %v2018
      %v2131 = vunpack.c.h.s8.bf16 %v2019
      %v2132 = vunpack.c.h.s8.bf16 %v2020
      %v2133 = vunpack.c.h.s8.bf16 %v2021
      %v2134 = vunpack.c.h.s8.bf16 %v2022
      %v2135 = vunpack.c.h.s8.bf16 %v2023
      %v2136 = vunpack.c.l.s8.bf16 %v2024
      %v2137 = vunpack.c.l.s8.bf16 %v2025
      %v2138 = vunpack.c.l.s8.bf16 %v2026
      %v2139 = vunpack.c.l.s8.bf16 %v2027
      %v2140 = vunpack.c.l.s8.bf16 %v2028
      %v2141 = vunpack.c.l.s8.bf16 %v2029
      %v2142 = vunpack.c.l.s8.bf16 %v2030
      %v2143 = vunpack.c.l.s8.bf16 %v2031
      %v2144 = vunpack.c.l.s8.bf16 %v2032
      %v2145 = vunpack.c.l.s8.bf16 %v2033
      %v2146 = vunpack.c.l.s8.bf16 %v2034
      %v2147 = vunpack.c.l.s8.bf16 %v2035
      %v2148 = vunpack.c.l.s8.bf16 %v2036
      %v2149 = vunpack.c.l.s8.bf16 %v2037
      %v2150 = vunpack.c.l.s8.bf16 %v2038
      %v2151 = vunpack.c.l.s8.bf16 %v2039
      %v2152 = vunpack.c.h.s8.bf16 %v2024
      %v2153 = vunpack.c.h.s8.bf16 %v2025
      %v2154 = vunpack.c.h.s8.bf16 %v2026
      %v2155 = vunpack.c.h.s8.bf16 %v2027
      %v2156 = vunpack.c.h.s8.bf16 %v2028
      %v2157 = vunpack.c.h.s8.bf16 %v2029
      %v2158 = vunpack.c.h.s8.bf16 %v2030
      %v2159 = vunpack.c.h.s8.bf16 %v2031
      %v2160 = vunpack.c.h.s8.bf16 %v2032
      %v2161 = vunpack.c.h.s8.bf16 %v2033
      %v2162 = vunpack.c.h.s8.bf16 %v2034
      %v2163 = vunpack.c.h.s8.bf16 %v2035
      %v2164 = vunpack.c.h.s8.bf16 %v2036
      %v2165 = vunpack.c.h.s8.bf16 %v2037
      %v2166 = vunpack.c.h.s8.bf16 %v2038
      %v2167 = vunpack.c.h.s8.bf16 %v2039
      %v2168 = vunpack.c.l.s8.bf16 %v2040
      %v2169 = vunpack.c.l.s8.bf16 %v2041
      %v2170 = vunpack.c.l.s8.bf16 %v2042
      %v2171 = vunpack.c.l.s8.bf16 %v2043
      %v2172 = vunpack.c.l.s8.bf16 %v2044
      %v2173 = vunpack.c.l.s8.bf16 %v2045
      %v2174 = vunpack.c.l.s8.bf16 %v2046
      %v2175 = vunpack.c.l.s8.bf16 %v2047
      %v2176 = vunpack.c.l.s8.bf16 %v2048
      %v2177 = vunpack.c.l.s8.bf16 %v2049
      %v2178 = vunpack.c.l.s8.bf16 %v2050
      %v2179 = vunpack.c.l.s8.bf16 %v2051
      %v2180 = vunpack.c.l.s8.bf16 %v2052
      %v2181 = vunpack.c.l.s8.bf16 %v2053
      %v2182 = vunpack.c.l.s8.bf16 %v2054
      %v2183 = vunpack.c.l.s8.bf16 %v2055
      %v2184 = vunpack.c.h.s8.bf16 %v2040
      %v2185 = vunpack.c.h.s8.bf16 %v2041
      %v2186 = vunpack.c.h.s8.bf16 %v2042
      %v2187 = vunpack.c.h.s8.bf16 %v2043
      %v2188 = vunpack.c.h.s8.bf16 %v2044
      %v2189 = vunpack.c.h.s8.bf16 %v2045
      %v2190 = vunpack.c.h.s8.bf16 %v2046
      %v2191 = vunpack.c.h.s8.bf16 %v2047
      %v2192 = vunpack.c.h.s8.bf16 %v2048
      %v2193 = vunpack.c.h.s8.bf16 %v2049
      %v2194 = vunpack.c.h.s8.bf16 %v2050
      %v2195 = vunpack.c.h.s8.bf16 %v2051
      %v2196 = vunpack.c.h.s8.bf16 %v2052
      %v2197 = vunpack.c.h.s8.bf16 %v2053
      %v2198 = vunpack.c.h.s8.bf16 %v2054
      %v2199 = vunpack.c.h.s8.bf16 %v2055
      %v2200 = vunpack.c.l.s8.bf16 %v2056
      %v2201 = vunpack.c.l.s8.bf16 %v2057
      %v2202 = vunpack.c.l.s8.bf16 %v2058
      %v2203 = vunpack.c.l.s8.bf16 %v2059
      %v2204 = vunpack.c.l.s8.bf16 %v2060
      %v2205 = vunpack.c.l.s8.bf16 %v2061
      %v2206 = vunpack.c.l.s8.bf16 %v2062
      %v2207 = vunpack.c.l.s8.bf16 %v2063
      %v2208 = vunpack.c.l.s8.bf16 %v2064
      %v2209 = vunpack.c.l.s8.bf16 %v2065
      %v2210 = vunpack.c.l.s8.bf16 %v2066
      %v2211 = vunpack.c.l.s8.bf16 %v2067
      %v2212 = vunpack.c.l.s8.bf16 %v2068
      %v2213 = vunpack.c.l.s8.bf16 %v2069
      %v2214 = vunpack.c.l.s8.bf16 %v2070
      %v2215 = vunpack.c.l.s8.bf16 %v2071
      %v2216 = vunpack.c.h.s8.bf16 %v2056
      %v2217 = vunpack.c.h.s8.bf16 %v2057
      %v2218 = vunpack.c.h.s8.bf16 %v2058
      %v2219 = vunpack.c.h.s8.bf16 %v2059
      %v2220 = vunpack.c.h.s8.bf16 %v2060
      %v2221 = vunpack.c.h.s8.bf16 %v2061
      %v2222 = vunpack.c.h.s8.bf16 %v2062
      %v2223 = vunpack.c.h.s8.bf16 %v2063
      %v2224 = vunpack.c.h.s8.bf16 %v2064
      %v2225 = vunpack.c.h.s8.bf16 %v2065
      %v2226 = vunpack.c.h.s8.bf16 %v2066
      %v2227 = vunpack.c.h.s8.bf16 %v2067
      %v2228 = vunpack.c.h.s8.bf16 %v2068
      %v2229 = vunpack.c.h.s8.bf16 %v2069
      %v2230 = vunpack.c.h.s8.bf16 %v2070
      %v2231 = vunpack.c.h.s8.bf16 %v2071
      %v2233 = vsel %vm1161, %v1991, 0
      %2235 = vmatprep.subr.bf16.mxu0 %v2073
      %2236 = vmatpush1.bf16.msra.mxu0 %v2072
      %2237 = vmatprep.subr.bf16.mxu0 %v2089
      %2238 = vmatpush1.bf16.msra.mxu0 %v2088
      %2239 = vmatprep.subr.bf16.mxu0 %v2105
      %2240 = vmatpush1.bf16.msra.mxu0 %v2104
      %2241 = vmatprep.subr.bf16.mxu0 %v2121
      %2242 = vmatpush1.bf16.msra.mxu0 %v2120
      %2243 = vmatprep.subr.bf16.mxu0 %v2137
      %2244 = vmatpush1.bf16.msra.mxu0 %v2136
      %2245 = vmatprep.subr.bf16.mxu0 %v2153
      %2246 = vmatpush1.bf16.msra.mxu0 %v2152
      %2247 = vmatprep.subr.bf16.mxu0 %v2169
      %2248 = vmatpush1.bf16.msra.mxu0 %v2168
      %2249 = vmatprep.subr.bf16.mxu0 %v2185
      %2250 = vmatpush1.bf16.msra.mxu0 %v2184
      %2251 = vmatprep.subr.bf16.mxu0 %v2201
      %2252 = vmatpush1.bf16.msra.mxu0 %v2200
      %2253 = vmatprep.subr.bf16.mxu0 %v2217
      %2254 = vmatpush1.bf16.msra.mxu0 %v2216
      %2255 = vmatprep.subr.bf16.mxu0 0
      %2256 = vmatpush1.bf16.msra.mxu0 0
      %2257 = vmatprep.subr.bf16.mxu0 0
      %2258 = vmatpush1.bf16.msra.mxu0 0
      %2259 = vmatprep.subr.bf16.mxu0 0
      %2260 = vmatpush1.bf16.msra.mxu0 0
      %2261 = vmatprep.subr.bf16.mxu0 0
      %2262 = vmatpush1.bf16.msra.mxu0 0
      %2263 = vmatprep.subr.bf16.mxu0 0
      %2264 = vmatpush1.bf16.msra.mxu0 0
      %2265 = vmatprep.subr.bf16.mxu0 0
      %2266 = vmatpush1.bf16.msra.mxu0 0
      %2267 = vmatprep.mubr.bf16.mxu0 %v2233
      %2268 = vmatmul.mubr.bf16.gmra.mrb[0].mxu0 %v1990
      %v2269 = vpop.f32.mrb[0].mxu0
      %v2270 = vadd.f32 0.0, %v2269
      %v2271 = vpop.f32.mrb[0].mxu0
      %v2272 = vadd.f32 0.0, %v2271
      %v2273 = vpop.f32.mrb[0].mxu0
      %v2274 = vadd.f32 0.0, %v2273
      %v2275 = vpop.f32.mrb[0].mxu0
      %v2276 = vadd.f32 0.0, %v2275
      %2277 = vdwg.mxu0
      %2278 = vmatprep.subr.bf16.mxu0 %v2075
      %2279 = vmatpush1.bf16.msra.mxu0 %v2074
      %2280 = vmatprep.subr.bf16.mxu0 %v2091
      %2281 = vmatpush1.bf16.msra.mxu0 %v2090
      %2282 = vmatprep.subr.bf16.mxu0 %v2107
      %2283 = vmatpush1.bf16.msra.mxu0 %v2106
      %2284 = vmatprep.subr.bf16.mxu0 %v2123
      %2285 = vmatpush1.bf16.msra.mxu0 %v2122
      %2286 = vmatprep.subr.bf16.mxu0 %v2139
      %2287 = vmatpush1.bf16.msra.mxu0 %v2138
      %2288 = vmatprep.subr.bf16.mxu0 %v2155
      %2289 = vmatpush1.bf16.msra.mxu0 %v2154
      %2290 = vmatprep.subr.bf16.mxu0 %v2171
      %2291 = vmatpush1.bf16.msra.mxu0 %v2170
      %2292 = vmatprep.subr.bf16.mxu0 %v2187
      %2293 = vmatpush1.bf16.msra.mxu0 %v2186
      %2294 = vmatprep.subr.bf16.mxu0 %v2203
      %2295 = vmatpush1.bf16.msra.mxu0 %v2202
      %2296 = vmatprep.subr.bf16.mxu0 %v2219
      %2297 = vmatpush1.bf16.msra.mxu0 %v2218
      %2298 = vmatprep.subr.bf16.mxu0 0
      %2299 = vmatpush1.bf16.msra.mxu0 0
      %2300 = vmatprep.subr.bf16.mxu0 0
      %2301 = vmatpush1.bf16.msra.mxu0 0
      %2302 = vmatprep.subr.bf16.mxu0 0
      %2303 = vmatpush1.bf16.msra.mxu0 0
      %2304 = vmatprep.subr.bf16.mxu0 0
      %2305 = vmatpush1.bf16.msra.mxu0 0
      %2306 = vmatprep.subr.bf16.mxu0 0
      %2307 = vmatpush1.bf16.msra.mxu0 0
      %2308 = vmatprep.subr.bf16.mxu0 0
      %2309 = vmatpush1.bf16.msra.mxu0 0
      %2310 = vmatprep.mubr.bf16.mxu0 %v2233
      %2311 = vmatmul.mubr.bf16.gmra.mrb[0].mxu0 %v1990
      %v2312 = vpop.f32.mrb[0].mxu0
      %v2313 = vadd.f32 0.0, %v2312
      %v2314 = vpop.f32.mrb[0].mxu0
      %v2315 = vadd.f32 0.0, %v2314
      %v2316 = vpop.f32.mrb[0].mxu0
      %v2317 = vadd.f32 0.0, %v2316
      %v2318 = vpop.f32.mrb[0].mxu0
      %v2319 = vadd.f32 0.0, %v2318
      %2320 = vdwg.mxu0
      %2321 = vmatprep.subr.bf16.mxu0 %v2077
      %2322 = vmatpush1.bf16.msra.mxu0 %v2076
      %2323 = vmatprep.subr.bf16.mxu0 %v2093
      %2324 = vmatpush1.bf16.msra.mxu0 %v2092
      %2325 = vmatprep.subr.bf16.mxu0 %v2109
      %2326 = vmatpush1.bf16.msra.mxu0 %v2108
      %2327 = vmatprep.subr.bf16.mxu0 %v2125
      %2328 = vmatpush1.bf16.msra.mxu0 %v2124
      %2329 = vmatprep.subr.bf16.mxu0 %v2141
      %2330 = vmatpush1.bf16.msra.mxu0 %v2140
      %2331 = vmatprep.subr.bf16.mxu0 %v2157
      %2332 = vmatpush1.bf16.msra.mxu0 %v2156
      %2333 = vmatprep.subr.bf16.mxu0 %v2173
      %2334 = vmatpush1.bf16.msra.mxu0 %v2172
      %2335 = vmatprep.subr.bf16.mxu0 %v2189
      %2336 = vmatpush1.bf16.msra.mxu0 %v2188
      %2337 = vmatprep.subr.bf16.mxu0 %v2205
      %2338 = vmatpush1.bf16.msra.mxu0 %v2204
      %2339 = vmatprep.subr.bf16.mxu0 %v2221
      %2340 = vmatpush1.bf16.msra.mxu0 %v2220
      %2341 = vmatprep.subr.bf16.mxu0 0
      %2342 = vmatpush1.bf16.msra.mxu0 0
      %2343 = vmatprep.subr.bf16.mxu0 0
      %2344 = vmatpush1.bf16.msra.mxu0 0
      %2345 = vmatprep.subr.bf16.mxu0 0
      %2346 = vmatpush1.bf16.msra.mxu0 0
      %2347 = vmatprep.subr.bf16.mxu0 0
      %2348 = vmatpush1.bf16.msra.mxu0 0
      %2349 = vmatprep.subr.bf16.mxu0 0
      %2350 = vmatpush1.bf16.msra.mxu0 0
      %2351 = vmatprep.subr.bf16.mxu0 0
      %2352 = vmatpush1.bf16.msra.mxu0 0
      %2353 = vmatprep.mubr.bf16.mxu0 %v2233
      %2354 = vmatmul.mubr.bf16.gmra.mrb[0].mxu0 %v1990
      %v2355 = vpop.f32.mrb[0].mxu0
      %v2356 = vadd.f32 0.0, %v2355
      %v2357 = vpop.f32.mrb[0].mxu0
      %v2358 = vadd.f32 0.0, %v2357
      %v2359 = vpop.f32.mrb[0].mxu0
      %v2360 = vadd.f32 0.0, %v2359
      %v2361 = vpop.f32.mrb[0].mxu0
      %v2362 = vadd.f32 0.0, %v2361
      %2363 = vdwg.mxu0
      %2364 = vmatprep.subr.bf16.mxu0 %v2079
      %2365 = vmatpush1.bf16.msra.mxu0 %v2078
      %2366 = vmatprep.subr.bf16.mxu0 %v2095
      %2367 = vmatpush1.bf16.msra.mxu0 %v2094
      %2368 = vmatprep.subr.bf16.mxu0 %v2111
      %2369 = vmatpush1.bf16.msra.mxu0 %v2110
      %2370 = vmatprep.subr.bf16.mxu0 %v2127
      %2371 = vmatpush1.bf16.msra.mxu0 %v2126
      %2372 = vmatprep.subr.bf16.mxu0 %v2143
      %2373 = vmatpush1.bf16.msra.mxu0 %v2142
      %2374 = vmatprep.subr.bf16.mxu0 %v2159
      %2375 = vmatpush1.bf16.msra.mxu0 %v2158
      %2376 = vmatprep.subr.bf16.mxu0 %v2175
      %2377 = vmatpush1.bf16.msra.mxu0 %v2174
      %2378 = vmatprep.subr.bf16.mxu0 %v2191
      %2379 = vmatpush1.bf16.msra.mxu0 %v2190
      %2380 = vmatprep.subr.bf16.mxu0 %v2207
      %2381 = vmatpush1.bf16.msra.mxu0 %v2206
      %2382 = vmatprep.subr.bf16.mxu0 %v2223
      %2383 = vmatpush1.bf16.msra.mxu0 %v2222
      %2384 = vmatprep.subr.bf16.mxu0 0
      %2385 = vmatpush1.bf16.msra.mxu0 0
      %2386 = vmatprep.subr.bf16.mxu0 0
      %2387 = vmatpush1.bf16.msra.mxu0 0
      %2388 = vmatprep.subr.bf16.mxu0 0
      %2389 = vmatpush1.bf16.msra.mxu0 0
      %2390 = vmatprep.subr.bf16.mxu0 0
      %2391 = vmatpush1.bf16.msra.mxu0 0
      %2392 = vmatprep.subr.bf16.mxu0 0
      %2393 = vmatpush1.bf16.msra.mxu0 0
      %2394 = vmatprep.subr.bf16.mxu0 0
      %2395 = vmatpush1.bf16.msra.mxu0 0
      %2396 = vmatprep.mubr.bf16.mxu0 %v2233
      %2397 = vmatmul.mubr.bf16.gmra.mrb[0].mxu0 %v1990
      %v2398 = vpop.f32.mrb[0].mxu0
      %v2399 = vadd.f32 0.0, %v2398
      %v2400 = vpop.f32.mrb[0].mxu0
      %v2401 = vadd.f32 0.0, %v2400
      %v2402 = vpop.f32.mrb[0].mxu0
      %v2403 = vadd.f32 0.0, %v2402
      %v2404 = vpop.f32.mrb[0].mxu0
      %v2405 = vadd.f32 0.0, %v2404
      %2406 = vdwg.mxu0
      %2407 = vmatprep.subr.bf16.mxu0 %v2081
      %2408 = vmatpush1.bf16.msra.mxu0 %v2080
      %2409 = vmatprep.subr.bf16.mxu0 %v2097
      %2410 = vmatpush1.bf16.msra.mxu0 %v2096
      %2411 = vmatprep.subr.bf16.mxu0 %v2113
      %2412 = vmatpush1.bf16.msra.mxu0 %v2112
      %2413 = vmatprep.subr.bf16.mxu0 %v2129
      %2414 = vmatpush1.bf16.msra.mxu0 %v2128
      %2415 = vmatprep.subr.bf16.mxu0 %v2145
      %2416 = vmatpush1.bf16.msra.mxu0 %v2144
      %2417 = vmatprep.subr.bf16.mxu0 %v2161
      %2418 = vmatpush1.bf16.msra.mxu0 %v2160
      %2419 = vmatprep.subr.bf16.mxu0 %v2177
      %2420 = vmatpush1.bf16.msra.mxu0 %v2176
      %2421 = vmatprep.subr.bf16.mxu0 %v2193
      %2422 = vmatpush1.bf16.msra.mxu0 %v2192
      %2423 = vmatprep.subr.bf16.mxu0 %v2209
      %2424 = vmatpush1.bf16.msra.mxu0 %v2208
      %2425 = vmatprep.subr.bf16.mxu0 %v2225
      %2426 = vmatpush1.bf16.msra.mxu0 %v2224
      %2427 = vmatprep.subr.bf16.mxu0 0
      %2428 = vmatpush1.bf16.msra.mxu0 0
      %2429 = vmatprep.subr.bf16.mxu0 0
      %2430 = vmatpush1.bf16.msra.mxu0 0
      %2431 = vmatprep.subr.bf16.mxu0 0
      %2432 = vmatpush1.bf16.msra.mxu0 0
      %2433 = vmatprep.subr.bf16.mxu0 0
      %2434 = vmatpush1.bf16.msra.mxu0 0
      %2435 = vmatprep.subr.bf16.mxu0 0
      %2436 = vmatpush1.bf16.msra.mxu0 0
      %2437 = vmatprep.subr.bf16.mxu0 0
      %2438 = vmatpush1.bf16.msra.mxu0 0
      %2439 = vmatprep.mubr.bf16.mxu0 %v2233
      %2440 = vmatmul.mubr.bf16.gmra.mrb[0].mxu0 %v1990
      %v2441 = vpop.f32.mrb[0].mxu0
      %v2442 = vadd.f32 0.0, %v2441
      %v2443 = vpop.f32.mrb[0].mxu0
      %v2444 = vadd.f32 0.0, %v2443
      %v2445 = vpop.f32.mrb[0].mxu0
      %v2446 = vadd.f32 0.0, %v2445
      %v2447 = vpop.f32.mrb[0].mxu0
      %v2448 = vadd.f32 0.0, %v2447
      %2449 = vdwg.mxu0
      %2450 = vmatprep.subr.bf16.mxu0 %v2083
      %2451 = vmatpush1.bf16.msra.mxu0 %v2082
      %2452 = vmatprep.subr.bf16.mxu0 %v2099
      %2453 = vmatpush1.bf16.msra.mxu0 %v2098
      %2454 = vmatprep.subr.bf16.mxu0 %v2115
      %2455 = vmatpush1.bf16.msra.mxu0 %v2114
      %2456 = vmatprep.subr.bf16.mxu0 %v2131
      %2457 = vmatpush1.bf16.msra.mxu0 %v2130
      %2458 = vmatprep.subr.bf16.mxu0 %v2147
      %2459 = vmatpush1.bf16.msra.mxu0 %v2146
      %2460 = vmatprep.subr.bf16.mxu0 %v2163
      %2461 = vmatpush1.bf16.msra.mxu0 %v2162
      %2462 = vmatprep.subr.bf16.mxu0 %v2179
      %2463 = vmatpush1.bf16.msra.mxu0 %v2178
      %2464 = vmatprep.subr.bf16.mxu0 %v2195
      %2465 = vmatpush1.bf16.msra.mxu0 %v2194
      %2466 = vmatprep.subr.bf16.mxu0 %v2211
      %2467 = vmatpush1.bf16.msra.mxu0 %v2210
      %2468 = vmatprep.subr.bf16.mxu0 %v2227
      %2469 = vmatpush1.bf16.msra.mxu0 %v2226
      %2470 = vmatprep.subr.bf16.mxu0 0
      %2471 = vmatpush1.bf16.msra.mxu0 0
      %2472 = vmatprep.subr.bf16.mxu0 0
      %2473 = vmatpush1.bf16.msra.mxu0 0
      %2474 = vmatprep.subr.bf16.mxu0 0
      %2475 = vmatpush1.bf16.msra.mxu0 0
      %2476 = vmatprep.subr.bf16.mxu0 0
      %2477 = vmatpush1.bf16.msra.mxu0 0
      %2478 = vmatprep.subr.bf16.mxu0 0
      %2479 = vmatpush1.bf16.msra.mxu0 0
      %2480 = vmatprep.subr.bf16.mxu0 0
      %2481 = vmatpush1.bf16.msra.mxu0 0
      %2482 = vmatprep.mubr.bf16.mxu0 %v2233
      %2483 = vmatmul.mubr.bf16.gmra.mrb[0].mxu0 %v1990
      %v2484 = vpop.f32.mrb[0].mxu0
      %v2485 = vadd.f32 0.0, %v2484
      %v2486 = vpop.f32.mrb[0].mxu0
      %v2487 = vadd.f32 0.0, %v2486
      %v2488 = vpop.f32.mrb[0].mxu0
      %v2489 = vadd.f32 0.0, %v2488
      %v2490 = vpop.f32.mrb[0].mxu0
      %v2491 = vadd.f32 0.0, %v2490
      %2492 = vdwg.mxu0
      %2493 = vmatprep.subr.bf16.mxu0 %v2085
      %2494 = vmatpush1.bf16.msra.mxu0 %v2084
      %2495 = vmatprep.subr.bf16.mxu0 %v2101
      %2496 = vmatpush1.bf16.msra.mxu0 %v2100
      %2497 = vmatprep.subr.bf16.mxu0 %v2117
      %2498 = vmatpush1.bf16.msra.mxu0 %v2116
      %2499 = vmatprep.subr.bf16.mxu0 %v2133
      %2500 = vmatpush1.bf16.msra.mxu0 %v2132
      %2501 = vmatprep.subr.bf16.mxu0 %v2149
      %2502 = vmatpush1.bf16.msra.mxu0 %v2148
      %2503 = vmatprep.subr.bf16.mxu0 %v2165
      %2504 = vmatpush1.bf16.msra.mxu0 %v2164
      %2505 = vmatprep.subr.bf16.mxu0 %v2181
      %2506 = vmatpush1.bf16.msra.mxu0 %v2180
      %2507 = vmatprep.subr.bf16.mxu0 %v2197
      %2508 = vmatpush1.bf16.msra.mxu0 %v2196
      %2509 = vmatprep.subr.bf16.mxu0 %v2213
      %2510 = vmatpush1.bf16.msra.mxu0 %v2212
      %2511 = vmatprep.subr.bf16.mxu0 %v2229
      %2512 = vmatpush1.bf16.msra.mxu0 %v2228
      %2513 = vmatprep.subr.bf16.mxu0 0
      %2514 = vmatpush1.bf16.msra.mxu0 0
      %2515 = vmatprep.subr.bf16.mxu0 0
      %2516 = vmatpush1.bf16.msra.mxu0 0
      %2517 = vmatprep.subr.bf16.mxu0 0
      %2518 = vmatpush1.bf16.msra.mxu0 0
      %2519 = vmatprep.subr.bf16.mxu0 0
      %2520 = vmatpush1.bf16.msra.mxu0 0
      %2521 = vmatprep.subr.bf16.mxu0 0
      %2522 = vmatpush1.bf16.msra.mxu0 0
      %2523 = vmatprep.subr.bf16.mxu0 0
      %2524 = vmatpush1.bf16.msra.mxu0 0
      %2525 = vmatprep.mubr.bf16.mxu0 %v2233
      %2526 = vmatmul.mubr.bf16.gmra.mrb[0].mxu0 %v1990
      %v2527 = vpop.f32.mrb[0].mxu0
      %v2528 = vadd.f32 0.0, %v2527
      %v2529 = vpop.f32.mrb[0].mxu0
      %v2530 = vadd.f32 0.0, %v2529
      %v2531 = vpop.f32.mrb[0].mxu0
      %v2532 = vadd.f32 0.0, %v2531
      %v2533 = vpop.f32.mrb[0].mxu0
      %v2534 = vadd.f32 0.0, %v2533
      %2535 = vdwg.mxu0
      %2536 = vmatprep.subr.bf16.mxu0 %v2087
      %2537 = vmatpush1.bf16.msra.mxu0 %v2086
      %2538 = vmatprep.subr.bf16.mxu0 %v2103
      %2539 = vmatpush1.bf16.msra.mxu0 %v2102
      %2540 = vmatprep.subr.bf16.mxu0 %v2119
      %2541 = vmatpush1.bf16.msra.mxu0 %v2118
      %2542 = vmatprep.subr.bf16.mxu0 %v2135
      %2543 = vmatpush1.bf16.msra.mxu0 %v2134
      %2544 = vmatprep.subr.bf16.mxu0 %v2151
      %2545 = vmatpush1.bf16.msra.mxu0 %v2150
      %2546 = vmatprep.subr.bf16.mxu0 %v2167
      %2547 = vmatpush1.bf16.msra.mxu0 %v2166
      %2548 = vmatprep.subr.bf16.mxu0 %v2183
      %2549 = vmatpush1.bf16.msra.mxu0 %v2182
      %2550 = vmatprep.subr.bf16.mxu0 %v2199
      %2551 = vmatpush1.bf16.msra.mxu0 %v2198
      %2552 = vmatprep.subr.bf16.mxu0 %v2215
      %2553 = vmatpush1.bf16.msra.mxu0 %v2214
      %2554 = vmatprep.subr.bf16.mxu0 %v2231
      %2555 = vmatpush1.bf16.msra.mxu0 %v2230
      %2556 = vmatprep.subr.bf16.mxu0 0
      %2557 = vmatpush1.bf16.msra.mxu0 0
      %2558 = vmatprep.subr.bf16.mxu0 0
      %2559 = vmatpush1.bf16.msra.mxu0 0
      %2560 = vmatprep.subr.bf16.mxu0 0
      %2561 = vmatpush1.bf16.msra.mxu0 0
      %2562 = vmatprep.subr.bf16.mxu0 0
      %2563 = vmatpush1.bf16.msra.mxu0 0
      %2564 = vmatprep.subr.bf16.mxu0 0
      %2565 = vmatpush1.bf16.msra.mxu0 0
      %2566 = vmatprep.subr.bf16.mxu0 0
      %2567 = vmatpush1.bf16.msra.mxu0 0
      %2568 = vmatprep.mubr.bf16.mxu0 %v2233
      %2569 = vmatmul.mubr.bf16.gmra.mrb[0].mxu0 %v1990
      %v2570 = vpop.f32.mrb[0].mxu0
      %v2571 = vadd.f32 0.0, %v2570
      %v2572 = vpop.f32.mrb[0].mxu0
      %v2573 = vadd.f32 0.0, %v2572
      %v2574 = vpop.f32.mrb[0].mxu0
      %v2575 = vadd.f32 0.0, %v2574
      %v2576 = vpop.f32.mrb[0].mxu0
      %v2577 = vadd.f32 0.0, %v2576
      %2578 = vdwg.mxu0
      %v2583 = vlaneseq
      %v2584 = vshrl.u32 %v2583, 7
      %v2585 = vsub.s32 0, %v2584
      %v2586 = vrot.slane %v1127, %v2585
      %v2587 = vlaneseq
      %v2588 = vshrl.u32 %v2587, 7
      %v2589 = vsub.s32 2, %v2588
      %v2590 = vrot.slane %v1127, %v2589
      %v2591 = vlaneseq
      %v2592 = vshrl.u32 %v2591, 7
      %v2593 = vsub.s32 4, %v2592
      %v2594 = vrot.slane %v1127, %v2593
      %v2595 = vlaneseq
      %v2596 = vshrl.u32 %v2595, 7
      %v2597 = vsub.s32 6, %v2596
      %v2598 = vrot.slane %v1127, %v2597
      %v2599 = vlaneseq
      %v2600 = vshrl.u32 %v2599, 7
      %v2601 = vsub.s32 0, %v2600
      %v2602 = vrot.slane %v1128, %v2601
      %v2603 = vlaneseq
      %v2604 = vshrl.u32 %v2603, 7
      %v2605 = vsub.s32 2, %v2604
      %v2606 = vrot.slane %v1128, %v2605
      %v2607 = vlaneseq
      %v2608 = vshrl.u32 %v2607, 7
      %v2609 = vsub.s32 4, %v2608
      %v2610 = vrot.slane %v1128, %v2609
      %v2611 = vlaneseq
      %v2612 = vshrl.u32 %v2611, 7
      %v2613 = vsub.s32 6, %v2612
      %v2614 = vrot.slane %v1128, %v2613
      %v2615 = vlaneseq
      %v2616 = vshrl.u32 %v2615, 7
      %v2617 = vsub.s32 0, %v2616
      %v2618 = vrot.slane %v1129, %v2617
      %v2619 = vlaneseq
      %v2620 = vshrl.u32 %v2619, 7
      %v2621 = vsub.s32 2, %v2620
      %v2622 = vrot.slane %v1129, %v2621
      %v2623 = vlaneseq
      %v2624 = vshrl.u32 %v2623, 7
      %v2625 = vsub.s32 4, %v2624
      %v2626 = vrot.slane %v1129, %v2625
      %v2627 = vlaneseq
      %v2628 = vshrl.u32 %v2627, 7
      %v2629 = vsub.s32 6, %v2628
      %v2630 = vrot.slane %v1129, %v2629
      %v2631 = vlaneseq
      %v2632 = vshrl.u32 %v2631, 7
      %v2633 = vsub.s32 0, %v2632
      %v2634 = vrot.slane %v1130, %v2633
      %v2635 = vlaneseq
      %v2636 = vshrl.u32 %v2635, 7
      %v2637 = vsub.s32 2, %v2636
      %v2638 = vrot.slane %v1130, %v2637
      %v2639 = vlaneseq
      %v2640 = vshrl.u32 %v2639, 7
      %v2641 = vsub.s32 4, %v2640
      %v2642 = vrot.slane %v1130, %v2641
      %v2643 = vlaneseq
      %v2644 = vshrl.u32 %v2643, 7
      %v2645 = vsub.s32 6, %v2644
      %v2646 = vrot.slane %v1130, %v2645
      %v2663 = vlaneseq
      %v2664 = vshrl.u32 %v2663, 7
      %v2665 = vsub.s32 0, %v2664
      %v2666 = vrot.slane %v2586, %v2665
      %v2667 = vlaneseq
      %v2668 = vshrl.u32 %v2667, 7
      %v2669 = vsub.s32 0, %v2668
      %v2670 = vrot.slane %v2590, %v2669
      %v2671 = vlaneseq
      %v2672 = vshrl.u32 %v2671, 7
      %v2673 = vsub.s32 0, %v2672
      %v2674 = vrot.slane %v2594, %v2673
      %v2675 = vlaneseq
      %v2676 = vshrl.u32 %v2675, 7
      %v2677 = vsub.s32 0, %v2676
      %v2678 = vrot.slane %v2598, %v2677
      %v2679 = vlaneseq
      %v2680 = vshrl.u32 %v2679, 7
      %v2681 = vsub.s32 0, %v2680
      %v2682 = vrot.slane %v2602, %v2681
      %v2683 = vlaneseq
      %v2684 = vshrl.u32 %v2683, 7
      %v2685 = vsub.s32 0, %v2684
      %v2686 = vrot.slane %v2606, %v2685
      %v2687 = vlaneseq
      %v2688 = vshrl.u32 %v2687, 7
      %v2689 = vsub.s32 0, %v2688
      %v2690 = vrot.slane %v2610, %v2689
      %v2691 = vlaneseq
      %v2692 = vshrl.u32 %v2691, 7
      %v2693 = vsub.s32 0, %v2692
      %v2694 = vrot.slane %v2614, %v2693
      %v2695 = vlaneseq
      %v2696 = vshrl.u32 %v2695, 7
      %v2697 = vsub.s32 0, %v2696
      %v2698 = vrot.slane %v2618, %v2697
      %v2699 = vlaneseq
      %v2700 = vshrl.u32 %v2699, 7
      %v2701 = vsub.s32 0, %v2700
      %v2702 = vrot.slane %v2622, %v2701
      %v2703 = vlaneseq
      %v2704 = vshrl.u32 %v2703, 7
      %v2705 = vsub.s32 0, %v2704
      %v2706 = vrot.slane %v2626, %v2705
      %v2707 = vlaneseq
      %v2708 = vshrl.u32 %v2707, 7
      %v2709 = vsub.s32 0, %v2708
      %v2710 = vrot.slane %v2630, %v2709
      %v2711 = vlaneseq
      %v2712 = vshrl.u32 %v2711, 7
      %v2713 = vsub.s32 0, %v2712
      %v2714 = vrot.slane %v2634, %v2713
      %v2715 = vlaneseq
      %v2716 = vshrl.u32 %v2715, 7
      %v2717 = vsub.s32 0, %v2716
      %v2718 = vrot.slane %v2638, %v2717
      %v2719 = vlaneseq
      %v2720 = vshrl.u32 %v2719, 7
      %v2721 = vsub.s32 0, %v2720
      %v2722 = vrot.slane %v2642, %v2721
      %v2723 = vlaneseq
      %v2724 = vshrl.u32 %v2723, 7
      %v2725 = vsub.s32 0, %v2724
      %v2726 = vrot.slane %v2646, %v2725
      %v2727 = vmul.f32 %v2270, %v2666
      %v2728 = vmul.f32 %v2272, %v2670
      %v2729 = vmul.f32 %v2313, %v2674
      %v2730 = vmul.f32 %v2315, %v2678
      %v2731 = vmul.f32 %v2356, %v2682
      %v2732 = vmul.f32 %v2358, %v2686
      %v2733 = vmul.f32 %v2399, %v2690
      %v2734 = vmul.f32 %v2401, %v2694
      %v2735 = vmul.f32 %v2442, %v2698
      %v2736 = vmul.f32 %v2444, %v2702
      %v2737 = vmul.f32 %v2485, %v2706
      %v2738 = vmul.f32 %v2487, %v2710
      %v2739 = vmul.f32 %v2528, %v2714
      %v2740 = vmul.f32 %v2530, %v2718
      %v2741 = vmul.f32 %v2571, %v2722
      %v2742 = vmul.f32 %v2573, %v2726
      %v2743 = vmul.f32 %v2274, %v2666
      %v2744 = vmul.f32 %v2276, %v2670
      %v2745 = vmul.f32 %v2317, %v2674
      %v2746 = vmul.f32 %v2319, %v2678
      %v2747 = vmul.f32 %v2360, %v2682
      %v2748 = vmul.f32 %v2362, %v2686
      %v2749 = vmul.f32 %v2403, %v2690
      %v2750 = vmul.f32 %v2405, %v2694
      %v2751 = vmul.f32 %v2446, %v2698
      %v2752 = vmul.f32 %v2448, %v2702
      %v2753 = vmul.f32 %v2489, %v2706
      %v2754 = vmul.f32 %v2491, %v2710
      %v2755 = vmul.f32 %v2532, %v2714
      %v2756 = vmul.f32 %v2534, %v2718
      %v2757 = vmul.f32 %v2575, %v2722
      %v2758 = vmul.f32 %v2577, %v2726
      %v2759 = vlaneseq
      %v2760 = vshrl.u32 %v2759, 7
      %v2761 = vsub.s32 1, %v2760
      %v2762 = vrot.slane %v1127, %v2761
      %v2763 = vlaneseq
      %v2764 = vshrl.u32 %v2763, 7
      %v2765 = vsub.s32 3, %v2764
      %v2766 = vrot.slane %v1127, %v2765
      %v2767 = vlaneseq
      %v2768 = vshrl.u32 %v2767, 7
      %v2769 = vsub.s32 5, %v2768
      %v2770 = vrot.slane %v1127, %v2769
      %v2771 = vlaneseq
      %v2772 = vshrl.u32 %v2771, 7
      %v2773 = vsub.s32 7, %v2772
      %v2774 = vrot.slane %v1127, %v2773
      %v2775 = vlaneseq
      %v2776 = vshrl.u32 %v2775, 7
      %v2777 = vsub.s32 1, %v2776
      %v2778 = vrot.slane %v1128, %v2777
      %v2779 = vlaneseq
      %v2780 = vshrl.u32 %v2779, 7
      %v2781 = vsub.s32 3, %v2780
      %v2782 = vrot.slane %v1128, %v2781
      %v2783 = vlaneseq
      %v2784 = vshrl.u32 %v2783, 7
      %v2785 = vsub.s32 5, %v2784
      %v2786 = vrot.slane %v1128, %v2785
      %v2787 = vlaneseq
      %v2788 = vshrl.u32 %v2787, 7
      %v2789 = vsub.s32 7, %v2788
      %v2790 = vrot.slane %v1128, %v2789
      %v2791 = vlaneseq
      %v2792 = vshrl.u32 %v2791, 7
      %v2793 = vsub.s32 1, %v2792
      %v2794 = vrot.slane %v1129, %v2793
      %v2795 = vlaneseq
      %v2796 = vshrl.u32 %v2795, 7
      %v2797 = vsub.s32 3, %v2796
      %v2798 = vrot.slane %v1129, %v2797
      %v2799 = vlaneseq
      %v2800 = vshrl.u32 %v2799, 7
      %v2801 = vsub.s32 5, %v2800
      %v2802 = vrot.slane %v1129, %v2801
      %v2803 = vlaneseq
      %v2804 = vshrl.u32 %v2803, 7
      %v2805 = vsub.s32 7, %v2804
      %v2806 = vrot.slane %v1129, %v2805
      %v2807 = vlaneseq
      %v2808 = vshrl.u32 %v2807, 7
      %v2809 = vsub.s32 1, %v2808
      %v2810 = vrot.slane %v1130, %v2809
      %v2811 = vlaneseq
      %v2812 = vshrl.u32 %v2811, 7
      %v2813 = vsub.s32 3, %v2812
      %v2814 = vrot.slane %v1130, %v2813
      %v2815 = vlaneseq
      %v2816 = vshrl.u32 %v2815, 7
      %v2817 = vsub.s32 5, %v2816
      %v2818 = vrot.slane %v1130, %v2817
      %v2819 = vlaneseq
      %v2820 = vshrl.u32 %v2819, 7
      %v2821 = vsub.s32 7, %v2820
      %v2822 = vrot.slane %v1130, %v2821
      %v2839 = vlaneseq
      %v2840 = vshrl.u32 %v2839, 7
      %v2841 = vsub.s32 1, %v2840
      %v2842 = vrot.slane %v2762, %v2841
      %v2843 = vlaneseq
      %v2844 = vshrl.u32 %v2843, 7
      %v2845 = vsub.s32 1, %v2844
      %v2846 = vrot.slane %v2766, %v2845
      %v2847 = vlaneseq
      %v2848 = vshrl.u32 %v2847, 7
      %v2849 = vsub.s32 1, %v2848
      %v2850 = vrot.slane %v2770, %v2849
      %v2851 = vlaneseq
      %v2852 = vshrl.u32 %v2851, 7
      %v2853 = vsub.s32 1, %v2852
      %v2854 = vrot.slane %v2774, %v2853
      %v2855 = vlaneseq
      %v2856 = vshrl.u32 %v2855, 7
      %v2857 = vsub.s32 1, %v2856
      %v2858 = vrot.slane %v2778, %v2857
      %v2859 = vlaneseq
      %v2860 = vshrl.u32 %v2859, 7
      %v2861 = vsub.s32 1, %v2860
      %v2862 = vrot.slane %v2782, %v2861
      %v2863 = vlaneseq
      %v2864 = vshrl.u32 %v2863, 7
      %v2865 = vsub.s32 1, %v2864
      %v2866 = vrot.slane %v2786, %v2865
      %v2867 = vlaneseq
      %v2868 = vshrl.u32 %v2867, 7
      %v2869 = vsub.s32 1, %v2868
      %v2870 = vrot.slane %v2790, %v2869
      %v2871 = vlaneseq
      %v2872 = vshrl.u32 %v2871, 7
      %v2873 = vsub.s32 1, %v2872
      %v2874 = vrot.slane %v2794, %v2873
      %v2875 = vlaneseq
      %v2876 = vshrl.u32 %v2875, 7
      %v2877 = vsub.s32 1, %v2876
      %v2878 = vrot.slane %v2798, %v2877
      %v2879 = vlaneseq
      %v2880 = vshrl.u32 %v2879, 7
      %v2881 = vsub.s32 1, %v2880
      %v2882 = vrot.slane %v2802, %v2881
      %v2883 = vlaneseq
      %v2884 = vshrl.u32 %v2883, 7
      %v2885 = vsub.s32 1, %v2884
      %v2886 = vrot.slane %v2806, %v2885
      %v2887 = vlaneseq
      %v2888 = vshrl.u32 %v2887, 7
      %v2889 = vsub.s32 1, %v2888
      %v2890 = vrot.slane %v2810, %v2889
      %v2891 = vlaneseq
      %v2892 = vshrl.u32 %v2891, 7
      %v2893 = vsub.s32 1, %v2892
      %v2894 = vrot.slane %v2814, %v2893
      %v2895 = vlaneseq
      %v2896 = vshrl.u32 %v2895, 7
      %v2897 = vsub.s32 1, %v2896
      %v2898 = vrot.slane %v2818, %v2897
      %v2899 = vlaneseq
      %v2900 = vshrl.u32 %v2899, 7
      %v2901 = vsub.s32 1, %v2900
      %v2902 = vrot.slane %v2822, %v2901
      %v2903 = vadd.f32 %v2727, %v2842
      %v2904 = vadd.f32 %v2728, %v2846
      %v2905 = vadd.f32 %v2729, %v2850
      %v2906 = vadd.f32 %v2730, %v2854
      %v2907 = vadd.f32 %v2731, %v2858
      %v2908 = vadd.f32 %v2732, %v2862
      %v2909 = vadd.f32 %v2733, %v2866
      %v2910 = vadd.f32 %v2734, %v2870
      %v2911 = vadd.f32 %v2735, %v2874
      %v2912 = vadd.f32 %v2736, %v2878
      %v2913 = vadd.f32 %v2737, %v2882
      %v2914 = vadd.f32 %v2738, %v2886
      %v2915 = vadd.f32 %v2739, %v2890
      %v2916 = vadd.f32 %v2740, %v2894
      %v2917 = vadd.f32 %v2741, %v2898
      %v2918 = vadd.f32 %v2742, %v2902
      %v2919 = vadd.f32 %v2743, %v2842
      %v2920 = vadd.f32 %v2744, %v2846
      %v2921 = vadd.f32 %v2745, %v2850
      %v2922 = vadd.f32 %v2746, %v2854
      %v2923 = vadd.f32 %v2747, %v2858
      %v2924 = vadd.f32 %v2748, %v2862
      %v2925 = vadd.f32 %v2749, %v2866
      %v2926 = vadd.f32 %v2750, %v2870
      %v2927 = vadd.f32 %v2751, %v2874
      %v2928 = vadd.f32 %v2752, %v2878
      %v2929 = vadd.f32 %v2753, %v2882
      %v2930 = vadd.f32 %v2754, %v2886
      %v2931 = vadd.f32 %v2755, %v2890
      %v2932 = vadd.f32 %v2756, %v2894
      %v2933 = vadd.f32 %v2757, %v2898
      %v2934 = vadd.f32 %v2758, %v2902
      %v2935 = vmax.f32 %v2903, 0.0
      %v2936 = vmax.f32 %v2904, 0.0
      %v2937 = vmax.f32 %v2905, 0.0
      %v2938 = vmax.f32 %v2906, 0.0
      %v2939 = vmax.f32 %v2907, 0.0
      %v2940 = vmax.f32 %v2908, 0.0
      %v2941 = vmax.f32 %v2909, 0.0
      %v2942 = vmax.f32 %v2910, 0.0
      %v2943 = vmax.f32 %v2911, 0.0
      %v2944 = vmax.f32 %v2912, 0.0
      %v2945 = vmax.f32 %v2913, 0.0
      %v2946 = vmax.f32 %v2914, 0.0
      %v2947 = vmax.f32 %v2915, 0.0
      %v2948 = vmax.f32 %v2916, 0.0
      %v2949 = vmax.f32 %v2917, 0.0
      %v2950 = vmax.f32 %v2918, 0.0
      %v2951 = vmax.f32 %v2919, 0.0
      %v2952 = vmax.f32 %v2920, 0.0
      %v2953 = vmax.f32 %v2921, 0.0
      %v2954 = vmax.f32 %v2922, 0.0
      %v2955 = vmax.f32 %v2923, 0.0
      %v2956 = vmax.f32 %v2924, 0.0
      %v2957 = vmax.f32 %v2925, 0.0
      %v2958 = vmax.f32 %v2926, 0.0
      %v2959 = vmax.f32 %v2927, 0.0
      %v2960 = vmax.f32 %v2928, 0.0
      %v2961 = vmax.f32 %v2929, 0.0
      %v2962 = vmax.f32 %v2930, 0.0
      %v2963 = vmax.f32 %v2931, 0.0
      %v2964 = vmax.f32 %v2932, 0.0
      %v2965 = vmax.f32 %v2933, 0.0
      %v2966 = vmax.f32 %v2934, 0.0
      %v2967 = vpack.c.bf16 %v2951, %v2935
      %v2968 = vpack.c.bf16 %v2952, %v2936
      %v2969 = vpack.c.bf16 %v2953, %v2937
      %v2970 = vpack.c.bf16 %v2954, %v2938
      %v2971 = vpack.c.bf16 %v2955, %v2939
      %v2972 = vpack.c.bf16 %v2956, %v2940
      %v2973 = vpack.c.bf16 %v2957, %v2941
      %v2974 = vpack.c.bf16 %v2958, %v2942
      %v2975 = vpack.c.bf16 %v2959, %v2943
      %v2976 = vpack.c.bf16 %v2960, %v2944
      %v2977 = vpack.c.bf16 %v2961, %v2945
      %v2978 = vpack.c.bf16 %v2962, %v2946
      %v2979 = vpack.c.bf16 %v2963, %v2947
      %v2980 = vpack.c.bf16 %v2964, %v2948
      %v2981 = vpack.c.bf16 %v2965, %v2949
      %v2982 = vpack.c.bf16 %v2966, %v2950
      %v2983 = vld [vmem:[%s598] sm:$0xff]
      %v2984 = vld [vmem:[%s598 + $0x8] sm:$0xff]
      %v2985 = vld [vmem:[%s598 + $0x10] sm:$0xff]
      %v2986 = vld [vmem:[%s598 + $0x18] sm:$0xff]
      %v2987 = vld [vmem:[%s598 + $0x20] sm:$0xff]
      %v2988 = vld [vmem:[%s598 + $0x28] sm:$0xff]
      %v2989 = vld [vmem:[%s598 + $0x30] sm:$0xff]
      %v2990 = vld [vmem:[%s598 + $0x38] sm:$0xff]
      %v2991 = vld [vmem:[%s598 + $0x40] sm:$0xff]
      %v2992 = vld [vmem:[%s598 + $0x48] sm:$0xff]
      %v2993 = vld [vmem:[%s598 + $0x50] sm:$0xff]
      %v2994 = vld [vmem:[%s598 + $0x58] sm:$0xff]
      %v2995 = vld [vmem:[%s598 + $0x60] sm:$0xff]
      %v2996 = vld [vmem:[%s598 + $0x68] sm:$0xff]
      %v2997 = vld [vmem:[%s598 + $0x70] sm:$0xff]
      %v2998 = vld [vmem:[%s598 + $0x78] sm:$0xff]
      %v2999 = vld [vmem:[%s598 + $0x80] sm:$0xff]
      %v3000 = vld [vmem:[%s598 + $0x88] sm:$0xff]
      %v3001 = vld [vmem:[%s598 + $0x90] sm:$0xff]
      %v3002 = vld [vmem:[%s598 + $0x98] sm:$0xff]
      %v3003 = vld [vmem:[%s598 + $0xa0] sm:$0xff]
      %v3004 = vld [vmem:[%s598 + $0xa8] sm:$0xff]
      %v3005 = vld [vmem:[%s598 + $0xb0] sm:$0xff]
      %v3006 = vld [vmem:[%s598 + $0xb8] sm:$0xff]
      %v3007 = vld [vmem:[%s598 + $0xc0] sm:$0xff]
      %v3008 = vld [vmem:[%s598 + $0xc8] sm:$0xff]
      %v3009 = vld [vmem:[%s598 + $0xd0] sm:$0xff]
      %v3010 = vld [vmem:[%s598 + $0xd8] sm:$0xff]
      %v3011 = vld [vmem:[%s598 + $0xe0] sm:$0xff]
      %v3012 = vld [vmem:[%s598 + $0xe8] sm:$0xff]
      %v3013 = vld [vmem:[%s598 + $0xf0] sm:$0xff]
      %v3014 = vld [vmem:[%s598 + $0xf8] sm:$0xff]
      %v3015 = vld [vmem:[%s598 + $0x100] sm:$0xff]
      %v3016 = vld [vmem:[%s598 + $0x108] sm:$0xff]
      %v3017 = vld [vmem:[%s598 + $0x110] sm:$0xff]
      %v3018 = vld [vmem:[%s598 + $0x118] sm:$0xff]
      %v3019 = vld [vmem:[%s598 + $0x120] sm:$0xff]
      %v3020 = vld [vmem:[%s598 + $0x128] sm:$0xff]
      %v3021 = vld [vmem:[%s598 + $0x130] sm:$0xff]
      %v3022 = vld [vmem:[%s598 + $0x138] sm:$0xff]
      %v3023 = vld [vmem:[%s598 + $0x140] sm:$0xff]
      %v3024 = vld [vmem:[%s598 + $0x148] sm:$0xff]
      %v3025 = vld [vmem:[%s598 + $0x150] sm:$0xff]
      %v3026 = vld [vmem:[%s598 + $0x158] sm:$0xff]
      %v3027 = vld [vmem:[%s598 + $0x160] sm:$0xff]
      %v3028 = vld [vmem:[%s598 + $0x168] sm:$0xff]
      %v3029 = vld [vmem:[%s598 + $0x170] sm:$0xff]
      %v3030 = vld [vmem:[%s598 + $0x178] sm:$0xff]
      %v3031 = vld [vmem:[%s598 + $0x180] sm:$0xff]
      %v3032 = vld [vmem:[%s598 + $0x188] sm:$0xff]
      %v3033 = vld [vmem:[%s598 + $0x190] sm:$0xff]
      %v3034 = vld [vmem:[%s598 + $0x198] sm:$0xff]
      %v3035 = vld [vmem:[%s598 + $0x1a0] sm:$0xff]
      %v3036 = vld [vmem:[%s598 + $0x1a8] sm:$0xff]
      %v3037 = vld [vmem:[%s598 + $0x1b0] sm:$0xff]
      %v3038 = vld [vmem:[%s598 + $0x1b8] sm:$0xff]
      %v3039 = vld [vmem:[%s598 + $0x1c0] sm:$0xff]
      %v3040 = vld [vmem:[%s598 + $0x1c8] sm:$0xff]
      %v3041 = vld [vmem:[%s598 + $0x1d0] sm:$0xff]
      %v3042 = vld [vmem:[%s598 + $0x1d8] sm:$0xff]
      %v3043 = vld [vmem:[%s598 + $0x1e0] sm:$0xff]
      %v3044 = vld [vmem:[%s598 + $0x1e8] sm:$0xff]
      %v3045 = vld [vmem:[%s598 + $0x1f0] sm:$0xff]
      %v3046 = vld [vmem:[%s598 + $0x1f8] sm:$0xff]
      %v3047 = vld [vmem:[%s598 + $0x200] sm:$0xff]
      %v3048 = vld [vmem:[%s598 + $0x208] sm:$0xff]
      %v3049 = vld [vmem:[%s598 + $0x210] sm:$0xff]
      %v3050 = vld [vmem:[%s598 + $0x218] sm:$0xff]
      %v3051 = vld [vmem:[%s598 + $0x220] sm:$0xff]
      %v3052 = vld [vmem:[%s598 + $0x228] sm:$0xff]
      %v3053 = vld [vmem:[%s598 + $0x230] sm:$0xff]
      %v3054 = vld [vmem:[%s598 + $0x238] sm:$0xff]
      %v3055 = vld [vmem:[%s598 + $0x240] sm:$0xff]
      %v3056 = vld [vmem:[%s598 + $0x248] sm:$0xff]
      %v3057 = vld [vmem:[%s598 + $0x250] sm:$0xff]
      %v3058 = vld [vmem:[%s598 + $0x258] sm:$0xff]
      %v3059 = vld [vmem:[%s598 + $0x260] sm:$0xff]
      %v3060 = vld [vmem:[%s598 + $0x268] sm:$0xff]
      %v3061 = vld [vmem:[%s598 + $0x270] sm:$0xff]
      %v3062 = vld [vmem:[%s598 + $0x278] sm:$0xff]
      %v3063 = vld [vmem:[%s598 + $0x280] sm:$0xff]
      %v3064 = vld [vmem:[%s598 + $0x288] sm:$0xff]
      %v3065 = vld [vmem:[%s598 + $0x290] sm:$0xff]
      %v3066 = vld [vmem:[%s598 + $0x298] sm:$0xff]
      %v3067 = vld [vmem:[%s598 + $0x2a0] sm:$0xff]
      %v3068 = vld [vmem:[%s598 + $0x2a8] sm:$0xff]
      %v3069 = vld [vmem:[%s598 + $0x2b0] sm:$0xff]
      %v3070 = vld [vmem:[%s598 + $0x2b8] sm:$0xff]
      %v3071 = vld [vmem:[%s598 + $0x2c0] sm:$0xff]
      %v3072 = vld [vmem:[%s598 + $0x2c8] sm:$0xff]
      %v3073 = vld [vmem:[%s598 + $0x2d0] sm:$0xff]
      %v3074 = vld [vmem:[%s598 + $0x2d8] sm:$0xff]
      %v3075 = vld [vmem:[%s598 + $0x2e0] sm:$0xff]
      %v3076 = vld [vmem:[%s598 + $0x2e8] sm:$0xff]
      %v3077 = vld [vmem:[%s598 + $0x2f0] sm:$0xff]
      %v3078 = vld [vmem:[%s598 + $0x2f8] sm:$0xff]
      %v3079 = vld [vmem:[%s598 + $0x300] sm:$0xff]
      %v3080 = vld [vmem:[%s598 + $0x308] sm:$0xff]
      %v3081 = vld [vmem:[%s598 + $0x310] sm:$0xff]
      %v3082 = vld [vmem:[%s598 + $0x318] sm:$0xff]
      %v3083 = vld [vmem:[%s598 + $0x320] sm:$0xff]
      %v3084 = vld [vmem:[%s598 + $0x328] sm:$0xff]
      %v3085 = vld [vmem:[%s598 + $0x330] sm:$0xff]
      %v3086 = vld [vmem:[%s598 + $0x338] sm:$0xff]
      %v3087 = vld [vmem:[%s598 + $0x340] sm:$0xff]
      %v3088 = vld [vmem:[%s598 + $0x348] sm:$0xff]
      %v3089 = vld [vmem:[%s598 + $0x350] sm:$0xff]
      %v3090 = vld [vmem:[%s598 + $0x358] sm:$0xff]
      %v3091 = vld [vmem:[%s598 + $0x360] sm:$0xff]
      %v3092 = vld [vmem:[%s598 + $0x368] sm:$0xff]
      %v3093 = vld [vmem:[%s598 + $0x370] sm:$0xff]
      %v3094 = vld [vmem:[%s598 + $0x378] sm:$0xff]
      %v3095 = vld [vmem:[%s598 + $0x380] sm:$0xff]
      %v3096 = vld [vmem:[%s598 + $0x388] sm:$0xff]
      %v3097 = vld [vmem:[%s598 + $0x390] sm:$0xff]
      %v3098 = vld [vmem:[%s598 + $0x398] sm:$0xff]
      %v3099 = vld [vmem:[%s598 + $0x3a0] sm:$0xff]
      %v3100 = vld [vmem:[%s598 + $0x3a8] sm:$0xff]
      %v3101 = vld [vmem:[%s598 + $0x3b0] sm:$0xff]
      %v3102 = vld [vmem:[%s598 + $0x3b8] sm:$0xff]
      %v3103 = vld [vmem:[%s598 + $0x3c0] sm:$0xff]
      %v3104 = vld [vmem:[%s598 + $0x3c8] sm:$0xff]
      %v3105 = vld [vmem:[%s598 + $0x3d0] sm:$0xff]
      %v3106 = vld [vmem:[%s598 + $0x3d8] sm:$0xff]
      %v3107 = vld [vmem:[%s598 + $0x3e0] sm:$0xff]
      %v3108 = vld [vmem:[%s598 + $0x3e8] sm:$0xff]
      %v3109 = vld [vmem:[%s598 + $0x3f0] sm:$0xff]
      %v3110 = vld [vmem:[%s598 + $0x3f8] sm:$0xff]
      %v3111 = vunpack.c.l.s8.bf16 %v2983
      %v3112 = vunpack.c.l.s8.bf16 %v2984
      %v3113 = vunpack.c.h.s8.bf16 %v2983
      %v3114 = vunpack.c.h.s8.bf16 %v2984
      %v3115 = vunpack.c.l.s8.bf16 %v2985
      %v3116 = vunpack.c.l.s8.bf16 %v2986
      %v3117 = vunpack.c.h.s8.bf16 %v2985
      %v3118 = vunpack.c.h.s8.bf16 %v2986
      %v3119 = vunpack.c.l.s8.bf16 %v2987
      %v3120 = vunpack.c.l.s8.bf16 %v2988
      %v3121 = vunpack.c.h.s8.bf16 %v2987
      %v3122 = vunpack.c.h.s8.bf16 %v2988
      %v3123 = vunpack.c.l.s8.bf16 %v2989
      %v3124 = vunpack.c.l.s8.bf16 %v2990
      %v3125 = vunpack.c.h.s8.bf16 %v2989
      %v3126 = vunpack.c.h.s8.bf16 %v2990
      %v3127 = vunpack.c.l.s8.bf16 %v2991
      %v3128 = vunpack.c.l.s8.bf16 %v2992
      %v3129 = vunpack.c.h.s8.bf16 %v2991
      %v3130 = vunpack.c.h.s8.bf16 %v2992
      %v3131 = vunpack.c.l.s8.bf16 %v2993
      %v3132 = vunpack.c.l.s8.bf16 %v2994
      %v3133 = vunpack.c.h.s8.bf16 %v2993
      %v3134 = vunpack.c.h.s8.bf16 %v2994
      %v3135 = vunpack.c.l.s8.bf16 %v2995
      %v3136 = vunpack.c.l.s8.bf16 %v2996
      %v3137 = vunpack.c.h.s8.bf16 %v2995
      %v3138 = vunpack.c.h.s8.bf16 %v2996
      %v3139 = vunpack.c.l.s8.bf16 %v2997
      %v3140 = vunpack.c.l.s8.bf16 %v2998
      %v3141 = vunpack.c.h.s8.bf16 %v2997
      %v3142 = vunpack.c.h.s8.bf16 %v2998
      %v3143 = vunpack.c.l.s8.bf16 %v2999
      %v3144 = vunpack.c.l.s8.bf16 %v3000
      %v3145 = vunpack.c.h.s8.bf16 %v2999
      %v3146 = vunpack.c.h.s8.bf16 %v3000
      %v3147 = vunpack.c.l.s8.bf16 %v3001
      %v3148 = vunpack.c.l.s8.bf16 %v3002
      %v3149 = vunpack.c.h.s8.bf16 %v3001
      %v3150 = vunpack.c.h.s8.bf16 %v3002
      %v3151 = vunpack.c.l.s8.bf16 %v3003
      %v3152 = vunpack.c.l.s8.bf16 %v3004
      %v3153 = vunpack.c.h.s8.bf16 %v3003
      %v3154 = vunpack.c.h.s8.bf16 %v3004
      %v3155 = vunpack.c.l.s8.bf16 %v3005
      %v3156 = vunpack.c.l.s8.bf16 %v3006
      %v3157 = vunpack.c.h.s8.bf16 %v3005
      %v3158 = vunpack.c.h.s8.bf16 %v3006
      %v3159 = vunpack.c.l.s8.bf16 %v3007
      %v3160 = vunpack.c.l.s8.bf16 %v3008
      %v3161 = vunpack.c.h.s8.bf16 %v3007
      %v3162 = vunpack.c.h.s8.bf16 %v3008
      %v3163 = vunpack.c.l.s8.bf16 %v3009
      %v3164 = vunpack.c.l.s8.bf16 %v3010
      %v3165 = vunpack.c.h.s8.bf16 %v3009
      %v3166 = vunpack.c.h.s8.bf16 %v3010
      %v3167 = vunpack.c.l.s8.bf16 %v3011
      %v3168 = vunpack.c.l.s8.bf16 %v3012
      %v3169 = vunpack.c.h.s8.bf16 %v3011
      %v3170 = vunpack.c.h.s8.bf16 %v3012
      %v3171 = vunpack.c.l.s8.bf16 %v3013
      %v3172 = vunpack.c.l.s8.bf16 %v3014
      %v3173 = vunpack.c.h.s8.bf16 %v3013
      %v3174 = vunpack.c.h.s8.bf16 %v3014
      %v3175 = vunpack.c.l.s8.bf16 %v3015
      %v3176 = vunpack.c.l.s8.bf16 %v3016
      %v3177 = vunpack.c.h.s8.bf16 %v3015
      %v3178 = vunpack.c.h.s8.bf16 %v3016
      %v3179 = vunpack.c.l.s8.bf16 %v3017
      %v3180 = vunpack.c.l.s8.bf16 %v3018
      %v3181 = vunpack.c.h.s8.bf16 %v3017
      %v3182 = vunpack.c.h.s8.bf16 %v3018
      %v3183 = vunpack.c.l.s8.bf16 %v3019
      %v3184 = vunpack.c.l.s8.bf16 %v3020
      %v3185 = vunpack.c.h.s8.bf16 %v3019
      %v3186 = vunpack.c.h.s8.bf16 %v3020
      %v3187 = vunpack.c.l.s8.bf16 %v3021
      %v3188 = vunpack.c.l.s8.bf16 %v3022
      %v3189 = vunpack.c.h.s8.bf16 %v3021
      %v3190 = vunpack.c.h.s8.bf16 %v3022
      %v3191 = vunpack.c.l.s8.bf16 %v3023
      %v3192 = vunpack.c.l.s8.bf16 %v3024
      %v3193 = vunpack.c.h.s8.bf16 %v3023
      %v3194 = vunpack.c.h.s8.bf16 %v3024
      %v3195 = vunpack.c.l.s8.bf16 %v3025
      %v3196 = vunpack.c.l.s8.bf16 %v3026
      %v3197 = vunpack.c.h.s8.bf16 %v3025
      %v3198 = vunpack.c.h.s8.bf16 %v3026
      %v3199 = vunpack.c.l.s8.bf16 %v3027
      %v3200 = vunpack.c.l.s8.bf16 %v3028
      %v3201 = vunpack.c.h.s8.bf16 %v3027
      %v3202 = vunpack.c.h.s8.bf16 %v3028
      %v3203 = vunpack.c.l.s8.bf16 %v3029
      %v3204 = vunpack.c.l.s8.bf16 %v3030
      %v3205 = vunpack.c.h.s8.bf16 %v3029
      %v3206 = vunpack.c.h.s8.bf16 %v3030
      %v3207 = vunpack.c.l.s8.bf16 %v3031
      %v3208 = vunpack.c.l.s8.bf16 %v3032
      %v3209 = vunpack.c.h.s8.bf16 %v3031
      %v3210 = vunpack.c.h.s8.bf16 %v3032
      %v3211 = vunpack.c.l.s8.bf16 %v3033
      %v3212 = vunpack.c.l.s8.bf16 %v3034
      %v3213 = vunpack.c.h.s8.bf16 %v3033
      %v3214 = vunpack.c.h.s8.bf16 %v3034
      %v3215 = vunpack.c.l.s8.bf16 %v3035
      %v3216 = vunpack.c.l.s8.bf16 %v3036
      %v3217 = vunpack.c.h.s8.bf16 %v3035
      %v3218 = vunpack.c.h.s8.bf16 %v3036
      %v3219 = vunpack.c.l.s8.bf16 %v3037
      %v3220 = vunpack.c.l.s8.bf16 %v3038
      %v3221 = vunpack.c.h.s8.bf16 %v3037
      %v3222 = vunpack.c.h.s8.bf16 %v3038
      %v3223 = vunpack.c.l.s8.bf16 %v3039
      %v3224 = vunpack.c.l.s8.bf16 %v3040
      %v3225 = vunpack.c.h.s8.bf16 %v3039
      %v3226 = vunpack.c.h.s8.bf16 %v3040
      %v3227 = vunpack.c.l.s8.bf16 %v3041
      %v3228 = vunpack.c.l.s8.bf16 %v3042
      %v3229 = vunpack.c.h.s8.bf16 %v3041
      %v3230 = vunpack.c.h.s8.bf16 %v3042
      %v3231 = vunpack.c.l.s8.bf16 %v3043
      %v3232 = vunpack.c.l.s8.bf16 %v3044
      %v3233 = vunpack.c.h.s8.bf16 %v3043
      %v3234 = vunpack.c.h.s8.bf16 %v3044
      %v3235 = vunpack.c.l.s8.bf16 %v3045
      %v3236 = vunpack.c.l.s8.bf16 %v3046
      %v3237 = vunpack.c.h.s8.bf16 %v3045
      %v3238 = vunpack.c.h.s8.bf16 %v3046
      %v3239 = vunpack.c.l.s8.bf16 %v3047
      %v3240 = vunpack.c.l.s8.bf16 %v3048
      %v3241 = vunpack.c.h.s8.bf16 %v3047
      %v3242 = vunpack.c.h.s8.bf16 %v3048
      %v3243 = vunpack.c.l.s8.bf16 %v3049
      %v3244 = vunpack.c.l.s8.bf16 %v3050
      %v3245 = vunpack.c.h.s8.bf16 %v3049
      %v3246 = vunpack.c.h.s8.bf16 %v3050
      %v3247 = vunpack.c.l.s8.bf16 %v3051
      %v3248 = vunpack.c.l.s8.bf16 %v3052
      %v3249 = vunpack.c.h.s8.bf16 %v3051
      %v3250 = vunpack.c.h.s8.bf16 %v3052
      %v3251 = vunpack.c.l.s8.bf16 %v3053
      %v3252 = vunpack.c.l.s8.bf16 %v3054
      %v3253 = vunpack.c.h.s8.bf16 %v3053
      %v3254 = vunpack.c.h.s8.bf16 %v3054
      %v3255 = vunpack.c.l.s8.bf16 %v3055
      %v3256 = vunpack.c.l.s8.bf16 %v3056
      %v3257 = vunpack.c.h.s8.bf16 %v3055
      %v3258 = vunpack.c.h.s8.bf16 %v3056
      %v3259 = vunpack.c.l.s8.bf16 %v3057
      %v3260 = vunpack.c.l.s8.bf16 %v3058
      %v3261 = vunpack.c.h.s8.bf16 %v3057
      %v3262 = vunpack.c.h.s8.bf16 %v3058
      %v3263 = vunpack.c.l.s8.bf16 %v3059
      %v3264 = vunpack.c.l.s8.bf16 %v3060
      %v3265 = vunpack.c.h.s8.bf16 %v3059
      %v3266 = vunpack.c.h.s8.bf16 %v3060
      %v3267 = vunpack.c.l.s8.bf16 %v3061
      %v3268 = vunpack.c.l.s8.bf16 %v3062
      %v3269 = vunpack.c.h.s8.bf16 %v3061
      %v3270 = vunpack.c.h.s8.bf16 %v3062
      %v3271 = vunpack.c.l.s8.bf16 %v3063
      %v3272 = vunpack.c.l.s8.bf16 %v3064
      %v3273 = vunpack.c.h.s8.bf16 %v3063
      %v3274 = vunpack.c.h.s8.bf16 %v3064
      %v3275 = vunpack.c.l.s8.bf16 %v3065
      %v3276 = vunpack.c.l.s8.bf16 %v3066
      %v3277 = vunpack.c.h.s8.bf16 %v3065
      %v3278 = vunpack.c.h.s8.bf16 %v3066
      %v3279 = vunpack.c.l.s8.bf16 %v3067
      %v3280 = vunpack.c.l.s8.bf16 %v3068
      %v3281 = vunpack.c.h.s8.bf16 %v3067
      %v3282 = vunpack.c.h.s8.bf16 %v3068
      %v3283 = vunpack.c.l.s8.bf16 %v3069
      %v3284 = vunpack.c.l.s8.bf16 %v3070
      %v3285 = vunpack.c.h.s8.bf16 %v3069
      %v3286 = vunpack.c.h.s8.bf16 %v3070
      %v3287 = vunpack.c.l.s8.bf16 %v3071
      %v3288 = vunpack.c.l.s8.bf16 %v3072
      %v3289 = vunpack.c.h.s8.bf16 %v3071
      %v3290 = vunpack.c.h.s8.bf16 %v3072
      %v3291 = vunpack.c.l.s8.bf16 %v3073
      %v3292 = vunpack.c.l.s8.bf16 %v3074
      %v3293 = vunpack.c.h.s8.bf16 %v3073
      %v3294 = vunpack.c.h.s8.bf16 %v3074
      %v3295 = vunpack.c.l.s8.bf16 %v3075
      %v3296 = vunpack.c.l.s8.bf16 %v3076
      %v3297 = vunpack.c.h.s8.bf16 %v3075
      %v3298 = vunpack.c.h.s8.bf16 %v3076
      %v3299 = vunpack.c.l.s8.bf16 %v3077
      %v3300 = vunpack.c.l.s8.bf16 %v3078
      %v3301 = vunpack.c.h.s8.bf16 %v3077
      %v3302 = vunpack.c.h.s8.bf16 %v3078
      %v3303 = vunpack.c.l.s8.bf16 %v3079
      %v3304 = vunpack.c.l.s8.bf16 %v3080
      %v3305 = vunpack.c.h.s8.bf16 %v3079
      %v3306 = vunpack.c.h.s8.bf16 %v3080
      %v3307 = vunpack.c.l.s8.bf16 %v3081
      %v3308 = vunpack.c.l.s8.bf16 %v3082
      %v3309 = vunpack.c.h.s8.bf16 %v3081
      %v3310 = vunpack.c.h.s8.bf16 %v3082
      %v3311 = vunpack.c.l.s8.bf16 %v3083
      %v3312 = vunpack.c.l.s8.bf16 %v3084
      %v3313 = vunpack.c.h.s8.bf16 %v3083
      %v3314 = vunpack.c.h.s8.bf16 %v3084
      %v3315 = vunpack.c.l.s8.bf16 %v3085
      %v3316 = vunpack.c.l.s8.bf16 %v3086
      %v3317 = vunpack.c.h.s8.bf16 %v3085
      %v3318 = vunpack.c.h.s8.bf16 %v3086
      %v3319 = vunpack.c.l.s8.bf16 %v3087
      %v3320 = vunpack.c.l.s8.bf16 %v3088
      %v3321 = vunpack.c.h.s8.bf16 %v3087
      %v3322 = vunpack.c.h.s8.bf16 %v3088
      %v3323 = vunpack.c.l.s8.bf16 %v3089
      %v3324 = vunpack.c.l.s8.bf16 %v3090
      %v3325 = vunpack.c.h.s8.bf16 %v3089
      %v3326 = vunpack.c.h.s8.bf16 %v3090
      %v3327 = vunpack.c.l.s8.bf16 %v3091
      %v3328 = vunpack.c.l.s8.bf16 %v3092
      %v3329 = vunpack.c.h.s8.bf16 %v3091
      %v3330 = vunpack.c.h.s8.bf16 %v3092
      %v3331 = vunpack.c.l.s8.bf16 %v3093
      %v3332 = vunpack.c.l.s8.bf16 %v3094
      %v3333 = vunpack.c.h.s8.bf16 %v3093
      %v3334 = vunpack.c.h.s8.bf16 %v3094
      %v3335 = vunpack.c.l.s8.bf16 %v3095
      %v3336 = vunpack.c.l.s8.bf16 %v3096
      %v3337 = vunpack.c.h.s8.bf16 %v3095
      %v3338 = vunpack.c.h.s8.bf16 %v3096
      %v3339 = vunpack.c.l.s8.bf16 %v3097
      %v3340 = vunpack.c.l.s8.bf16 %v3098
      %v3341 = vunpack.c.h.s8.bf16 %v3097
      %v3342 = vunpack.c.h.s8.bf16 %v3098
      %v3343 = vunpack.c.l.s8.bf16 %v3099
      %v3344 = vunpack.c.l.s8.bf16 %v3100
      %v3345 = vunpack.c.h.s8.bf16 %v3099
      %v3346 = vunpack.c.h.s8.bf16 %v3100
      %v3347 = vunpack.c.l.s8.bf16 %v3101
      %v3348 = vunpack.c.l.s8.bf16 %v3102
      %v3349 = vunpack.c.h.s8.bf16 %v3101
      %v3350 = vunpack.c.h.s8.bf16 %v3102
      %v3351 = vunpack.c.l.s8.bf16 %v3103
      %v3352 = vunpack.c.l.s8.bf16 %v3104
      %v3353 = vunpack.c.h.s8.bf16 %v3103
      %v3354 = vunpack.c.h.s8.bf16 %v3104
      %v3355 = vunpack.c.l.s8.bf16 %v3105
      %v3356 = vunpack.c.l.s8.bf16 %v3106
      %v3357 = vunpack.c.h.s8.bf16 %v3105
      %v3358 = vunpack.c.h.s8.bf16 %v3106
      %v3359 = vunpack.c.l.s8.bf16 %v3107
      %v3360 = vunpack.c.l.s8.bf16 %v3108
      %v3361 = vunpack.c.h.s8.bf16 %v3107
      %v3362 = vunpack.c.h.s8.bf16 %v3108
      %v3363 = vunpack.c.l.s8.bf16 %v3109
      %v3364 = vunpack.c.l.s8.bf16 %v3110
      %v3365 = vunpack.c.h.s8.bf16 %v3109
      %v3366 = vunpack.c.h.s8.bf16 %v3110
      %3367 = vmatprep.subr.bf16.mxu0 %v3112
      %3368 = vmatpush1.bf16.msra.mxu0 %v3111
      %3369 = vmatprep.subr.bf16.mxu0 %v3114
      %3370 = vmatpush1.bf16.msra.mxu0 %v3113
      %3371 = vmatprep.subr.bf16.mxu0 %v3116
      %3372 = vmatpush1.bf16.msra.mxu0 %v3115
      %3373 = vmatprep.subr.bf16.mxu0 %v3118
      %3374 = vmatpush1.bf16.msra.mxu0 %v3117
      %3375 = vmatprep.subr.bf16.mxu0 %v3120
      %3376 = vmatpush1.bf16.msra.mxu0 %v3119
      %3377 = vmatprep.subr.bf16.mxu0 %v3122
      %3378 = vmatpush1.bf16.msra.mxu0 %v3121
      %3379 = vmatprep.subr.bf16.mxu0 %v3124
      %3380 = vmatpush1.bf16.msra.mxu0 %v3123
      %3381 = vmatprep.subr.bf16.mxu0 %v3126
      %3382 = vmatpush1.bf16.msra.mxu0 %v3125
      %3383 = vmatprep.subr.bf16.mxu0 %v3128
      %3384 = vmatpush1.bf16.msra.mxu0 %v3127
      %3385 = vmatprep.subr.bf16.mxu0 %v3130
      %3386 = vmatpush1.bf16.msra.mxu0 %v3129
      %3387 = vmatprep.subr.bf16.mxu0 %v3132
      %3388 = vmatpush1.bf16.msra.mxu0 %v3131
      %3389 = vmatprep.subr.bf16.mxu0 %v3134
      %3390 = vmatpush1.bf16.msra.mxu0 %v3133
      %3391 = vmatprep.subr.bf16.mxu0 %v3136
      %3392 = vmatpush1.bf16.msra.mxu0 %v3135
      %3393 = vmatprep.subr.bf16.mxu0 %v3138
      %3394 = vmatpush1.bf16.msra.mxu0 %v3137
      %3395 = vmatprep.subr.bf16.mxu0 %v3140
      %3396 = vmatpush1.bf16.msra.mxu0 %v3139
      %3397 = vmatprep.subr.bf16.mxu0 %v3142
      %3398 = vmatpush1.bf16.msra.mxu0 %v3141
      %3399 = vmatprep.mubr.bf16.mxu0 %v2968
      %3400 = vmatmul.mubr.bf16.gmra.mrb[0].mxu0 %v2967
      %v3401 = vpop.f32.mrb[0].mxu0
      %v3402 = vadd.f32 0.0, %v3401
      %v3403 = vpop.f32.mrb[0].mxu0
      %v3404 = vadd.f32 0.0, %v3403
      %v3405 = vpop.f32.mrb[0].mxu0
      %v3406 = vadd.f32 0.0, %v3405
      %v3407 = vpop.f32.mrb[0].mxu0
      %v3408 = vadd.f32 0.0, %v3407
      %3409 = vdwg.mxu0
      %3410 = vmatprep.subr.bf16.mxu0 %v3144
      %3411 = vmatpush1.bf16.msra.mxu0 %v3143
      %3412 = vmatprep.subr.bf16.mxu0 %v3146
      %3413 = vmatpush1.bf16.msra.mxu0 %v3145
      %3414 = vmatprep.subr.bf16.mxu0 %v3148
      %3415 = vmatpush1.bf16.msra.mxu0 %v3147
      %3416 = vmatprep.subr.bf16.mxu0 %v3150
      %3417 = vmatpush1.bf16.msra.mxu0 %v3149
      %3418 = vmatprep.subr.bf16.mxu0 %v3152
      %3419 = vmatpush1.bf16.msra.mxu0 %v3151
      %3420 = vmatprep.subr.bf16.mxu0 %v3154
      %3421 = vmatpush1.bf16.msra.mxu0 %v3153
      %3422 = vmatprep.subr.bf16.mxu0 %v3156
      %3423 = vmatpush1.bf16.msra.mxu0 %v3155
      %3424 = vmatprep.subr.bf16.mxu0 %v3158
      %3425 = vmatpush1.bf16.msra.mxu0 %v3157
      %3426 = vmatprep.subr.bf16.mxu0 %v3160
      %3427 = vmatpush1.bf16.msra.mxu0 %v3159
      %3428 = vmatprep.subr.bf16.mxu0 %v3162
      %3429 = vmatpush1.bf16.msra.mxu0 %v3161
      %3430 = vmatprep.subr.bf16.mxu0 %v3164
      %3431 = vmatpush1.bf16.msra.mxu0 %v3163
      %3432 = vmatprep.subr.bf16.mxu0 %v3166
      %3433 = vmatpush1.bf16.msra.mxu0 %v3165
      %3434 = vmatprep.subr.bf16.mxu0 %v3168
      %3435 = vmatpush1.bf16.msra.mxu0 %v3167
      %3436 = vmatprep.subr.bf16.mxu0 %v3170
      %3437 = vmatpush1.bf16.msra.mxu0 %v3169
      %3438 = vmatprep.subr.bf16.mxu0 %v3172
      %3439 = vmatpush1.bf16.msra.mxu0 %v3171
      %3440 = vmatprep.subr.bf16.mxu0 %v3174
      %3441 = vmatpush1.bf16.msra.mxu0 %v3173
      %3442 = vmatprep.mubr.bf16.mxu0 %v2970
      %3443 = vmatmul.mubr.bf16.gmra.mrb[0].mxu0 %v2969
      %v3444 = vpop.f32.mrb[0].mxu0
      %v3445 = vadd.f32 %v3402, %v3444
      %v3446 = vpop.f32.mrb[0].mxu0
      %v3447 = vadd.f32 %v3404, %v3446
      %v3448 = vpop.f32.mrb[0].mxu0
      %v3449 = vadd.f32 %v3406, %v3448
      %v3450 = vpop.f32.mrb[0].mxu0
      %v3451 = vadd.f32 %v3408, %v3450
      %3452 = vdwg.mxu0
      %3453 = vmatprep.subr.bf16.mxu0 %v3176
      %3454 = vmatpush1.bf16.msra.mxu0 %v3175
      %3455 = vmatprep.subr.bf16.mxu0 %v3178
      %3456 = vmatpush1.bf16.msra.mxu0 %v3177
      %3457 = vmatprep.subr.bf16.mxu0 %v3180
      %3458 = vmatpush1.bf16.msra.mxu0 %v3179
      %3459 = vmatprep.subr.bf16.mxu0 %v3182
      %3460 = vmatpush1.bf16.msra.mxu0 %v3181
      %3461 = vmatprep.subr.bf16.mxu0 %v3184
      %3462 = vmatpush1.bf16.msra.mxu0 %v3183
      %3463 = vmatprep.subr.bf16.mxu0 %v3186
      %3464 = vmatpush1.bf16.msra.mxu0 %v3185
      %3465 = vmatprep.subr.bf16.mxu0 %v3188
      %3466 = vmatpush1.bf16.msra.mxu0 %v3187
      %3467 = vmatprep.subr.bf16.mxu0 %v3190
      %3468 = vmatpush1.bf16.msra.mxu0 %v3189
      %3469 = vmatprep.subr.bf16.mxu0 %v3192
      %3470 = vmatpush1.bf16.msra.mxu0 %v3191
      %3471 = vmatprep.subr.bf16.mxu0 %v3194
      %3472 = vmatpush1.bf16.msra.mxu0 %v3193
      %3473 = vmatprep.subr.bf16.mxu0 %v3196
      %3474 = vmatpush1.bf16.msra.mxu0 %v3195
      %3475 = vmatprep.subr.bf16.mxu0 %v3198
      %3476 = vmatpush1.bf16.msra.mxu0 %v3197
      %3477 = vmatprep.subr.bf16.mxu0 %v3200
      %3478 = vmatpush1.bf16.msra.mxu0 %v3199
      %3479 = vmatprep.subr.bf16.mxu0 %v3202
      %3480 = vmatpush1.bf16.msra.mxu0 %v3201
      %3481 = vmatprep.subr.bf16.mxu0 %v3204
      %3482 = vmatpush1.bf16.msra.mxu0 %v3203
      %3483 = vmatprep.subr.bf16.mxu0 %v3206
      %3484 = vmatpush1.bf16.msra.mxu0 %v3205
      %3485 = vmatprep.mubr.bf16.mxu0 %v2972
      %3486 = vmatmul.mubr.bf16.gmra.mrb[0].mxu0 %v2971
      %v3487 = vpop.f32.mrb[0].mxu0
      %v3488 = vadd.f32 %v3445, %v3487
      %v3489 = vpop.f32.mrb[0].mxu0
      %v3490 = vadd.f32 %v3447, %v3489
      %v3491 = vpop.f32.mrb[0].mxu0
      %v3492 = vadd.f32 %v3449, %v3491
      %v3493 = vpop.f32.mrb[0].mxu0
      %v3494 = vadd.f32 %v3451, %v3493
      %3495 = vdwg.mxu0
      %3496 = vmatprep.subr.bf16.mxu0 %v3208
      %3497 = vmatpush1.bf16.msra.mxu0 %v3207
      %3498 = vmatprep.subr.bf16.mxu0 %v3210
      %3499 = vmatpush1.bf16.msra.mxu0 %v3209
      %3500 = vmatprep.subr.bf16.mxu0 %v3212
      %3501 = vmatpush1.bf16.msra.mxu0 %v3211
      %3502 = vmatprep.subr.bf16.mxu0 %v3214
      %3503 = vmatpush1.bf16.msra.mxu0 %v3213
      %3504 = vmatprep.subr.bf16.mxu0 %v3216
      %3505 = vmatpush1.bf16.msra.mxu0 %v3215
      %3506 = vmatprep.subr.bf16.mxu0 %v3218
      %3507 = vmatpush1.bf16.msra.mxu0 %v3217
      %3508 = vmatprep.subr.bf16.mxu0 %v3220
      %3509 = vmatpush1.bf16.msra.mxu0 %v3219
      %3510 = vmatprep.subr.bf16.mxu0 %v3222
      %3511 = vmatpush1.bf16.msra.mxu0 %v3221
      %3512 = vmatprep.subr.bf16.mxu0 %v3224
      %3513 = vmatpush1.bf16.msra.mxu0 %v3223
      %3514 = vmatprep.subr.bf16.mxu0 %v3226
      %3515 = vmatpush1.bf16.msra.mxu0 %v3225
      %3516 = vmatprep.subr.bf16.mxu0 %v3228
      %3517 = vmatpush1.bf16.msra.mxu0 %v3227
      %3518 = vmatprep.subr.bf16.mxu0 %v3230
      %3519 = vmatpush1.bf16.msra.mxu0 %v3229
      %3520 = vmatprep.subr.bf16.mxu0 %v3232
      %3521 = vmatpush1.bf16.msra.mxu0 %v3231
      %3522 = vmatprep.subr.bf16.mxu0 %v3234
      %3523 = vmatpush1.bf16.msra.mxu0 %v3233
      %3524 = vmatprep.subr.bf16.mxu0 %v3236
      %3525 = vmatpush1.bf16.msra.mxu0 %v3235
      %3526 = vmatprep.subr.bf16.mxu0 %v3238
      %3527 = vmatpush1.bf16.msra.mxu0 %v3237
      %3528 = vmatprep.mubr.bf16.mxu0 %v2974
      %3529 = vmatmul.mubr.bf16.gmra.mrb[0].mxu0 %v2973
      %v3530 = vpop.f32.mrb[0].mxu0
      %v3531 = vadd.f32 %v3488, %v3530
      %v3532 = vpop.f32.mrb[0].mxu0
      %v3533 = vadd.f32 %v3490, %v3532
      %v3534 = vpop.f32.mrb[0].mxu0
      %v3535 = vadd.f32 %v3492, %v3534
      %v3536 = vpop.f32.mrb[0].mxu0
      %v3537 = vadd.f32 %v3494, %v3536
      %3538 = vdwg.mxu0
      %3539 = vmatprep.subr.bf16.mxu0 %v3240
      %3540 = vmatpush1.bf16.msra.mxu0 %v3239
      %3541 = vmatprep.subr.bf16.mxu0 %v3242
      %3542 = vmatpush1.bf16.msra.mxu0 %v3241
      %3543 = vmatprep.subr.bf16.mxu0 %v3244
      %3544 = vmatpush1.bf16.msra.mxu0 %v3243
      %3545 = vmatprep.subr.bf16.mxu0 %v3246
      %3546 = vmatpush1.bf16.msra.mxu0 %v3245
      %3547 = vmatprep.subr.bf16.mxu0 %v3248
      %3548 = vmatpush1.bf16.msra.mxu0 %v3247
      %3549 = vmatprep.subr.bf16.mxu0 %v3250
      %3550 = vmatpush1.bf16.msra.mxu0 %v3249
      %3551 = vmatprep.subr.bf16.mxu0 %v3252
      %3552 = vmatpush1.bf16.msra.mxu0 %v3251
      %3553 = vmatprep.subr.bf16.mxu0 %v3254
      %3554 = vmatpush1.bf16.msra.mxu0 %v3253
      %3555 = vmatprep.subr.bf16.mxu0 %v3256
      %3556 = vmatpush1.bf16.msra.mxu0 %v3255
      %3557 = vmatprep.subr.bf16.mxu0 %v3258
      %3558 = vmatpush1.bf16.msra.mxu0 %v3257
      %3559 = vmatprep.subr.bf16.mxu0 %v3260
      %3560 = vmatpush1.bf16.msra.mxu0 %v3259
      %3561 = vmatprep.subr.bf16.mxu0 %v3262
      %3562 = vmatpush1.bf16.msra.mxu0 %v3261
      %3563 = vmatprep.subr.bf16.mxu0 %v3264
      %3564 = vmatpush1.bf16.msra.mxu0 %v3263
      %3565 = vmatprep.subr.bf16.mxu0 %v3266
      %3566 = vmatpush1.bf16.msra.mxu0 %v3265
      %3567 = vmatprep.subr.bf16.mxu0 %v3268
      %3568 = vmatpush1.bf16.msra.mxu0 %v3267
      %3569 = vmatprep.subr.bf16.mxu0 %v3270
      %3570 = vmatpush1.bf16.msra.mxu0 %v3269
      %3571 = vmatprep.mubr.bf16.mxu0 %v2976
      %3572 = vmatmul.mubr.bf16.gmra.mrb[0].mxu0 %v2975
      %v3573 = vpop.f32.mrb[0].mxu0
      %v3574 = vadd.f32 %v3531, %v3573
      %v3575 = vpop.f32.mrb[0].mxu0
      %v3576 = vadd.f32 %v3533, %v3575
      %v3577 = vpop.f32.mrb[0].mxu0
      %v3578 = vadd.f32 %v3535, %v3577
      %v3579 = vpop.f32.mrb[0].mxu0
      %v3580 = vadd.f32 %v3537, %v3579
      %3581 = vdwg.mxu0
      %3582 = vmatprep.subr.bf16.mxu0 %v3272
      %3583 = vmatpush1.bf16.msra.mxu0 %v3271
      %3584 = vmatprep.subr.bf16.mxu0 %v3274
      %3585 = vmatpush1.bf16.msra.mxu0 %v3273
      %3586 = vmatprep.subr.bf16.mxu0 %v3276
      %3587 = vmatpush1.bf16.msra.mxu0 %v3275
      %3588 = vmatprep.subr.bf16.mxu0 %v3278
      %3589 = vmatpush1.bf16.msra.mxu0 %v3277
      %3590 = vmatprep.subr.bf16.mxu0 %v3280
      %3591 = vmatpush1.bf16.msra.mxu0 %v3279
      %3592 = vmatprep.subr.bf16.mxu0 %v3282
      %3593 = vmatpush1.bf16.msra.mxu0 %v3281
      %3594 = vmatprep.subr.bf16.mxu0 %v3284
      %3595 = vmatpush1.bf16.msra.mxu0 %v3283
      %3596 = vmatprep.subr.bf16.mxu0 %v3286
      %3597 = vmatpush1.bf16.msra.mxu0 %v3285
      %3598 = vmatprep.subr.bf16.mxu0 %v3288
      %3599 = vmatpush1.bf16.msra.mxu0 %v3287
      %3600 = vmatprep.subr.bf16.mxu0 %v3290
      %3601 = vmatpush1.bf16.msra.mxu0 %v3289
      %3602 = vmatprep.subr.bf16.mxu0 %v3292
      %3603 = vmatpush1.bf16.msra.mxu0 %v3291
      %3604 = vmatprep.subr.bf16.mxu0 %v3294
      %3605 = vmatpush1.bf16.msra.mxu0 %v3293
      %3606 = vmatprep.subr.bf16.mxu0 %v3296
      %3607 = vmatpush1.bf16.msra.mxu0 %v3295
      %3608 = vmatprep.subr.bf16.mxu0 %v3298
      %3609 = vmatpush1.bf16.msra.mxu0 %v3297
      %3610 = vmatprep.subr.bf16.mxu0 %v3300
      %3611 = vmatpush1.bf16.msra.mxu0 %v3299
      %3612 = vmatprep.subr.bf16.mxu0 %v3302
      %3613 = vmatpush1.bf16.msra.mxu0 %v3301
      %3614 = vmatprep.mubr.bf16.mxu0 %v2978
      %3615 = vmatmul.mubr.bf16.gmra.mrb[0].mxu0 %v2977
      %v3616 = vpop.f32.mrb[0].mxu0
      %v3617 = vadd.f32 %v3574, %v3616
      %v3618 = vpop.f32.mrb[0].mxu0
      %v3619 = vadd.f32 %v3576, %v3618
      %v3620 = vpop.f32.mrb[0].mxu0
      %v3621 = vadd.f32 %v3578, %v3620
      %v3622 = vpop.f32.mrb[0].mxu0
      %v3623 = vadd.f32 %v3580, %v3622
      %3624 = vdwg.mxu0
      %3625 = vmatprep.subr.bf16.mxu0 %v3304
      %3626 = vmatpush1.bf16.msra.mxu0 %v3303
      %3627 = vmatprep.subr.bf16.mxu0 %v3306
      %3628 = vmatpush1.bf16.msra.mxu0 %v3305
      %3629 = vmatprep.subr.bf16.mxu0 %v3308
      %3630 = vmatpush1.bf16.msra.mxu0 %v3307
      %3631 = vmatprep.subr.bf16.mxu0 %v3310
      %3632 = vmatpush1.bf16.msra.mxu0 %v3309
      %3633 = vmatprep.subr.bf16.mxu0 %v3312
      %3634 = vmatpush1.bf16.msra.mxu0 %v3311
      %3635 = vmatprep.subr.bf16.mxu0 %v3314
      %3636 = vmatpush1.bf16.msra.mxu0 %v3313
      %3637 = vmatprep.subr.bf16.mxu0 %v3316
      %3638 = vmatpush1.bf16.msra.mxu0 %v3315
      %3639 = vmatprep.subr.bf16.mxu0 %v3318
      %3640 = vmatpush1.bf16.msra.mxu0 %v3317
      %3641 = vmatprep.subr.bf16.mxu0 %v3320
      %3642 = vmatpush1.bf16.msra.mxu0 %v3319
      %3643 = vmatprep.subr.bf16.mxu0 %v3322
      %3644 = vmatpush1.bf16.msra.mxu0 %v3321
      %3645 = vmatprep.subr.bf16.mxu0 %v3324
      %3646 = vmatpush1.bf16.msra.mxu0 %v3323
      %3647 = vmatprep.subr.bf16.mxu0 %v3326
      %3648 = vmatpush1.bf16.msra.mxu0 %v3325
      %3649 = vmatprep.subr.bf16.mxu0 %v3328
      %3650 = vmatpush1.bf16.msra.mxu0 %v3327
      %3651 = vmatprep.subr.bf16.mxu0 %v3330
      %3652 = vmatpush1.bf16.msra.mxu0 %v3329
      %3653 = vmatprep.subr.bf16.mxu0 %v3332
      %3654 = vmatpush1.bf16.msra.mxu0 %v3331
      %3655 = vmatprep.subr.bf16.mxu0 %v3334
      %3656 = vmatpush1.bf16.msra.mxu0 %v3333
      %3657 = vmatprep.mubr.bf16.mxu0 %v2980
      %3658 = vmatmul.mubr.bf16.gmra.mrb[0].mxu0 %v2979
      %v3659 = vpop.f32.mrb[0].mxu0
      %v3660 = vadd.f32 %v3617, %v3659
      %v3661 = vpop.f32.mrb[0].mxu0
      %v3662 = vadd.f32 %v3619, %v3661
      %v3663 = vpop.f32.mrb[0].mxu0
      %v3664 = vadd.f32 %v3621, %v3663
      %v3665 = vpop.f32.mrb[0].mxu0
      %v3666 = vadd.f32 %v3623, %v3665
      %3667 = vdwg.mxu0
      %3668 = vmatprep.subr.bf16.mxu0 %v3336
      %3669 = vmatpush1.bf16.msra.mxu0 %v3335
      %3670 = vmatprep.subr.bf16.mxu0 %v3338
      %3671 = vmatpush1.bf16.msra.mxu0 %v3337
      %3672 = vmatprep.subr.bf16.mxu0 %v3340
      %3673 = vmatpush1.bf16.msra.mxu0 %v3339
      %3674 = vmatprep.subr.bf16.mxu0 %v3342
      %3675 = vmatpush1.bf16.msra.mxu0 %v3341
      %3676 = vmatprep.subr.bf16.mxu0 %v3344
      %3677 = vmatpush1.bf16.msra.mxu0 %v3343
      %3678 = vmatprep.subr.bf16.mxu0 %v3346
      %3679 = vmatpush1.bf16.msra.mxu0 %v3345
      %3680 = vmatprep.subr.bf16.mxu0 %v3348
      %3681 = vmatpush1.bf16.msra.mxu0 %v3347
      %3682 = vmatprep.subr.bf16.mxu0 %v3350
      %3683 = vmatpush1.bf16.msra.mxu0 %v3349
      %3684 = vmatprep.subr.bf16.mxu0 %v3352
      %3685 = vmatpush1.bf16.msra.mxu0 %v3351
      %3686 = vmatprep.subr.bf16.mxu0 %v3354
      %3687 = vmatpush1.bf16.msra.mxu0 %v3353
      %3688 = vmatprep.subr.bf16.mxu0 %v3356
      %3689 = vmatpush1.bf16.msra.mxu0 %v3355
      %3690 = vmatprep.subr.bf16.mxu0 %v3358
      %3691 = vmatpush1.bf16.msra.mxu0 %v3357
      %3692 = vmatprep.subr.bf16.mxu0 %v3360
      %3693 = vmatpush1.bf16.msra.mxu0 %v3359
      %3694 = vmatprep.subr.bf16.mxu0 %v3362
      %3695 = vmatpush1.bf16.msra.mxu0 %v3361
      %3696 = vmatprep.subr.bf16.mxu0 %v3364
      %3697 = vmatpush1.bf16.msra.mxu0 %v3363
      %3698 = vmatprep.subr.bf16.mxu0 %v3366
      %3699 = vmatpush1.bf16.msra.mxu0 %v3365
      %3700 = vmatprep.mubr.bf16.mxu0 %v2982
      %3701 = vmatmul.mubr.bf16.gmra.mrb[0].mxu0 %v2981
      %v3702 = vpop.f32.mrb[0].mxu0
      %v3703 = vadd.f32 %v3660, %v3702
      %v3704 = vpop.f32.mrb[0].mxu0
      %v3705 = vadd.f32 %v3662, %v3704
      %v3706 = vpop.f32.mrb[0].mxu0
      %v3707 = vadd.f32 %v3664, %v3706
      %v3708 = vpop.f32.mrb[0].mxu0
      %v3709 = vadd.f32 %v3666, %v3708
      %3710 = vdwg.mxu0
      %v3711 = vlaneseq
      %v3712 = vshrl.u32 %v3711, 7
      %v3713 = vsub.s32 2, %v3712
      %v3714 = vrot.slane %v1125, %v3713
      %v3715 = vlaneseq
      %v3716 = vshrl.u32 %v3715, 7
      %v3717 = vsub.s32 2, %v3716
      %v3718 = vrot.slane %v1126, %v3717
      %v3719 = vmul.f32 %v3703, %v3714
      %v3720 = vmul.f32 %v3705, %v3718
      %v3721 = vmul.f32 %v3707, %v3714
      %v3722 = vmul.f32 %v3709, %v3718
      %v3723 = vlaneseq
      %v3724 = vshrl.u32 %v3723, 7
      %v3725 = vsub.s32 3, %v3724
      %v3726 = vrot.slane %v1125, %v3725
      %v3727 = vlaneseq
      %v3728 = vshrl.u32 %v3727, 7
      %v3729 = vsub.s32 3, %v3728
      %v3730 = vrot.slane %v1126, %v3729
      %v3731 = vadd.f32 %v3719, %v3726
      %v3732 = vadd.f32 %v3720, %v3730
      %v3733 = vadd.f32 %v3721, %v3726
      %v3734 = vadd.f32 %v3722, %v3730
      %v3735 = vadd.f32 %v1986, %v3731
      %v3736 = vadd.f32 %v1987, %v3732
      %v3737 = vadd.f32 %v1988, %v3733
      %v3738 = vadd.f32 %v1989, %v3734
      %v3739 = vsel %vm1161, %v3736, 0.0
      %v3740 = vadd.f32 %v3735, %v3739
      %3741 = vadd.xlane.f32.xlu0 %v3740
      %v3742 = vpop.xlane.xlu0 %3741
      %v3743 = vsel %vm1161, %v3738, 0.0
      %v3744 = vadd.f32 %v3737, %v3743
      %3745 = vadd.xlane.f32.xlu0 %v3744
      %v3746 = vpop.xlane.xlu0 %3745
      %v3747 = vmul.f32 %v3742, %v1937
      %v3748 = vmul.f32 %v3746, %v1937
      %v3749 = vsub.f32 %v3735, %v3747
      %v3750 = vsub.f32 %v3736, %v3747
      %v3751 = vsub.f32 %v3737, %v3748
      %v3752 = vsub.f32 %v3738, %v3748
      %v3753 = vmul.f32 %v3749, %v3749
      %v3754 = vmul.f32 %v3750, %v3750
      %v3755 = vmul.f32 %v3751, %v3751
      %v3756 = vmul.f32 %v3752, %v3752
      %v3757 = vsel %vm1161, %v3754, 0.0
      %v3758 = vadd.f32 %v3753, %v3757
      %3759 = vadd.xlane.f32.xlu0 %v3758
      %v3760 = vpop.xlane.xlu0 %3759
      %v3761 = vsel %vm1161, %v3756, 0.0
      %v3762 = vadd.f32 %v3755, %v3761
      %3763 = vadd.xlane.f32.xlu0 %v3762
      %v3764 = vpop.xlane.xlu0 %3763
      %v3765 = vmul.f32 %v3760, %v1937
      %v3766 = vmul.f32 %v3764, %v1937
      %v3767 = vadd.f32 %v3765, 1e-05
      %v3768 = vadd.f32 %v3766, 1e-05
      %v3769 = vrsqrt.pop %v3767
      %v3770 = vrsqrt.pop %v3768
      %v3771 = vmul.f32 %v3749, %v3769
      %v3772 = vmul.f32 %v3750, %v3769
      %v3773 = vmul.f32 %v3751, %v3770
      %v3774 = vmul.f32 %v3752, %v3770
      %v3775 = vlaneseq
      %v3776 = vshrl.u32 %v3775, 7
      %v3777 = vsub.s32 4, %v3776
      %v3778 = vrot.slane %v1125, %v3777
      %v3779 = vlaneseq
      %v3780 = vshrl.u32 %v3779, 7
      %v3781 = vsub.s32 4, %v3780
      %v3782 = vrot.slane %v1126, %v3781
      %v3783 = vmul.f32 %v3771, %v3778
      %v3784 = vmul.f32 %v3772, %v3782
      %v3785 = vmul.f32 %v3773, %v3778
      %v3786 = vmul.f32 %v3774, %v3782
      %v3787 = vlaneseq
      %v3788 = vshrl.u32 %v3787, 7
      %v3789 = vsub.s32 5, %v3788
      %v3790 = vrot.slane %v1125, %v3789
      %v3791 = vlaneseq
      %v3792 = vshrl.u32 %v3791, 7
      %v3793 = vsub.s32 5, %v3792
      %v3794 = vrot.slane %v1126, %v3793
      %v3795 = vadd.f32 %v3783, %v3790
      %v3796 = vadd.f32 %v3784, %v3794
      %v3797 = vadd.f32 %v3785, %v3790
      %v3798 = vadd.f32 %v3786, %v3794
      %3799 = vst [vmem:[#allocation2] sm:$0xff] %v3795
      %3800 = vst.msk [vmem:[#allocation2 + $0x8] sm:$0xff] %vm1161, %v3796
      %3801 = vst [vmem:[#allocation2 + $0x10] sm:$0xff] %v3797
      %3802 = vst.msk [vmem:[#allocation2 + $0x18] sm:$0xff] %vm1161, %v3798
      %p3803 = scmp.eq.s32.totalorder %s29, 3
      // Predicated region
      $region89: #{ef_transformer_forward.1} parent=83 // pred_check
        %p3804 = pneg %p3803
      $region90: #{ef_transformer_forward.1} parent=83 // pred_check_branch
        %3806 = sbr.rel (%p3804) target = $region92
      $region91: #{ef_transformer_forward.1} parent=83 // pred_region
        %v3807 = vld [vmem:[%s12] sm:$0xf]
        %v3808 = vsel %vm1161, %v3796, 0.0
        %v3809 = vadd.f32 %v3795, %v3808
        %3810 = vadd.xlane.f32.xlu0 %v3809
        %v3811 = vpop.xlane.xlu0 %3810
        %v3812 = vsel %vm1161, %v3798, 0.0
        %v3813 = vadd.f32 %v3797, %v3812
        %3814 = vadd.xlane.f32.xlu0 %v3813
        %v3815 = vpop.xlane.xlu0 %3814
        %v3816 = vmul.f32 %v3811, %v1937
        %v3817 = vmul.f32 %v3815, %v1937
        %v3818 = vsub.f32 %v3795, %v3816
        %v3819 = vsub.f32 %v3796, %v3816
        %v3820 = vsub.f32 %v3797, %v3817
        %v3821 = vsub.f32 %v3798, %v3817
        %v3822 = vmul.f32 %v3818, %v3818
        %v3823 = vmul.f32 %v3819, %v3819
        %v3824 = vmul.f32 %v3820, %v3820
        %v3825 = vmul.f32 %v3821, %v3821
        %v3826 = vsel %vm1161, %v3823, 0.0
        %v3827 = vadd.f32 %v3822, %v3826
        %3828 = vadd.xlane.f32.xlu0 %v3827
        %v3829 = vpop.xlane.xlu0 %3828
        %v3830 = vsel %vm1161, %v3825, 0.0
        %v3831 = vadd.f32 %v3824, %v3830
        %3832 = vadd.xlane.f32.xlu0 %v3831
        %v3833 = vpop.xlane.xlu0 %3832
        %v3834 = vmul.f32 %v3829, %v1937
        %v3835 = vmul.f32 %v3833, %v1937
        %v3836 = vadd.f32 %v3834, 1e-05
        %v3837 = vadd.f32 %v3835, 1e-05
        %v3838 = vrsqrt.pop %v3836
        %v3839 = vrsqrt.pop %v3837
        %v3840 = vmul.f32 %v3818, %v3838
        %v3841 = vmul.f32 %v3819, %v3838
        %v3842 = vmul.f32 %v3820, %v3839
        %v3843 = vmul.f32 %v3821, %v3839
        %v3845 = vlaneseq
        %v3846 = vshrl.u32 %v3845, 7
        %v3847 = vsub.s32 0, %v3846
        %v3848 = vrot.slane %v3807, %v3847
        %v3849 = vlaneseq
        %v3850 = vshrl.u32 %v3849, 7
        %v3851 = vsub.s32 2, %v3850
        %v3852 = vrot.slane %v3807, %v3851
        %v3855 = vlaneseq
        %v3856 = vshrl.u32 %v3855, 7
        %v3857 = vsub.s32 0, %v3856
        %v3858 = vrot.slane %v3848, %v3857
        %v3859 = vlaneseq
        %v3860 = vshrl.u32 %v3859, 7
        %v3861 = vsub.s32 0, %v3860
        %v3862 = vrot.slane %v3852, %v3861
        %v3863 = vmul.f32 %v3840, %v3858
        %v3864 = vmul.f32 %v3841, %v3862
        %v3865 = vmul.f32 %v3842, %v3858
        %v3866 = vmul.f32 %v3843, %v3862
        %v3867 = vlaneseq
        %v3868 = vshrl.u32 %v3867, 7
        %v3869 = vsub.s32 1, %v3868
        %v3870 = vrot.slane %v3807, %v3869
        %v3871 = vlaneseq
        %v3872 = vshrl.u32 %v3871, 7
        %v3873 = vsub.s32 3, %v3872
        %v3874 = vrot.slane %v3807, %v3873
        %v3877 = vlaneseq
        %v3878 = vshrl.u32 %v3877, 7
        %v3879 = vsub.s32 1, %v3878
        %v3880 = vrot.slane %v3870, %v3879
        %v3881 = vlaneseq
        %v3882 = vshrl.u32 %v3881, 7
        %v3883 = vsub.s32 1, %v3882
        %v3884 = vrot.slane %v3874, %v3883
        %v3885 = vadd.f32 %v3863, %v3880
        %v3886 = vadd.f32 %v3864, %v3884
        %v3887 = vadd.f32 %v3865, %v3880
        %v3888 = vadd.f32 %v3866, %v3884
        %v3889 = vld [vmem:[%s5] sm:$0x3]
        %vm3890 = vcmask 130048
        %v3892 = vsel %vm3890, %v3889, 0
        %3894 = vmatprep.subr.mxu0 %v3886
        %3895 = vmatpush1.msra.mxu0 %v3885
        %3896 = vmatprep.subr.mxu0 %v3888
        %3897 = vmatpush1.msra.mxu0 %v3887
        %3898 = vmatprep.subr.mxu0 0.0
        %3899 = vmatpush1.msra.mxu0 0.0
        %3900 = vmatprep.subr.mxu0 0.0
        %3901 = vmatpush1.msra.mxu0 0.0
        %3902 = vmatprep.subr.mxu0 0.0
        %3903 = vmatpush1.msra.mxu0 0.0
        %3904 = vmatprep.subr.mxu0 0.0
        %3905 = vmatpush1.msra.mxu0 0.0
        %3906 = vmatprep.subr.mxu0 0.0
        %3907 = vmatpush1.msra.mxu0 0.0
        %3908 = vmatprep.subr.mxu0 0.0
        %3909 = vmatpush1.msra.mxu0 0.0
        %3910 = vmatprep.subr.mxu0 0.0
        %3911 = vmatpush1.msra.mxu0 0.0
        %3912 = vmatprep.subr.mxu0 0.0
        %3913 = vmatpush1.msra.mxu0 0.0
        %3914 = vmatprep.subr.mxu0 0.0
        %3915 = vmatpush1.msra.mxu0 0.0
        %3916 = vmatprep.subr.mxu0 0.0
        %3917 = vmatpush1.msra.mxu0 0.0
        %3918 = vmatprep.subr.mxu0 0.0
        %3919 = vmatpush1.msra.mxu0 0.0
        %3920 = vmatprep.subr.mxu0 0.0
        %3921 = vmatpush1.msra.mxu0 0.0
        %3922 = vmatprep.subr.mxu0 0.0
        %3923 = vmatpush1.msra.mxu0 0.0
        %3924 = vmatprep.subr.mxu0 0.0
        %3925 = vmatpush1.msra.mxu0 0.0
        %3926 = vmatprep.subr.mxu0 0.0
        %3927 = vmatpush1.msra.mxu0 0.0
        %3928 = vmatprep.subr.mxu0 0.0
        %3929 = vmatpush1.msra.mxu0 0.0
        %3930 = vmatprep.subr.mxu0 0.0
        %3931 = vmatpush1.msra.mxu0 0.0
        %3932 = vmatprep.subr.mxu0 0.0
        %3933 = vmatpush1.msra.mxu0 0.0
        %3934 = vmatprep.subr.mxu0 0.0
        %3935 = vmatpush1.msra.mxu0 0.0
        %3936 = vmatprep.subr.mxu0 0.0
        %3937 = vmatpush1.msra.mxu0 0.0
        %3938 = vmatprep.subr.mxu0 0.0
        %3939 = vmatpush1.msra.mxu0 0.0
        %3940 = vmatprep.subr.mxu0 0.0
        %3941 = vmatpush1.msra.mxu0 0.0
        %3942 = vmatprep.subr.mxu0 0.0
        %3943 = vmatpush1.msra.mxu0 0.0
        %3944 = vmatprep.subr.mxu0 0.0
        %3945 = vmatpush1.msra.mxu0 0.0
        %3946 = vmatprep.subr.mxu0 0.0
        %3947 = vmatpush1.msra.mxu0 0.0
        %3948 = vmatprep.subr.mxu0 0.0
        %3949 = vmatpush1.msra.mxu0 0.0
        %3950 = vmatprep.subr.mxu0 0.0
        %3951 = vmatpush1.msra.mxu0 0.0
        %3952 = vmatprep.subr.mxu0 0.0
        %3953 = vmatpush1.msra.mxu0 0.0
        %3954 = vmatprep.subr.mxu0 0.0
        %3955 = vmatpush1.msra.mxu0 0.0
        %3956 = vmatprep.subr.mxu0 0.0
        %3957 = vmatpush1.msra.mxu0 0.0
        %3958 = vmatprep.mubr.f32.mxu0 0.0
        %3959 = vmatmul.mubr.f32.gmra.mrb[0].mxu0 %v3892
        %v3960 = vpop.f32.mrb[0].mxu0
        %v3961 = vadd.f32 0.0, %v3960
        %v3962 = vpop.f32.mrb[0].mxu0
        %v3963 = vadd.f32 0.0, %v3962
        %3964 = vdwg.mxu0
        %v3965 = vld [vmem:[%s14] sm:$0x3]
        %v3966 = vpack.c.bf16 %v3961, %v3961
        %v3967 = vpack.c.bf16 %v3963, %v3963
        %v3968 = vld [vmem:[%s13] sm:$0xf]
        %v3969 = vld [vmem:[%s13 + $0x4] sm:$0xf]
        %v3970 = vld [vmem:[%s13 + $0x8] sm:$0xf]
        %v3971 = vld [vmem:[%s13 + $0xc] sm:$0xf]
        %v3972 = vld [vmem:[%s13 + $0x10] sm:$0xf]
        %v3973 = vld [vmem:[%s13 + $0x14] sm:$0xf]
        %v3974 = vld [vmem:[%s13 + $0x18] sm:$0xf]
        %v3975 = vld [vmem:[%s13 + $0x1c] sm:$0xf]
        %v3976 = vld [vmem:[%s13 + $0x20] sm:$0xf]
        %v3977 = vld [vmem:[%s13 + $0x24] sm:$0xf]
        %v3978 = vld [vmem:[%s13 + $0x28] sm:$0xf]
        %v3979 = vld [vmem:[%s13 + $0x2c] sm:$0xf]
        %v3980 = vld [vmem:[%s13 + $0x30] sm:$0xf]
        %v3981 = vld [vmem:[%s13 + $0x34] sm:$0xf]
        %v3982 = vld [vmem:[%s13 + $0x38] sm:$0xf]
        %v3983 = vld [vmem:[%s13 + $0x3c] sm:$0xf]
        %v3984 = vld [vmem:[%s13 + $0x40] sm:$0xf]
        %v3985 = vld [vmem:[%s13 + $0x44] sm:$0xf]
        %v3986 = vld [vmem:[%s13 + $0x48] sm:$0xf]
        %v3987 = vld [vmem:[%s13 + $0x4c] sm:$0xf]
        %v3988 = vlaneseq
        %v3989 = vshrl.u32 %v3988, 7
        %v3990 = vsub.s32 0, %v3989
        %v3991 = vrot.slane %v3965, %v3990
        %v4012 = vunpack.c.l.b16 %v3968
        %v4013 = vunpack.c.l.b16 %v3969
        %v4014 = vunpack.c.l.b16 %v3970
        %v4015 = vunpack.c.l.b16 %v3971
        %v4016 = vunpack.c.l.b16 %v3972
        %v4017 = vunpack.c.l.b16 %v3973
        %v4018 = vunpack.c.l.b16 %v3974
        %v4019 = vunpack.c.l.b16 %v3975
        %v4020 = vunpack.c.l.b16 %v3976
        %v4021 = vunpack.c.l.b16 %v3977
        %v4022 = vunpack.c.l.b16 %v3978
        %v4023 = vunpack.c.l.b16 %v3979
        %v4024 = vunpack.c.l.b16 %v3980
        %v4025 = vunpack.c.l.b16 %v3981
        %v4026 = vunpack.c.l.b16 %v3982
        %v4027 = vunpack.c.l.b16 %v3983
        %v4028 = vunpack.c.l.b16 %v3984
        %v4029 = vunpack.c.l.b16 %v3985
        %v4030 = vunpack.c.l.b16 %v3986
        %v4031 = vunpack.c.l.b16 %v3987
        %v4032 = vpack.c.b16 %v4013, %v4012
        %v4033 = vpack.c.b16 %v4015, %v4014
        %v4034 = vpack.c.b16 %v4017, %v4016
        %v4035 = vpack.c.b16 %v4019, %v4018
        %v4036 = vpack.c.b16 %v4021, %v4020
        %v4037 = vpack.c.b16 %v4023, %v4022
        %v4038 = vpack.c.b16 %v4025, %v4024
        %v4039 = vpack.c.b16 %v4027, %v4026
        %v4040 = vpack.c.b16 %v4029, %v4028
        %v4041 = vpack.c.b16 %v4031, %v4030
        %v4053 = vsel %vm1161, %v3967, 0
        %4055 = vmatprep.subr.bf16.mxu0 0
        %4056 = vmatpush1.bf16.msra.mxu0 %v4032
        %4057 = vmatprep.subr.bf16.mxu0 0
        %4058 = vmatpush1.bf16.msra.mxu0 %v4033
        %4059 = vmatprep.subr.bf16.mxu0 0
        %4060 = vmatpush1.bf16.msra.mxu0 %v4034
        %4061 = vmatprep.subr.bf16.mxu0 0
        %4062 = vmatpush1.bf16.msra.mxu0 %v4035
        %4063 = vmatprep.subr.bf16.mxu0 0
        %4064 = vmatpush1.bf16.msra.mxu0 %v4036
        %4065 = vmatprep.subr.bf16.mxu0 0
        %4066 = vmatpush1.bf16.msra.mxu0 %v4037
        %4067 = vmatprep.subr.bf16.mxu0 0
        %4068 = vmatpush1.bf16.msra.mxu0 %v4038
        %4069 = vmatprep.subr.bf16.mxu0 0
        %4070 = vmatpush1.bf16.msra.mxu0 %v4039
        %4071 = vmatprep.subr.bf16.mxu0 0
        %4072 = vmatpush1.bf16.msra.mxu0 %v4040
        %4073 = vmatprep.subr.bf16.mxu0 0
        %4074 = vmatpush1.bf16.msra.mxu0 %v4041
        %4075 = vmatprep.subr.bf16.mxu0 0
        %4076 = vmatpush1.bf16.msra.mxu0 0
        %4077 = vmatprep.subr.bf16.mxu0 0
        %4078 = vmatpush1.bf16.msra.mxu0 0
        %4079 = vmatprep.subr.bf16.mxu0 0
        %4080 = vmatpush1.bf16.msra.mxu0 0
        %4081 = vmatprep.subr.bf16.mxu0 0
        %4082 = vmatpush1.bf16.msra.mxu0 0
        %4083 = vmatprep.subr.bf16.mxu0 0
        %4084 = vmatpush1.bf16.msra.mxu0 0
        %4085 = vmatprep.subr.bf16.mxu0 0
        %4086 = vmatpush1.bf16.msra.mxu0 0
        %4087 = vmatprep.mubr.bf16.mxu0 %v4053
        %4088 = vmatmul.mubr.bf16.gmra.mrb[0].mxu0 %v3966
        %v4089 = vpop.f32.mrb[0].mxu0
        %v4090 = vadd.f32 %v3991, %v4089
        %v4091 = vpop.f32.mrb[0].mxu0
        %v4092 = vpop.f32.mrb[0].mxu0
        %v4093 = vpop.f32.mrb[0].mxu0
        %4094 = vdwg.mxu0
        %v4095 = vmax.f32 %v4090, 0.0
        %v4096 = vlaneseq
        %v4097 = vshrl.u32 %v4096, 7
        %v4098 = vsub.s32 1, %v4097
        %v4099 = vrot.slane %v3965, %v4098
        %v4100 = vmul.f32 %v4095, %v4099
        %vm4101 = vcmask 648192
        %v4102 = vsel %vm4101, %v4100, 0.0
        %4103 = vadd.xlane.f32.xlu0 %v4102
        %v4104 = vpop.xlane.xlu0 %4103
        %v4105 = vld [vmem:[#allocation3] sm:$0x1]
        %v4107 = vlaneseq
        %v4108 = vshrl.u32 %v4107, 7
        %v4109 = vsub.s32 0, %v4108
        %v4110 = vrot.slane %v4105, %v4109
        %v4112 = vadd.f32 %v4104, %v4110
        %vm4113 = vcmask 1024
        %4114 = vst.msk [vmem:[%s16] sm:$0x3] %vm4113, %v4112
      $region92: #{ef_transformer_forward.1} parent=83 // pred_fallthru
        _
      // Predicated region
      $region93: #{ef_transformer_forward.1} parent=83 // pred_check
        %p4115 = pneg %p408
      $region94: #{ef_transformer_forward.1} parent=83 // pred_check_branch
        %4117 = sbr.rel (%p4115) target = $region96
      $region95: #{ef_transformer_forward.1} parent=83 // pred_region
        _
      $region96: #{ef_transformer_forward.1} parent=83 // pred_fallthru
        _
      // Predicated region
      $region97: #{ef_transformer_forward.1} parent=83 // pred_check
        %p4118 = pneg %p408
      $region98: #{ef_transformer_forward.1} parent=83 // pred_check_branch
        %4120 = sbr.rel (%p4118) target = $region100
      $region99: #{ef_transformer_forward.1} parent=83 // pred_region
        _
      $region100: #{ef_transformer_forward.1} parent=83 // pred_fallthru
        _
    $region84: #{ef_transformer_forward.1} parent=5 // pred_fallthru
      _
    %p4121 = scmp.le.s32.totalorder 2, %s24
    // Predicated region
    $region101: #{ef_transformer_forward.1} parent=5 // pred_check
      %p4122 = pneg %p4121
    $region102: #{ef_transformer_forward.1} parent=5 // pred_check_branch
      %4124 = sbr.rel (%p4122) target = $region104
    $region103: #{ef_transformer_forward.1} parent=5 // pred_region
      %s4125 = ssub.s32 %s24, 2
    $region104: #{ef_transformer_forward.1} parent=5 // pred_fallthru
      _
  $region6: #{ef_transformer_forward.1} parent=0 // loop_footer
    %s28 = sadd.s32 1, %s24
  $region7: #{ef_transformer_forward.1} parent=0 // loop_footer_branch
    %23 = sbr.rel target = $region3
  $region8: #{ef_transformer_forward.1} parent=0 // loop_exit
    _

</llo_original>
